<compile_context>
chip_gen: v7x
topology: tpu7x:2x2x1
jax: 0.10.0
libtpu: 0.0.40
codegen_flags: <defaults>
</compile_context>

<pallas_src>
import math
import functools

import jax
import jax.numpy as jnp
from jax.experimental import pallas as pl
from jax.experimental.pallas import tpu as pltpu


def _sigmoid(x):
    # Same formula in kernel and reference so results match tightly.
    return 1.0 / (1.0 + jnp.exp(-x))


def classifier_gru_kernel(*refs, batch, seq_len, hidden_sizes, num_linear, activ):
    """refs = [x2] + [w_ih, w_hh, b_ih, b_hh]*num_rnn + [w, b]*num_linear
              + [o_ref] + [seq_scratch]."""
    num_rnn = len(hidden_sizes)
    x_ref = refs[0]                                   # (S*B, D_in), time-major
    gru_refs = refs[1:1 + 4 * num_rnn]
    lin_refs = refs[1 + 4 * num_rnn: 1 + 4 * num_rnn + 2 * num_linear]
    o_ref = refs[1 + 4 * num_rnn + 2 * num_linear]    # (B, C)
    seq_ref = refs[-1]                                # VMEM scratch (S*B, H_max)

    B = batch
    h = None
    for i in range(num_rnn):
        H = hidden_sizes[i]
        w_ih = gru_refs[4 * i][...]                   # (D_in, 3H)
        w_hh = gru_refs[4 * i + 1][...]               # (H, 3H)
        b_ih = gru_refs[4 * i + 2][...]               # (1, 3H)
        b_hh = gru_refs[4 * i + 3][...]               # (1, 3H)

        if i == 0:
            layer_in = x_ref[...].astype(jnp.float32)             # (S*B, D)
        else:
            layer_in = seq_ref[:, :hidden_sizes[i - 1]]           # (S*B, H_prev)

        # Fused input projection: one MXU matmul covers every timestep and all
        # three gates of this layer (instead of 3*S tiny matmuls).
        gates_x = jnp.dot(layer_in, w_ih,
                          preferred_element_type=jnp.float32) + b_ih   # (S*B, 3H)

        h = jnp.zeros((B, H), jnp.float32)
        last_gru = (i == num_rnn - 1)
        for t in range(seq_len):                       # sequential recurrence
            gx = gates_x[t * B:(t + 1) * B, :]         # (B, 3H) static slice
            gh = jnp.dot(h, w_hh,
                         preferred_element_type=jnp.float32) + b_hh     # (B, 3H)
            r = _sigmoid(gx[:, :H] + gh[:, :H])
            z = _sigmoid(gx[:, H:2 * H] + gh[:, H:2 * H])
            n = jnp.tanh(gx[:, 2 * H:3 * H] + r * gh[:, 2 * H:3 * H])
            h = (1.0 - z) * n + z * h
            if not last_gru:
                out_t = jnp.maximum(h, 0.0) if activ else h
                seq_ref[t * B:(t + 1) * B, :H] = out_t

    # Module applies ReLU to the last GRU's output before taking h[:, -1, :];
    # ReLU is elementwise so applying it to the last-step state is identical.
    if activ:
        h = jnp.maximum(h, 0.0)

    # F.dropout(h, training=False) is the identity — nothing to do here.
    # TODO(synk): training-mode dropout (random masking via pltpu PRNG) not implemented.

    for j in range(num_linear):
        w = lin_refs[2 * j][...]                       # (in, out)
        b = lin_refs[2 * j + 1][...]                   # (1, out)
        h = jnp.dot(h, w, preferred_element_type=jnp.float32) + b
        if activ:
            h = jnp.maximum(h, 0.0)

    o_ref[...] = h.astype(o_ref.dtype)                 # single dense store


def classifier_gru_pallas(x, gru_params, lin_params, activ=True):
    """x: (B, S, D).
       gru_params: list of (w_ih(D_in,3H), w_hh(H,3H), b_ih(3H,), b_hh(3H,)).
       lin_params: list of (w(in,out), b(out,))."""
    B, S, D = x.shape
    hidden_sizes = tuple(w_hh.shape[0] for (_, w_hh, _, _) in gru_params)
    out_dim = lin_params[-1][0].shape[1]
    h_max = max(hidden_sizes)

    # Time-major with batch folded into rows: each timestep's B rows are
    # contiguous, so per-step slices inside the kernel are static and the
    # full input projection is one 2-D matmul.
    x2 = jnp.transpose(x, (1, 0, 2)).reshape(S * B, D)

    inputs = [x2]
    in_specs = [pl.BlockSpec((S * B, D), lambda i: (0, 0))]
    for (w_ih, w_hh, b_ih, b_hh) in gru_params:
        three_h = w_ih.shape[1]
        inputs += [w_ih, w_hh, b_ih.reshape(1, three_h), b_hh.reshape(1, three_h)]
        in_specs += [
            pl.BlockSpec(w_ih.shape, lambda i: (0, 0)),
            pl.BlockSpec(w_hh.shape, lambda i: (0, 0)),
            pl.BlockSpec((1, three_h), lambda i: (0, 0)),
            pl.BlockSpec((1, three_h), lambda i: (0, 0)),
        ]
    for (w, b) in lin_params:
        inputs += [w, b.reshape(1, b.shape[0])]
        in_specs += [
            pl.BlockSpec(w.shape, lambda i: (0, 0)),
            pl.BlockSpec((1, b.shape[0]), lambda i: (0, 0)),
        ]

    kernel = functools.partial(
        classifier_gru_kernel,
        batch=B, seq_len=S, hidden_sizes=hidden_sizes,
        num_linear=len(lin_params), activ=activ)

    return pl.pallas_call(
        kernel,
        out_shape=jax.ShapeDtypeStruct((B, out_dim), x.dtype),
        grid_spec=pltpu.PrefetchScalarGridSpec(
            num_scalar_prefetch=0,
            grid=(1,),                                  # whole problem = one block
            in_specs=in_specs,
            out_specs=pl.BlockSpec((B, out_dim), lambda i: (0, 0)),
            scratch_shapes=[pltpu.VMEM((S * B, h_max), jnp.float32)],
        ),
        compiler_params=pltpu.CompilerParams(
            dimension_semantics=("arbitrary",)),
    )(*inputs)


def classifier_gru_reference(x, gru_params, lin_params, activ=True):
    """Pure-JAX reference matching the PyTorch ClassifierGRU forward (eval mode)."""
    B, S, _ = x.shape
    h_seq = x
    for (w_ih, w_hh, b_ih, b_hh) in gru_params:
        H = w_hh.shape[0]
        h = jnp.zeros((B, H), x.dtype)
        outs = []
        for t in range(S):
            xt = h_seq[:, t, :]
            gx = xt @ w_ih + b_ih
            gh = h @ w_hh + b_hh
            r = _sigmoid(gx[:, :H] + gh[:, :H])
            z = _sigmoid(gx[:, H:2 * H] + gh[:, H:2 * H])
            n = jnp.tanh(gx[:, 2 * H:3 * H] + r * gh[:, 2 * H:3 * H])
            h = (1.0 - z) * n + z * h
            outs.append(h)
        h_seq = jnp.stack(outs, axis=1)
        if activ:
            h_seq = jnp.maximum(h_seq, 0.0)
    h = h_seq[:, -1, :]
    # dropout(training=False) is the identity.
    for (w, b) in lin_params:
        h = h @ w + b
        if activ:
            h = jnp.maximum(h, 0.0)
    return h


if __name__ == "__main__":
    # cfg: num_rnn=2, num_layers=[1,1], rnn_io=[[32,32],[32,32]],
    #      num_linear=2, linear_io=[[32,32],[32,8]], activ=True, dropout=True
    # forward(input_seqs, training=False)  ->  dropout is a no-op.
    B, S, D = 2, 8, 32
    rnn_io = [(D, 32), (32, 32)]
    linear_io = [(32, 32), (32, 8)]

    key = jax.random.PRNGKey(0)

    def uni(k, shape, bound):
        return jax.random.uniform(k, shape, minval=-bound, maxval=bound,
                                  dtype=jnp.float32)

    key, kx = jax.random.split(key)
    x = jax.random.normal(kx, (B, S, D), dtype=jnp.float32)

    gru_params = []
    for (din, h) in rnn_io:
        bound = 1.0 / math.sqrt(h)
        key, k1, k2, k3, k4 = jax.random.split(key, 5)
        gru_params.append((
            uni(k1, (din, 3 * h), bound),   # w_ih^T  (PyTorch weight_ih_l0 is (3H, din))
            uni(k2, (h, 3 * h), bound),     # w_hh^T
            uni(k3, (3 * h,), bound),       # b_ih
            uni(k4, (3 * h,), bound),       # b_hh
        ))

    lin_params = []
    for (din, dout) in linear_io:
        bound = 1.0 / math.sqrt(din)
        key, k1, k2 = jax.random.split(key, 3)
        lin_params.append((
            uni(k1, (din, dout), bound),    # w^T  (PyTorch Linear weight is (out, in))
            uni(k2, (dout,), bound),        # b
        ))

    out = classifier_gru_pallas(x, gru_params, lin_params, activ=True)
    out = jax.block_until_ready(out)

    ref = classifier_gru_reference(x, gru_params, lin_params, activ=True)
    assert out.shape == (B, linear_io[-1][1]), out.shape
    assert jnp.allclose(out, ref, atol=1e-4, rtol=1e-4), \
        f"max err {jnp.max(jnp.abs(out - ref))}"

    print("KERNEL_OK")
</pallas_src>

<mosaic_0001>
module attributes {stable_mosaic.version = 11 : i64} {
  func.func @classifier_gru_kernel(%arg0: i32, %arg1: memref<16x32xf32, #tpu.memory_space<vmem>>, %arg2: memref<32x96xf32, #tpu.memory_space<vmem>>, %arg3: memref<32x96xf32, #tpu.memory_space<vmem>>, %arg4: memref<1x96xf32, #tpu.memory_space<vmem>>, %arg5: memref<1x96xf32, #tpu.memory_space<vmem>>, %arg6: memref<32x96xf32, #tpu.memory_space<vmem>>, %arg7: memref<32x96xf32, #tpu.memory_space<vmem>>, %arg8: memref<1x96xf32, #tpu.memory_space<vmem>>, %arg9: memref<1x96xf32, #tpu.memory_space<vmem>>, %arg10: memref<32x32xf32, #tpu.memory_space<vmem>>, %arg11: memref<1x32xf32, #tpu.memory_space<vmem>>, %arg12: memref<32x8xf32, #tpu.memory_space<vmem>>, %arg13: memref<1x8xf32, #tpu.memory_space<vmem>>, %arg14: memref<2x8xf32, #tpu.memory_space<vmem>>, %arg15: memref<16x32xf32, #tpu.memory_space<vmem>>) attributes {dimension_semantics = [#tpu.dimension_semantics<arbitrary>], iteration_bounds = array<i64: 1>, scalar_prefetch = 0 : i64, scratch_operands = 1 : i64, tpu.core_type = #tpu.core_type<tc>, window_params = [{pipeline_mode = #tpu.pipeline_mode<synchronous>, transform_indices = @transform_0, window_bounds = array<i64: 16, 32>}, {pipeline_mode = #tpu.pipeline_mode<synchronous>, transform_indices = @transform_1, window_bounds = array<i64: 32, 96>}, {pipeline_mode = #tpu.pipeline_mode<synchronous>, transform_indices = @transform_2, window_bounds = array<i64: 32, 96>}, {pipeline_mode = #tpu.pipeline_mode<synchronous>, transform_indices = @transform_3, window_bounds = array<i64: 1, 96>}, {pipeline_mode = #tpu.pipeline_mode<synchronous>, transform_indices = @transform_4, window_bounds = array<i64: 1, 96>}, {pipeline_mode = #tpu.pipeline_mode<synchronous>, transform_indices = @transform_5, window_bounds = array<i64: 32, 96>}, {pipeline_mode = #tpu.pipeline_mode<synchronous>, transform_indices = @transform_6, window_bounds = array<i64: 32, 96>}, {pipeline_mode = #tpu.pipeline_mode<synchronous>, transform_indices = @transform_7, window_bounds = array<i64: 1, 96>}, {pipeline_mode = #tpu.pipeline_mode<synchronous>, transform_indices = @transform_8, window_bounds = array<i64: 1, 96>}, {pipeline_mode = #tpu.pipeline_mode<synchronous>, transform_indices = @transform_9, window_bounds = array<i64: 32, 32>}, {pipeline_mode = #tpu.pipeline_mode<synchronous>, transform_indices = @transform_10, window_bounds = array<i64: 1, 32>}, {pipeline_mode = #tpu.pipeline_mode<synchronous>, transform_indices = @transform_11, window_bounds = array<i64: 32, 8>}, {pipeline_mode = #tpu.pipeline_mode<synchronous>, transform_indices = @transform_12, window_bounds = array<i64: 1, 8>}, {pipeline_mode = #tpu.pipeline_mode<synchronous>, transform_indices = @transform_13, window_bounds = array<i64: 2, 8>}]} {
    %c0 = arith.constant 0 : index
    %c0_0 = arith.constant 0 : index
    %0 = vector.load %arg2[%c0, %c0_0] : memref<32x96xf32, #tpu.memory_space<vmem>>, vector<32x96xf32>
    %c0_1 = arith.constant 0 : index
    %c0_2 = arith.constant 0 : index
    %1 = vector.load %arg3[%c0_1, %c0_2] : memref<32x96xf32, #tpu.memory_space<vmem>>, vector<32x96xf32>
    %c0_3 = arith.constant 0 : index
    %c0_4 = arith.constant 0 : index
    %2 = vector.load %arg4[%c0_3, %c0_4] : memref<1x96xf32, #tpu.memory_space<vmem>>, vector<1x96xf32>
    %c0_5 = arith.constant 0 : index
    %c0_6 = arith.constant 0 : index
    %3 = vector.load %arg5[%c0_5, %c0_6] : memref<1x96xf32, #tpu.memory_space<vmem>>, vector<1x96xf32>
    %c0_7 = arith.constant 0 : index
    %c0_8 = arith.constant 0 : index
    %4 = vector.load %arg1[%c0_7, %c0_8] : memref<16x32xf32, #tpu.memory_space<vmem>>, vector<16x32xf32>
    %cst = arith.constant dense<0.000000e+00> : vector<16x96xf32>
    %5 = tpu.matmul %4, %0, %cst {dimension_numbers = #tpu.dot_dimension_numbers<[1], [0], [0], [1], [0, 0, 1, 1], [], []>} : vector<16x32xf32>, vector<32x96xf32>, vector<16x96xf32> -> vector<16x96xf32>
    %6 = vector.broadcast %2 : vector<1x96xf32> to vector<16x96xf32>
    %7 = arith.addf %5, %6 : vector<16x96xf32>
    %cst_9 = arith.constant 0.000000e+00 : f32
    %8 = vector.broadcast %cst_9 : f32 to vector<2x32xf32>
    %9 = vector.extract_strided_slice %7 {offsets = [0, 0], sizes = [2, 96], strides = [1, 1]} : vector<16x96xf32> to vector<2x96xf32>
    %cst_10 = arith.constant dense<0.000000e+00> : vector<2x96xf32>
    %10 = tpu.matmul %8, %1, %cst_10 {dimension_numbers = #tpu.dot_dimension_numbers<[1], [0], [0], [1], [0, 0, 1, 1], [], []>} : vector<2x32xf32>, vector<32x96xf32>, vector<2x96xf32> -> vector<2x96xf32>
    %11 = vector.broadcast %3 : vector<1x96xf32> to vector<2x96xf32>
    %12 = arith.addf %10, %11 : vector<2x96xf32>
    %13 = vector.extract_strided_slice %9 {offsets = [0, 0], sizes = [2, 32], strides = [1, 1]} : vector<2x96xf32> to vector<2x32xf32>
    %14 = vector.extract_strided_slice %12 {offsets = [0, 0], sizes = [2, 32], strides = [1, 1]} : vector<2x96xf32> to vector<2x32xf32>
    %15 = arith.addf %13, %14 : vector<2x32xf32>
    %cst_11 = arith.constant 0.000000e+00 : f32
    %16 = vector.broadcast %cst_11 : f32 to vector<2x32xf32>
    %17 = arith.subf %16, %15 : vector<2x32xf32>
    %18 = math.exp %17 : vector<2x32xf32>
    %cst_12 = arith.constant 1.000000e+00 : f32
    %19 = vector.broadcast %cst_12 : f32 to vector<2x32xf32>
    %20 = arith.addf %19, %18 : vector<2x32xf32>
    %cst_13 = arith.constant 1.000000e+00 : f32
    %21 = vector.broadcast %cst_13 : f32 to vector<2x32xf32>
    %22 = arith.divf %21, %20 : vector<2x32xf32>
    %23 = vector.extract_strided_slice %9 {offsets = [0, 32], sizes = [2, 32], strides = [1, 1]} : vector<2x96xf32> to vector<2x32xf32>
    %24 = vector.extract_strided_slice %12 {offsets = [0, 32], sizes = [2, 32], strides = [1, 1]} : vector<2x96xf32> to vector<2x32xf32>
    %25 = arith.addf %23, %24 : vector<2x32xf32>
    %cst_14 = arith.constant 0.000000e+00 : f32
    %26 = vector.broadcast %cst_14 : f32 to vector<2x32xf32>
    %27 = arith.subf %26, %25 : vector<2x32xf32>
    %28 = math.exp %27 : vector<2x32xf32>
    %cst_15 = arith.constant 1.000000e+00 : f32
    %29 = vector.broadcast %cst_15 : f32 to vector<2x32xf32>
    %30 = arith.addf %29, %28 : vector<2x32xf32>
    %cst_16 = arith.constant 1.000000e+00 : f32
    %31 = vector.broadcast %cst_16 : f32 to vector<2x32xf32>
    %32 = arith.divf %31, %30 : vector<2x32xf32>
    %33 = vector.extract_strided_slice %9 {offsets = [0, 64], sizes = [2, 32], strides = [1, 1]} : vector<2x96xf32> to vector<2x32xf32>
    %34 = vector.extract_strided_slice %12 {offsets = [0, 64], sizes = [2, 32], strides = [1, 1]} : vector<2x96xf32> to vector<2x32xf32>
    %35 = arith.mulf %22, %34 : vector<2x32xf32>
    %36 = arith.addf %33, %35 : vector<2x32xf32>
    %37 = math.tanh %36 : vector<2x32xf32>
    %cst_17 = arith.constant 1.000000e+00 : f32
    %38 = vector.broadcast %cst_17 : f32 to vector<2x32xf32>
    %39 = arith.subf %38, %32 : vector<2x32xf32>
    %40 = arith.mulf %39, %37 : vector<2x32xf32>
    %41 = arith.mulf %32, %8 : vector<2x32xf32>
    %42 = arith.addf %40, %41 : vector<2x32xf32>
    %cst_18 = arith.constant 0.000000e+00 : f32
    %43 = vector.broadcast %cst_18 : f32 to vector<2x32xf32>
    %44 = arith.maximumf %42, %43 : vector<2x32xf32>
    %c0_19 = arith.constant 0 : index
    %c0_20 = arith.constant 0 : index
    %45 = vector.load %arg15[%c0_19, %c0_20] : memref<16x32xf32, #tpu.memory_space<vmem>>, vector<2x32xf32>
    tpu.vector_store %arg15[%c0_19, %c0_20], %44 {strides = array<i32>} : memref<16x32xf32, #tpu.memory_space<vmem>>, vector<2x32xf32>,
    %46 = vector.extract_strided_slice %7 {offsets = [2, 0], sizes = [2, 96], strides = [1, 1]} : vector<16x96xf32> to vector<2x96xf32>
    %cst_21 = arith.constant dense<0.000000e+00> : vector<2x96xf32>
    %47 = tpu.matmul %42, %1, %cst_21 {dimension_numbers = #tpu.dot_dimension_numbers<[1], [0], [0], [1], [0, 0, 1, 1], [], []>} : vector<2x32xf32>, vector<32x96xf32>, vector<2x96xf32> -> vector<2x96xf32>
    %48 = vector.broadcast %3 : vector<1x96xf32> to vector<2x96xf32>
    %49 = arith.addf %47, %48 : vector<2x96xf32>
    %50 = vector.extract_strided_slice %46 {offsets = [0, 0], sizes = [2, 32], strides = [1, 1]} : vector<2x96xf32> to vector<2x32xf32>
    %51 = vector.extract_strided_slice %49 {offsets = [0, 0], sizes = [2, 32], strides = [1, 1]} : vector<2x96xf32> to vector<2x32xf32>
    %52 = arith.addf %50, %51 : vector<2x32xf32>
    %cst_22 = arith.constant 0.000000e+00 : f32
    %53 = vector.broadcast %cst_22 : f32 to vector<2x32xf32>
    %54 = arith.subf %53, %52 : vector<2x32xf32>
    %55 = math.exp %54 : vector<2x32xf32>
    %cst_23 = arith.constant 1.000000e+00 : f32
    %56 = vector.broadcast %cst_23 : f32 to vector<2x32xf32>
    %57 = arith.addf %56, %55 : vector<2x32xf32>
    %cst_24 = arith.constant 1.000000e+00 : f32
    %58 = vector.broadcast %cst_24 : f32 to vector<2x32xf32>
    %59 = arith.divf %58, %57 : vector<2x32xf32>
    %60 = vector.extract_strided_slice %46 {offsets = [0, 32], sizes = [2, 32], strides = [1, 1]} : vector<2x96xf32> to vector<2x32xf32>
    %61 = vector.extract_strided_slice %49 {offsets = [0, 32], sizes = [2, 32], strides = [1, 1]} : vector<2x96xf32> to vector<2x32xf32>
    %62 = arith.addf %60, %61 : vector<2x32xf32>
    %cst_25 = arith.constant 0.000000e+00 : f32
    %63 = vector.broadcast %cst_25 : f32 to vector<2x32xf32>
    %64 = arith.subf %63, %62 : vector<2x32xf32>
    %65 = math.exp %64 : vector<2x32xf32>
    %cst_26 = arith.constant 1.000000e+00 : f32
    %66 = vector.broadcast %cst_26 : f32 to vector<2x32xf32>
    %67 = arith.addf %66, %65 : vector<2x32xf32>
    %cst_27 = arith.constant 1.000000e+00 : f32
    %68 = vector.broadcast %cst_27 : f32 to vector<2x32xf32>
    %69 = arith.divf %68, %67 : vector<2x32xf32>
    %70 = vector.extract_strided_slice %46 {offsets = [0, 64], sizes = [2, 32], strides = [1, 1]} : vector<2x96xf32> to vector<2x32xf32>
    %71 = vector.extract_strided_slice %49 {offsets = [0, 64], sizes = [2, 32], strides = [1, 1]} : vector<2x96xf32> to vector<2x32xf32>
    %72 = arith.mulf %59, %71 : vector<2x32xf32>
    %73 = arith.addf %70, %72 : vector<2x32xf32>
    %74 = math.tanh %73 : vector<2x32xf32>
    %cst_28 = arith.constant 1.000000e+00 : f32
    %75 = vector.broadcast %cst_28 : f32 to vector<2x32xf32>
    %76 = arith.subf %75, %69 : vector<2x32xf32>
    %77 = arith.mulf %76, %74 : vector<2x32xf32>
    %78 = arith.mulf %69, %42 : vector<2x32xf32>
    %79 = arith.addf %77, %78 : vector<2x32xf32>
    %cst_29 = arith.constant 0.000000e+00 : f32
    %80 = vector.broadcast %cst_29 : f32 to vector<2x32xf32>
    %81 = arith.maximumf %79, %80 : vector<2x32xf32>
    %c2 = arith.constant 2 : index
    %c0_30 = arith.constant 0 : index
    %82 = vector.load %arg15[%c2, %c0_30] : memref<16x32xf32, #tpu.memory_space<vmem>>, vector<2x32xf32>
    tpu.vector_store %arg15[%c2, %c0_30], %81 {strides = array<i32>} : memref<16x32xf32, #tpu.memory_space<vmem>>, vector<2x32xf32>,
    %83 = vector.extract_strided_slice %7 {offsets = [4, 0], sizes = [2, 96], strides = [1, 1]} : vector<16x96xf32> to vector<2x96xf32>
    %cst_31 = arith.constant dense<0.000000e+00> : vector<2x96xf32>
    %84 = tpu.matmul %79, %1, %cst_31 {dimension_numbers = #tpu.dot_dimension_numbers<[1], [0], [0], [1], [0, 0, 1, 1], [], []>} : vector<2x32xf32>, vector<32x96xf32>, vector<2x96xf32> -> vector<2x96xf32>
    %85 = vector.broadcast %3 : vector<1x96xf32> to vector<2x96xf32>
    %86 = arith.addf %84, %85 : vector<2x96xf32>
    %87 = vector.extract_strided_slice %83 {offsets = [0, 0], sizes = [2, 32], strides = [1, 1]} : vector<2x96xf32> to vector<2x32xf32>
    %88 = vector.extract_strided_slice %86 {offsets = [0, 0], sizes = [2, 32], strides = [1, 1]} : vector<2x96xf32> to vector<2x32xf32>
    %89 = arith.addf %87, %88 : vector<2x32xf32>
    %cst_32 = arith.constant 0.000000e+00 : f32
    %90 = vector.broadcast %cst_32 : f32 to vector<2x32xf32>
    %91 = arith.subf %90, %89 : vector<2x32xf32>
    %92 = math.exp %91 : vector<2x32xf32>
    %cst_33 = arith.constant 1.000000e+00 : f32
    %93 = vector.broadcast %cst_33 : f32 to vector<2x32xf32>
    %94 = arith.addf %93, %92 : vector<2x32xf32>
    %cst_34 = arith.constant 1.000000e+00 : f32
    %95 = vector.broadcast %cst_34 : f32 to vector<2x32xf32>
    %96 = arith.divf %95, %94 : vector<2x32xf32>
    %97 = vector.extract_strided_slice %83 {offsets = [0, 32], sizes = [2, 32], strides = [1, 1]} : vector<2x96xf32> to vector<2x32xf32>
    %98 = vector.extract_strided_slice %86 {offsets = [0, 32], sizes = [2, 32], strides = [1, 1]} : vector<2x96xf32> to vector<2x32xf32>
    %99 = arith.addf %97, %98 : vector<2x32xf32>
    %cst_35 = arith.constant 0.000000e+00 : f32
    %100 = vector.broadcast %cst_35 : f32 to vector<2x32xf32>
    %101 = arith.subf %100, %99 : vector<2x32xf32>
    %102 = math.exp %101 : vector<2x32xf32>
    %cst_36 = arith.constant 1.000000e+00 : f32
    %103 = vector.broadcast %cst_36 : f32 to vector<2x32xf32>
    %104 = arith.addf %103, %102 : vector<2x32xf32>
    %cst_37 = arith.constant 1.000000e+00 : f32
    %105 = vector.broadcast %cst_37 : f32 to vector<2x32xf32>
    %106 = arith.divf %105, %104 : vector<2x32xf32>
    %107 = vector.extract_strided_slice %83 {offsets = [0, 64], sizes = [2, 32], strides = [1, 1]} : vector<2x96xf32> to vector<2x32xf32>
    %108 = vector.extract_strided_slice %86 {offsets = [0, 64], sizes = [2, 32], strides = [1, 1]} : vector<2x96xf32> to vector<2x32xf32>
    %109 = arith.mulf %96, %108 : vector<2x32xf32>
    %110 = arith.addf %107, %109 : vector<2x32xf32>
    %111 = math.tanh %110 : vector<2x32xf32>
    %cst_38 = arith.constant 1.000000e+00 : f32
    %112 = vector.broadcast %cst_38 : f32 to vector<2x32xf32>
    %113 = arith.subf %112, %106 : vector<2x32xf32>
    %114 = arith.mulf %113, %111 : vector<2x32xf32>
    %115 = arith.mulf %106, %79 : vector<2x32xf32>
    %116 = arith.addf %114, %115 : vector<2x32xf32>
    %cst_39 = arith.constant 0.000000e+00 : f32
    %117 = vector.broadcast %cst_39 : f32 to vector<2x32xf32>
    %118 = arith.maximumf %116, %117 : vector<2x32xf32>
    %c4 = arith.constant 4 : index
    %c0_40 = arith.constant 0 : index
    %119 = vector.load %arg15[%c4, %c0_40] : memref<16x32xf32, #tpu.memory_space<vmem>>, vector<2x32xf32>
    tpu.vector_store %arg15[%c4, %c0_40], %118 {strides = array<i32>} : memref<16x32xf32, #tpu.memory_space<vmem>>, vector<2x32xf32>,
    %120 = vector.extract_strided_slice %7 {offsets = [6, 0], sizes = [2, 96], strides = [1, 1]} : vector<16x96xf32> to vector<2x96xf32>
    %cst_41 = arith.constant dense<0.000000e+00> : vector<2x96xf32>
    %121 = tpu.matmul %116, %1, %cst_41 {dimension_numbers = #tpu.dot_dimension_numbers<[1], [0], [0], [1], [0, 0, 1, 1], [], []>} : vector<2x32xf32>, vector<32x96xf32>, vector<2x96xf32> -> vector<2x96xf32>
    %122 = vector.broadcast %3 : vector<1x96xf32> to vector<2x96xf32>
    %123 = arith.addf %121, %122 : vector<2x96xf32>
    %124 = vector.extract_strided_slice %120 {offsets = [0, 0], sizes = [2, 32], strides = [1, 1]} : vector<2x96xf32> to vector<2x32xf32>
    %125 = vector.extract_strided_slice %123 {offsets = [0, 0], sizes = [2, 32], strides = [1, 1]} : vector<2x96xf32> to vector<2x32xf32>
    %126 = arith.addf %124, %125 : vector<2x32xf32>
    %cst_42 = arith.constant 0.000000e+00 : f32
    %127 = vector.broadcast %cst_42 : f32 to vector<2x32xf32>
    %128 = arith.subf %127, %126 : vector<2x32xf32>
    %129 = math.exp %128 : vector<2x32xf32>
    %cst_43 = arith.constant 1.000000e+00 : f32
    %130 = vector.broadcast %cst_43 : f32 to vector<2x32xf32>
    %131 = arith.addf %130, %129 : vector<2x32xf32>
    %cst_44 = arith.constant 1.000000e+00 : f32
    %132 = vector.broadcast %cst_44 : f32 to vector<2x32xf32>
    %133 = arith.divf %132, %131 : vector<2x32xf32>
    %134 = vector.extract_strided_slice %120 {offsets = [0, 32], sizes = [2, 32], strides = [1, 1]} : vector<2x96xf32> to vector<2x32xf32>
    %135 = vector.extract_strided_slice %123 {offsets = [0, 32], sizes = [2, 32], strides = [1, 1]} : vector<2x96xf32> to vector<2x32xf32>
    %136 = arith.addf %134, %135 : vector<2x32xf32>
    %cst_45 = arith.constant 0.000000e+00 : f32
    %137 = vector.broadcast %cst_45 : f32 to vector<2x32xf32>
    %138 = arith.subf %137, %136 : vector<2x32xf32>
    %139 = math.exp %138 : vector<2x32xf32>
    %cst_46 = arith.constant 1.000000e+00 : f32
    %140 = vector.broadcast %cst_46 : f32 to vector<2x32xf32>
    %141 = arith.addf %140, %139 : vector<2x32xf32>
    %cst_47 = arith.constant 1.000000e+00 : f32
    %142 = vector.broadcast %cst_47 : f32 to vector<2x32xf32>
    %143 = arith.divf %142, %141 : vector<2x32xf32>
    %144 = vector.extract_strided_slice %120 {offsets = [0, 64], sizes = [2, 32], strides = [1, 1]} : vector<2x96xf32> to vector<2x32xf32>
    %145 = vector.extract_strided_slice %123 {offsets = [0, 64], sizes = [2, 32], strides = [1, 1]} : vector<2x96xf32> to vector<2x32xf32>
    %146 = arith.mulf %133, %145 : vector<2x32xf32>
    %147 = arith.addf %144, %146 : vector<2x32xf32>
    %148 = math.tanh %147 : vector<2x32xf32>
    %cst_48 = arith.constant 1.000000e+00 : f32
    %149 = vector.broadcast %cst_48 : f32 to vector<2x32xf32>
    %150 = arith.subf %149, %143 : vector<2x32xf32>
    %151 = arith.mulf %150, %148 : vector<2x32xf32>
    %152 = arith.mulf %143, %116 : vector<2x32xf32>
    %153 = arith.addf %151, %152 : vector<2x32xf32>
    %cst_49 = arith.constant 0.000000e+00 : f32
    %154 = vector.broadcast %cst_49 : f32 to vector<2x32xf32>
    %155 = arith.maximumf %153, %154 : vector<2x32xf32>
    %c6 = arith.constant 6 : index
    %c0_50 = arith.constant 0 : index
    %156 = vector.load %arg15[%c6, %c0_50] : memref<16x32xf32, #tpu.memory_space<vmem>>, vector<2x32xf32>
    tpu.vector_store %arg15[%c6, %c0_50], %155 {strides = array<i32>} : memref<16x32xf32, #tpu.memory_space<vmem>>, vector<2x32xf32>,
    %157 = vector.extract_strided_slice %7 {offsets = [8, 0], sizes = [2, 96], strides = [1, 1]} : vector<16x96xf32> to vector<2x96xf32>
    %cst_51 = arith.constant dense<0.000000e+00> : vector<2x96xf32>
    %158 = tpu.matmul %153, %1, %cst_51 {dimension_numbers = #tpu.dot_dimension_numbers<[1], [0], [0], [1], [0, 0, 1, 1], [], []>} : vector<2x32xf32>, vector<32x96xf32>, vector<2x96xf32> -> vector<2x96xf32>
    %159 = vector.broadcast %3 : vector<1x96xf32> to vector<2x96xf32>
    %160 = arith.addf %158, %159 : vector<2x96xf32>
    %161 = vector.extract_strided_slice %157 {offsets = [0, 0], sizes = [2, 32], strides = [1, 1]} : vector<2x96xf32> to vector<2x32xf32>
    %162 = vector.extract_strided_slice %160 {offsets = [0, 0], sizes = [2, 32], strides = [1, 1]} : vector<2x96xf32> to vector<2x32xf32>
    %163 = arith.addf %161, %162 : vector<2x32xf32>
    %cst_52 = arith.constant 0.000000e+00 : f32
    %164 = vector.broadcast %cst_52 : f32 to vector<2x32xf32>
    %165 = arith.subf %164, %163 : vector<2x32xf32>
    %166 = math.exp %165 : vector<2x32xf32>
    %cst_53 = arith.constant 1.000000e+00 : f32
    %167 = vector.broadcast %cst_53 : f32 to vector<2x32xf32>
    %168 = arith.addf %167, %166 : vector<2x32xf32>
    %cst_54 = arith.constant 1.000000e+00 : f32
    %169 = vector.broadcast %cst_54 : f32 to vector<2x32xf32>
    %170 = arith.divf %169, %168 : vector<2x32xf32>
    %171 = vector.extract_strided_slice %157 {offsets = [0, 32], sizes = [2, 32], strides = [1, 1]} : vector<2x96xf32> to vector<2x32xf32>
    %172 = vector.extract_strided_slice %160 {offsets = [0, 32], sizes = [2, 32], strides = [1, 1]} : vector<2x96xf32> to vector<2x32xf32>
    %173 = arith.addf %171, %172 : vector<2x32xf32>
    %cst_55 = arith.constant 0.000000e+00 : f32
    %174 = vector.broadcast %cst_55 : f32 to vector<2x32xf32>
    %175 = arith.subf %174, %173 : vector<2x32xf32>
    %176 = math.exp %175 : vector<2x32xf32>
    %cst_56 = arith.constant 1.000000e+00 : f32
    %177 = vector.broadcast %cst_56 : f32 to vector<2x32xf32>
    %178 = arith.addf %177, %176 : vector<2x32xf32>
    %cst_57 = arith.constant 1.000000e+00 : f32
    %179 = vector.broadcast %cst_57 : f32 to vector<2x32xf32>
    %180 = arith.divf %179, %178 : vector<2x32xf32>
    %181 = vector.extract_strided_slice %157 {offsets = [0, 64], sizes = [2, 32], strides = [1, 1]} : vector<2x96xf32> to vector<2x32xf32>
    %182 = vector.extract_strided_slice %160 {offsets = [0, 64], sizes = [2, 32], strides = [1, 1]} : vector<2x96xf32> to vector<2x32xf32>
    %183 = arith.mulf %170, %182 : vector<2x32xf32>
    %184 = arith.addf %181, %183 : vector<2x32xf32>
    %185 = math.tanh %184 : vector<2x32xf32>
    %cst_58 = arith.constant 1.000000e+00 : f32
    %186 = vector.broadcast %cst_58 : f32 to vector<2x32xf32>
    %187 = arith.subf %186, %180 : vector<2x32xf32>
    %188 = arith.mulf %187, %185 : vector<2x32xf32>
    %189 = arith.mulf %180, %153 : vector<2x32xf32>
    %190 = arith.addf %188, %189 : vector<2x32xf32>
    %cst_59 = arith.constant 0.000000e+00 : f32
    %191 = vector.broadcast %cst_59 : f32 to vector<2x32xf32>
    %192 = arith.maximumf %190, %191 : vector<2x32xf32>
    %c8 = arith.constant 8 : index
    %c0_60 = arith.constant 0 : index
    %193 = vector.load %arg15[%c8, %c0_60] : memref<16x32xf32, #tpu.memory_space<vmem>>, vector<2x32xf32>
    tpu.vector_store %arg15[%c8, %c0_60], %192 {strides = array<i32>} : memref<16x32xf32, #tpu.memory_space<vmem>>, vector<2x32xf32>,
    %194 = vector.extract_strided_slice %7 {offsets = [10, 0], sizes = [2, 96], strides = [1, 1]} : vector<16x96xf32> to vector<2x96xf32>
    %cst_61 = arith.constant dense<0.000000e+00> : vector<2x96xf32>
    %195 = tpu.matmul %190, %1, %cst_61 {dimension_numbers = #tpu.dot_dimension_numbers<[1], [0], [0], [1], [0, 0, 1, 1], [], []>} : vector<2x32xf32>, vector<32x96xf32>, vector<2x96xf32> -> vector<2x96xf32>
    %196 = vector.broadcast %3 : vector<1x96xf32> to vector<2x96xf32>
    %197 = arith.addf %195, %196 : vector<2x96xf32>
    %198 = vector.extract_strided_slice %194 {offsets = [0, 0], sizes = [2, 32], strides = [1, 1]} : vector<2x96xf32> to vector<2x32xf32>
    %199 = vector.extract_strided_slice %197 {offsets = [0, 0], sizes = [2, 32], strides = [1, 1]} : vector<2x96xf32> to vector<2x32xf32>
    %200 = arith.addf %198, %199 : vector<2x32xf32>
    %cst_62 = arith.constant 0.000000e+00 : f32
    %201 = vector.broadcast %cst_62 : f32 to vector<2x32xf32>
    %202 = arith.subf %201, %200 : vector<2x32xf32>
    %203 = math.exp %202 : vector<2x32xf32>
    %cst_63 = arith.constant 1.000000e+00 : f32
    %204 = vector.broadcast %cst_63 : f32 to vector<2x32xf32>
    %205 = arith.addf %204, %203 : vector<2x32xf32>
    %cst_64 = arith.constant 1.000000e+00 : f32
    %206 = vector.broadcast %cst_64 : f32 to vector<2x32xf32>
    %207 = arith.divf %206, %205 : vector<2x32xf32>
    %208 = vector.extract_strided_slice %194 {offsets = [0, 32], sizes = [2, 32], strides = [1, 1]} : vector<2x96xf32> to vector<2x32xf32>
    %209 = vector.extract_strided_slice %197 {offsets = [0, 32], sizes = [2, 32], strides = [1, 1]} : vector<2x96xf32> to vector<2x32xf32>
    %210 = arith.addf %208, %209 : vector<2x32xf32>
    %cst_65 = arith.constant 0.000000e+00 : f32
    %211 = vector.broadcast %cst_65 : f32 to vector<2x32xf32>
    %212 = arith.subf %211, %210 : vector<2x32xf32>
    %213 = math.exp %212 : vector<2x32xf32>
    %cst_66 = arith.constant 1.000000e+00 : f32
    %214 = vector.broadcast %cst_66 : f32 to vector<2x32xf32>
    %215 = arith.addf %214, %213 : vector<2x32xf32>
    %cst_67 = arith.constant 1.000000e+00 : f32
    %216 = vector.broadcast %cst_67 : f32 to vector<2x32xf32>
    %217 = arith.divf %216, %215 : vector<2x32xf32>
    %218 = vector.extract_strided_slice %194 {offsets = [0, 64], sizes = [2, 32], strides = [1, 1]} : vector<2x96xf32> to vector<2x32xf32>
    %219 = vector.extract_strided_slice %197 {offsets = [0, 64], sizes = [2, 32], strides = [1, 1]} : vector<2x96xf32> to vector<2x32xf32>
    %220 = arith.mulf %207, %219 : vector<2x32xf32>
    %221 = arith.addf %218, %220 : vector<2x32xf32>
    %222 = math.tanh %221 : vector<2x32xf32>
    %cst_68 = arith.constant 1.000000e+00 : f32
    %223 = vector.broadcast %cst_68 : f32 to vector<2x32xf32>
    %224 = arith.subf %223, %217 : vector<2x32xf32>
    %225 = arith.mulf %224, %222 : vector<2x32xf32>
    %226 = arith.mulf %217, %190 : vector<2x32xf32>
    %227 = arith.addf %225, %226 : vector<2x32xf32>
    %cst_69 = arith.constant 0.000000e+00 : f32
    %228 = vector.broadcast %cst_69 : f32 to vector<2x32xf32>
    %229 = arith.maximumf %227, %228 : vector<2x32xf32>
    %c10 = arith.constant 10 : index
    %c0_70 = arith.constant 0 : index
    %230 = vector.load %arg15[%c10, %c0_70] : memref<16x32xf32, #tpu.memory_space<vmem>>, vector<2x32xf32>
    tpu.vector_store %arg15[%c10, %c0_70], %229 {strides = array<i32>} : memref<16x32xf32, #tpu.memory_space<vmem>>, vector<2x32xf32>,
    %231 = vector.extract_strided_slice %7 {offsets = [12, 0], sizes = [2, 96], strides = [1, 1]} : vector<16x96xf32> to vector<2x96xf32>
    %cst_71 = arith.constant dense<0.000000e+00> : vector<2x96xf32>
    %232 = tpu.matmul %227, %1, %cst_71 {dimension_numbers = #tpu.dot_dimension_numbers<[1], [0], [0], [1], [0, 0, 1, 1], [], []>} : vector<2x32xf32>, vector<32x96xf32>, vector<2x96xf32> -> vector<2x96xf32>
    %233 = vector.broadcast %3 : vector<1x96xf32> to vector<2x96xf32>
    %234 = arith.addf %232, %233 : vector<2x96xf32>
    %235 = vector.extract_strided_slice %231 {offsets = [0, 0], sizes = [2, 32], strides = [1, 1]} : vector<2x96xf32> to vector<2x32xf32>
    %236 = vector.extract_strided_slice %234 {offsets = [0, 0], sizes = [2, 32], strides = [1, 1]} : vector<2x96xf32> to vector<2x32xf32>
    %237 = arith.addf %235, %236 : vector<2x32xf32>
    %cst_72 = arith.constant 0.000000e+00 : f32
    %238 = vector.broadcast %cst_72 : f32 to vector<2x32xf32>
    %239 = arith.subf %238, %237 : vector<2x32xf32>
    %240 = math.exp %239 : vector<2x32xf32>
    %cst_73 = arith.constant 1.000000e+00 : f32
    %241 = vector.broadcast %cst_73 : f32 to vector<2x32xf32>
    %242 = arith.addf %241, %240 : vector<2x32xf32>
    %cst_74 = arith.constant 1.000000e+00 : f32
    %243 = vector.broadcast %cst_74 : f32 to vector<2x32xf32>
    %244 = arith.divf %243, %242 : vector<2x32xf32>
    %245 = vector.extract_strided_slice %231 {offsets = [0, 32], sizes = [2, 32], strides = [1, 1]} : vector<2x96xf32> to vector<2x32xf32>
    %246 = vector.extract_strided_slice %234 {offsets = [0, 32], sizes = [2, 32], strides = [1, 1]} : vector<2x96xf32> to vector<2x32xf32>
    %247 = arith.addf %245, %246 : vector<2x32xf32>
    %cst_75 = arith.constant 0.000000e+00 : f32
    %248 = vector.broadcast %cst_75 : f32 to vector<2x32xf32>
    %249 = arith.subf %248, %247 : vector<2x32xf32>
    %250 = math.exp %249 : vector<2x32xf32>
    %cst_76 = arith.constant 1.000000e+00 : f32
    %251 = vector.broadcast %cst_76 : f32 to vector<2x32xf32>
    %252 = arith.addf %251, %250 : vector<2x32xf32>
    %cst_77 = arith.constant 1.000000e+00 : f32
    %253 = vector.broadcast %cst_77 : f32 to vector<2x32xf32>
    %254 = arith.divf %253, %252 : vector<2x32xf32>
    %255 = vector.extract_strided_slice %231 {offsets = [0, 64], sizes = [2, 32], strides = [1, 1]} : vector<2x96xf32> to vector<2x32xf32>
    %256 = vector.extract_strided_slice %234 {offsets = [0, 64], sizes = [2, 32], strides = [1, 1]} : vector<2x96xf32> to vector<2x32xf32>
    %257 = arith.mulf %244, %256 : vector<2x32xf32>
    %258 = arith.addf %255, %257 : vector<2x32xf32>
    %259 = math.tanh %258 : vector<2x32xf32>
    %cst_78 = arith.constant 1.000000e+00 : f32
    %260 = vector.broadcast %cst_78 : f32 to vector<2x32xf32>
    %261 = arith.subf %260, %254 : vector<2x32xf32>
    %262 = arith.mulf %261, %259 : vector<2x32xf32>
    %263 = arith.mulf %254, %227 : vector<2x32xf32>
    %264 = arith.addf %262, %263 : vector<2x32xf32>
    %cst_79 = arith.constant 0.000000e+00 : f32
    %265 = vector.broadcast %cst_79 : f32 to vector<2x32xf32>
    %266 = arith.maximumf %264, %265 : vector<2x32xf32>
    %c12 = arith.constant 12 : index
    %c0_80 = arith.constant 0 : index
    %267 = vector.load %arg15[%c12, %c0_80] : memref<16x32xf32, #tpu.memory_space<vmem>>, vector<2x32xf32>
    tpu.vector_store %arg15[%c12, %c0_80], %266 {strides = array<i32>} : memref<16x32xf32, #tpu.memory_space<vmem>>, vector<2x32xf32>,
    %268 = vector.extract_strided_slice %7 {offsets = [14, 0], sizes = [2, 96], strides = [1, 1]} : vector<16x96xf32> to vector<2x96xf32>
    %cst_81 = arith.constant dense<0.000000e+00> : vector<2x96xf32>
    %269 = tpu.matmul %264, %1, %cst_81 {dimension_numbers = #tpu.dot_dimension_numbers<[1], [0], [0], [1], [0, 0, 1, 1], [], []>} : vector<2x32xf32>, vector<32x96xf32>, vector<2x96xf32> -> vector<2x96xf32>
    %270 = vector.broadcast %3 : vector<1x96xf32> to vector<2x96xf32>
    %271 = arith.addf %269, %270 : vector<2x96xf32>
    %272 = vector.extract_strided_slice %268 {offsets = [0, 0], sizes = [2, 32], strides = [1, 1]} : vector<2x96xf32> to vector<2x32xf32>
    %273 = vector.extract_strided_slice %271 {offsets = [0, 0], sizes = [2, 32], strides = [1, 1]} : vector<2x96xf32> to vector<2x32xf32>
    %274 = arith.addf %272, %273 : vector<2x32xf32>
    %cst_82 = arith.constant 0.000000e+00 : f32
    %275 = vector.broadcast %cst_82 : f32 to vector<2x32xf32>
    %276 = arith.subf %275, %274 : vector<2x32xf32>
    %277 = math.exp %276 : vector<2x32xf32>
    %cst_83 = arith.constant 1.000000e+00 : f32
    %278 = vector.broadcast %cst_83 : f32 to vector<2x32xf32>
    %279 = arith.addf %278, %277 : vector<2x32xf32>
    %cst_84 = arith.constant 1.000000e+00 : f32
    %280 = vector.broadcast %cst_84 : f32 to vector<2x32xf32>
    %281 = arith.divf %280, %279 : vector<2x32xf32>
    %282 = vector.extract_strided_slice %268 {offsets = [0, 32], sizes = [2, 32], strides = [1, 1]} : vector<2x96xf32> to vector<2x32xf32>
    %283 = vector.extract_strided_slice %271 {offsets = [0, 32], sizes = [2, 32], strides = [1, 1]} : vector<2x96xf32> to vector<2x32xf32>
    %284 = arith.addf %282, %283 : vector<2x32xf32>
    %cst_85 = arith.constant 0.000000e+00 : f32
    %285 = vector.broadcast %cst_85 : f32 to vector<2x32xf32>
    %286 = arith.subf %285, %284 : vector<2x32xf32>
    %287 = math.exp %286 : vector<2x32xf32>
    %cst_86 = arith.constant 1.000000e+00 : f32
    %288 = vector.broadcast %cst_86 : f32 to vector<2x32xf32>
    %289 = arith.addf %288, %287 : vector<2x32xf32>
    %cst_87 = arith.constant 1.000000e+00 : f32
    %290 = vector.broadcast %cst_87 : f32 to vector<2x32xf32>
    %291 = arith.divf %290, %289 : vector<2x32xf32>
    %292 = vector.extract_strided_slice %268 {offsets = [0, 64], sizes = [2, 32], strides = [1, 1]} : vector<2x96xf32> to vector<2x32xf32>
    %293 = vector.extract_strided_slice %271 {offsets = [0, 64], sizes = [2, 32], strides = [1, 1]} : vector<2x96xf32> to vector<2x32xf32>
    %294 = arith.mulf %281, %293 : vector<2x32xf32>
    %295 = arith.addf %292, %294 : vector<2x32xf32>
    %296 = math.tanh %295 : vector<2x32xf32>
    %cst_88 = arith.constant 1.000000e+00 : f32
    %297 = vector.broadcast %cst_88 : f32 to vector<2x32xf32>
    %298 = arith.subf %297, %291 : vector<2x32xf32>
    %299 = arith.mulf %298, %296 : vector<2x32xf32>
    %300 = arith.mulf %291, %264 : vector<2x32xf32>
    %301 = arith.addf %299, %300 : vector<2x32xf32>
    %cst_89 = arith.constant 0.000000e+00 : f32
    %302 = vector.broadcast %cst_89 : f32 to vector<2x32xf32>
    %303 = arith.maximumf %301, %302 : vector<2x32xf32>
    %c14 = arith.constant 14 : index
    %c0_90 = arith.constant 0 : index
    %304 = vector.load %arg15[%c14, %c0_90] : memref<16x32xf32, #tpu.memory_space<vmem>>, vector<2x32xf32>
    tpu.vector_store %arg15[%c14, %c0_90], %303 {strides = array<i32>} : memref<16x32xf32, #tpu.memory_space<vmem>>, vector<2x32xf32>,
    %c0_91 = arith.constant 0 : index
    %c0_92 = arith.constant 0 : index
    %305 = vector.load %arg6[%c0_91, %c0_92] : memref<32x96xf32, #tpu.memory_space<vmem>>, vector<32x96xf32>
    %c0_93 = arith.constant 0 : index
    %c0_94 = arith.constant 0 : index
    %306 = vector.load %arg7[%c0_93, %c0_94] : memref<32x96xf32, #tpu.memory_space<vmem>>, vector<32x96xf32>
    %c0_95 = arith.constant 0 : index
    %c0_96 = arith.constant 0 : index
    %307 = vector.load %arg8[%c0_95, %c0_96] : memref<1x96xf32, #tpu.memory_space<vmem>>, vector<1x96xf32>
    %c0_97 = arith.constant 0 : index
    %c0_98 = arith.constant 0 : index
    %308 = vector.load %arg9[%c0_97, %c0_98] : memref<1x96xf32, #tpu.memory_space<vmem>>, vector<1x96xf32>
    %c0_99 = arith.constant 0 : index
    %c0_100 = arith.constant 0 : index
    %309 = vector.load %arg15[%c0_99, %c0_100] : memref<16x32xf32, #tpu.memory_space<vmem>>, vector<16x32xf32>
    %cst_101 = arith.constant dense<0.000000e+00> : vector<16x96xf32>
    %310 = tpu.matmul %309, %305, %cst_101 {dimension_numbers = #tpu.dot_dimension_numbers<[1], [0], [0], [1], [0, 0, 1, 1], [], []>} : vector<16x32xf32>, vector<32x96xf32>, vector<16x96xf32> -> vector<16x96xf32>
    %311 = vector.broadcast %307 : vector<1x96xf32> to vector<16x96xf32>
    %312 = arith.addf %310, %311 : vector<16x96xf32>
    %cst_102 = arith.constant 0.000000e+00 : f32
    %313 = vector.broadcast %cst_102 : f32 to vector<2x32xf32>
    %314 = vector.extract_strided_slice %312 {offsets = [0, 0], sizes = [2, 96], strides = [1, 1]} : vector<16x96xf32> to vector<2x96xf32>
    %cst_103 = arith.constant dense<0.000000e+00> : vector<2x96xf32>
    %315 = tpu.matmul %313, %306, %cst_103 {dimension_numbers = #tpu.dot_dimension_numbers<[1], [0], [0], [1], [0, 0, 1, 1], [], []>} : vector<2x32xf32>, vector<32x96xf32>, vector<2x96xf32> -> vector<2x96xf32>
    %316 = vector.broadcast %308 : vector<1x96xf32> to vector<2x96xf32>
    %317 = arith.addf %315, %316 : vector<2x96xf32>
    %318 = vector.extract_strided_slice %314 {offsets = [0, 0], sizes = [2, 32], strides = [1, 1]} : vector<2x96xf32> to vector<2x32xf32>
    %319 = vector.extract_strided_slice %317 {offsets = [0, 0], sizes = [2, 32], strides = [1, 1]} : vector<2x96xf32> to vector<2x32xf32>
    %320 = arith.addf %318, %319 : vector<2x32xf32>
    %cst_104 = arith.constant 0.000000e+00 : f32
    %321 = vector.broadcast %cst_104 : f32 to vector<2x32xf32>
    %322 = arith.subf %321, %320 : vector<2x32xf32>
    %323 = math.exp %322 : vector<2x32xf32>
    %cst_105 = arith.constant 1.000000e+00 : f32
    %324 = vector.broadcast %cst_105 : f32 to vector<2x32xf32>
    %325 = arith.addf %324, %323 : vector<2x32xf32>
    %cst_106 = arith.constant 1.000000e+00 : f32
    %326 = vector.broadcast %cst_106 : f32 to vector<2x32xf32>
    %327 = arith.divf %326, %325 : vector<2x32xf32>
    %328 = vector.extract_strided_slice %314 {offsets = [0, 32], sizes = [2, 32], strides = [1, 1]} : vector<2x96xf32> to vector<2x32xf32>
    %329 = vector.extract_strided_slice %317 {offsets = [0, 32], sizes = [2, 32], strides = [1, 1]} : vector<2x96xf32> to vector<2x32xf32>
    %330 = arith.addf %328, %329 : vector<2x32xf32>
    %cst_107 = arith.constant 0.000000e+00 : f32
    %331 = vector.broadcast %cst_107 : f32 to vector<2x32xf32>
    %332 = arith.subf %331, %330 : vector<2x32xf32>
    %333 = math.exp %332 : vector<2x32xf32>
    %cst_108 = arith.constant 1.000000e+00 : f32
    %334 = vector.broadcast %cst_108 : f32 to vector<2x32xf32>
    %335 = arith.addf %334, %333 : vector<2x32xf32>
    %cst_109 = arith.constant 1.000000e+00 : f32
    %336 = vector.broadcast %cst_109 : f32 to vector<2x32xf32>
    %337 = arith.divf %336, %335 : vector<2x32xf32>
    %338 = vector.extract_strided_slice %314 {offsets = [0, 64], sizes = [2, 32], strides = [1, 1]} : vector<2x96xf32> to vector<2x32xf32>
    %339 = vector.extract_strided_slice %317 {offsets = [0, 64], sizes = [2, 32], strides = [1, 1]} : vector<2x96xf32> to vector<2x32xf32>
    %340 = arith.mulf %327, %339 : vector<2x32xf32>
    %341 = arith.addf %338, %340 : vector<2x32xf32>
    %342 = math.tanh %341 : vector<2x32xf32>
    %cst_110 = arith.constant 1.000000e+00 : f32
    %343 = vector.broadcast %cst_110 : f32 to vector<2x32xf32>
    %344 = arith.subf %343, %337 : vector<2x32xf32>
    %345 = arith.mulf %344, %342 : vector<2x32xf32>
    %346 = arith.mulf %337, %313 : vector<2x32xf32>
    %347 = arith.addf %345, %346 : vector<2x32xf32>
    %348 = vector.extract_strided_slice %312 {offsets = [2, 0], sizes = [2, 96], strides = [1, 1]} : vector<16x96xf32> to vector<2x96xf32>
    %cst_111 = arith.constant dense<0.000000e+00> : vector<2x96xf32>
    %349 = tpu.matmul %347, %306, %cst_111 {dimension_numbers = #tpu.dot_dimension_numbers<[1], [0], [0], [1], [0, 0, 1, 1], [], []>} : vector<2x32xf32>, vector<32x96xf32>, vector<2x96xf32> -> vector<2x96xf32>
    %350 = vector.broadcast %308 : vector<1x96xf32> to vector<2x96xf32>
    %351 = arith.addf %349, %350 : vector<2x96xf32>
    %352 = vector.extract_strided_slice %348 {offsets = [0, 0], sizes = [2, 32], strides = [1, 1]} : vector<2x96xf32> to vector<2x32xf32>
    %353 = vector.extract_strided_slice %351 {offsets = [0, 0], sizes = [2, 32], strides = [1, 1]} : vector<2x96xf32> to vector<2x32xf32>
    %354 = arith.addf %352, %353 : vector<2x32xf32>
    %cst_112 = arith.constant 0.000000e+00 : f32
    %355 = vector.broadcast %cst_112 : f32 to vector<2x32xf32>
    %356 = arith.subf %355, %354 : vector<2x32xf32>
    %357 = math.exp %356 : vector<2x32xf32>
    %cst_113 = arith.constant 1.000000e+00 : f32
    %358 = vector.broadcast %cst_113 : f32 to vector<2x32xf32>
    %359 = arith.addf %358, %357 : vector<2x32xf32>
    %cst_114 = arith.constant 1.000000e+00 : f32
    %360 = vector.broadcast %cst_114 : f32 to vector<2x32xf32>
    %361 = arith.divf %360, %359 : vector<2x32xf32>
    %362 = vector.extract_strided_slice %348 {offsets = [0, 32], sizes = [2, 32], strides = [1, 1]} : vector<2x96xf32> to vector<2x32xf32>
    %363 = vector.extract_strided_slice %351 {offsets = [0, 32], sizes = [2, 32], strides = [1, 1]} : vector<2x96xf32> to vector<2x32xf32>
    %364 = arith.addf %362, %363 : vector<2x32xf32>
    %cst_115 = arith.constant 0.000000e+00 : f32
    %365 = vector.broadcast %cst_115 : f32 to vector<2x32xf32>
    %366 = arith.subf %365, %364 : vector<2x32xf32>
    %367 = math.exp %366 : vector<2x32xf32>
    %cst_116 = arith.constant 1.000000e+00 : f32
    %368 = vector.broadcast %cst_116 : f32 to vector<2x32xf32>
    %369 = arith.addf %368, %367 : vector<2x32xf32>
    %cst_117 = arith.constant 1.000000e+00 : f32
    %370 = vector.broadcast %cst_117 : f32 to vector<2x32xf32>
    %371 = arith.divf %370, %369 : vector<2x32xf32>
    %372 = vector.extract_strided_slice %348 {offsets = [0, 64], sizes = [2, 32], strides = [1, 1]} : vector<2x96xf32> to vector<2x32xf32>
    %373 = vector.extract_strided_slice %351 {offsets = [0, 64], sizes = [2, 32], strides = [1, 1]} : vector<2x96xf32> to vector<2x32xf32>
    %374 = arith.mulf %361, %373 : vector<2x32xf32>
    %375 = arith.addf %372, %374 : vector<2x32xf32>
    %376 = math.tanh %375 : vector<2x32xf32>
    %cst_118 = arith.constant 1.000000e+00 : f32
    %377 = vector.broadcast %cst_118 : f32 to vector<2x32xf32>
    %378 = arith.subf %377, %371 : vector<2x32xf32>
    %379 = arith.mulf %378, %376 : vector<2x32xf32>
    %380 = arith.mulf %371, %347 : vector<2x32xf32>
    %381 = arith.addf %379, %380 : vector<2x32xf32>
    %382 = vector.extract_strided_slice %312 {offsets = [4, 0], sizes = [2, 96], strides = [1, 1]} : vector<16x96xf32> to vector<2x96xf32>
    %cst_119 = arith.constant dense<0.000000e+00> : vector<2x96xf32>
    %383 = tpu.matmul %381, %306, %cst_119 {dimension_numbers = #tpu.dot_dimension_numbers<[1], [0], [0], [1], [0, 0, 1, 1], [], []>} : vector<2x32xf32>, vector<32x96xf32>, vector<2x96xf32> -> vector<2x96xf32>
    %384 = vector.broadcast %308 : vector<1x96xf32> to vector<2x96xf32>
    %385 = arith.addf %383, %384 : vector<2x96xf32>
    %386 = vector.extract_strided_slice %382 {offsets = [0, 0], sizes = [2, 32], strides = [1, 1]} : vector<2x96xf32> to vector<2x32xf32>
    %387 = vector.extract_strided_slice %385 {offsets = [0, 0], sizes = [2, 32], strides = [1, 1]} : vector<2x96xf32> to vector<2x32xf32>
    %388 = arith.addf %386, %387 : vector<2x32xf32>
    %cst_120 = arith.constant 0.000000e+00 : f32
    %389 = vector.broadcast %cst_120 : f32 to vector<2x32xf32>
    %390 = arith.subf %389, %388 : vector<2x32xf32>
    %391 = math.exp %390 : vector<2x32xf32>
    %cst_121 = arith.constant 1.000000e+00 : f32
    %392 = vector.broadcast %cst_121 : f32 to vector<2x32xf32>
    %393 = arith.addf %392, %391 : vector<2x32xf32>
    %cst_122 = arith.constant 1.000000e+00 : f32
    %394 = vector.broadcast %cst_122 : f32 to vector<2x32xf32>
    %395 = arith.divf %394, %393 : vector<2x32xf32>
    %396 = vector.extract_strided_slice %382 {offsets = [0, 32], sizes = [2, 32], strides = [1, 1]} : vector<2x96xf32> to vector<2x32xf32>
    %397 = vector.extract_strided_slice %385 {offsets = [0, 32], sizes = [2, 32], strides = [1, 1]} : vector<2x96xf32> to vector<2x32xf32>
    %398 = arith.addf %396, %397 : vector<2x32xf32>
    %cst_123 = arith.constant 0.000000e+00 : f32
    %399 = vector.broadcast %cst_123 : f32 to vector<2x32xf32>
    %400 = arith.subf %399, %398 : vector<2x32xf32>
    %401 = math.exp %400 : vector<2x32xf32>
    %cst_124 = arith.constant 1.000000e+00 : f32
    %402 = vector.broadcast %cst_124 : f32 to vector<2x32xf32>
    %403 = arith.addf %402, %401 : vector<2x32xf32>
    %cst_125 = arith.constant 1.000000e+00 : f32
    %404 = vector.broadcast %cst_125 : f32 to vector<2x32xf32>
    %405 = arith.divf %404, %403 : vector<2x32xf32>
    %406 = vector.extract_strided_slice %382 {offsets = [0, 64], sizes = [2, 32], strides = [1, 1]} : vector<2x96xf32> to vector<2x32xf32>
    %407 = vector.extract_strided_slice %385 {offsets = [0, 64], sizes = [2, 32], strides = [1, 1]} : vector<2x96xf32> to vector<2x32xf32>
    %408 = arith.mulf %395, %407 : vector<2x32xf32>
    %409 = arith.addf %406, %408 : vector<2x32xf32>
    %410 = math.tanh %409 : vector<2x32xf32>
    %cst_126 = arith.constant 1.000000e+00 : f32
    %411 = vector.broadcast %cst_126 : f32 to vector<2x32xf32>
    %412 = arith.subf %411, %405 : vector<2x32xf32>
    %413 = arith.mulf %412, %410 : vector<2x32xf32>
    %414 = arith.mulf %405, %381 : vector<2x32xf32>
    %415 = arith.addf %413, %414 : vector<2x32xf32>
    %416 = vector.extract_strided_slice %312 {offsets = [6, 0], sizes = [2, 96], strides = [1, 1]} : vector<16x96xf32> to vector<2x96xf32>
    %cst_127 = arith.constant dense<0.000000e+00> : vector<2x96xf32>
    %417 = tpu.matmul %415, %306, %cst_127 {dimension_numbers = #tpu.dot_dimension_numbers<[1], [0], [0], [1], [0, 0, 1, 1], [], []>} : vector<2x32xf32>, vector<32x96xf32>, vector<2x96xf32> -> vector<2x96xf32>
    %418 = vector.broadcast %308 : vector<1x96xf32> to vector<2x96xf32>
    %419 = arith.addf %417, %418 : vector<2x96xf32>
    %420 = vector.extract_strided_slice %416 {offsets = [0, 0], sizes = [2, 32], strides = [1, 1]} : vector<2x96xf32> to vector<2x32xf32>
    %421 = vector.extract_strided_slice %419 {offsets = [0, 0], sizes = [2, 32], strides = [1, 1]} : vector<2x96xf32> to vector<2x32xf32>
    %422 = arith.addf %420, %421 : vector<2x32xf32>
    %cst_128 = arith.constant 0.000000e+00 : f32
    %423 = vector.broadcast %cst_128 : f32 to vector<2x32xf32>
    %424 = arith.subf %423, %422 : vector<2x32xf32>
    %425 = math.exp %424 : vector<2x32xf32>
    %cst_129 = arith.constant 1.000000e+00 : f32
    %426 = vector.broadcast %cst_129 : f32 to vector<2x32xf32>
    %427 = arith.addf %426, %425 : vector<2x32xf32>
    %cst_130 = arith.constant 1.000000e+00 : f32
    %428 = vector.broadcast %cst_130 : f32 to vector<2x32xf32>
    %429 = arith.divf %428, %427 : vector<2x32xf32>
    %430 = vector.extract_strided_slice %416 {offsets = [0, 32], sizes = [2, 32], strides = [1, 1]} : vector<2x96xf32> to vector<2x32xf32>
    %431 = vector.extract_strided_slice %419 {offsets = [0, 32], sizes = [2, 32], strides = [1, 1]} : vector<2x96xf32> to vector<2x32xf32>
    %432 = arith.addf %430, %431 : vector<2x32xf32>
    %cst_131 = arith.constant 0.000000e+00 : f32
    %433 = vector.broadcast %cst_131 : f32 to vector<2x32xf32>
    %434 = arith.subf %433, %432 : vector<2x32xf32>
    %435 = math.exp %434 : vector<2x32xf32>
    %cst_132 = arith.constant 1.000000e+00 : f32
    %436 = vector.broadcast %cst_132 : f32 to vector<2x32xf32>
    %437 = arith.addf %436, %435 : vector<2x32xf32>
    %cst_133 = arith.constant 1.000000e+00 : f32
    %438 = vector.broadcast %cst_133 : f32 to vector<2x32xf32>
    %439 = arith.divf %438, %437 : vector<2x32xf32>
    %440 = vector.extract_strided_slice %416 {offsets = [0, 64], sizes = [2, 32], strides = [1, 1]} : vector<2x96xf32> to vector<2x32xf32>
    %441 = vector.extract_strided_slice %419 {offsets = [0, 64], sizes = [2, 32], strides = [1, 1]} : vector<2x96xf32> to vector<2x32xf32>
    %442 = arith.mulf %429, %441 : vector<2x32xf32>
    %443 = arith.addf %440, %442 : vector<2x32xf32>
    %444 = math.tanh %443 : vector<2x32xf32>
    %cst_134 = arith.constant 1.000000e+00 : f32
    %445 = vector.broadcast %cst_134 : f32 to vector<2x32xf32>
    %446 = arith.subf %445, %439 : vector<2x32xf32>
    %447 = arith.mulf %446, %444 : vector<2x32xf32>
    %448 = arith.mulf %439, %415 : vector<2x32xf32>
    %449 = arith.addf %447, %448 : vector<2x32xf32>
    %450 = vector.extract_strided_slice %312 {offsets = [8, 0], sizes = [2, 96], strides = [1, 1]} : vector<16x96xf32> to vector<2x96xf32>
    %cst_135 = arith.constant dense<0.000000e+00> : vector<2x96xf32>
    %451 = tpu.matmul %449, %306, %cst_135 {dimension_numbers = #tpu.dot_dimension_numbers<[1], [0], [0], [1], [0, 0, 1, 1], [], []>} : vector<2x32xf32>, vector<32x96xf32>, vector<2x96xf32> -> vector<2x96xf32>
    %452 = vector.broadcast %308 : vector<1x96xf32> to vector<2x96xf32>
    %453 = arith.addf %451, %452 : vector<2x96xf32>
    %454 = vector.extract_strided_slice %450 {offsets = [0, 0], sizes = [2, 32], strides = [1, 1]} : vector<2x96xf32> to vector<2x32xf32>
    %455 = vector.extract_strided_slice %453 {offsets = [0, 0], sizes = [2, 32], strides = [1, 1]} : vector<2x96xf32> to vector<2x32xf32>
    %456 = arith.addf %454, %455 : vector<2x32xf32>
    %cst_136 = arith.constant 0.000000e+00 : f32
    %457 = vector.broadcast %cst_136 : f32 to vector<2x32xf32>
    %458 = arith.subf %457, %456 : vector<2x32xf32>
    %459 = math.exp %458 : vector<2x32xf32>
    %cst_137 = arith.constant 1.000000e+00 : f32
    %460 = vector.broadcast %cst_137 : f32 to vector<2x32xf32>
    %461 = arith.addf %460, %459 : vector<2x32xf32>
    %cst_138 = arith.constant 1.000000e+00 : f32
    %462 = vector.broadcast %cst_138 : f32 to vector<2x32xf32>
    %463 = arith.divf %462, %461 : vector<2x32xf32>
    %464 = vector.extract_strided_slice %450 {offsets = [0, 32], sizes = [2, 32], strides = [1, 1]} : vector<2x96xf32> to vector<2x32xf32>
    %465 = vector.extract_strided_slice %453 {offsets = [0, 32], sizes = [2, 32], strides = [1, 1]} : vector<2x96xf32> to vector<2x32xf32>
    %466 = arith.addf %464, %465 : vector<2x32xf32>
    %cst_139 = arith.constant 0.000000e+00 : f32
    %467 = vector.broadcast %cst_139 : f32 to vector<2x32xf32>
    %468 = arith.subf %467, %466 : vector<2x32xf32>
    %469 = math.exp %468 : vector<2x32xf32>
    %cst_140 = arith.constant 1.000000e+00 : f32
    %470 = vector.broadcast %cst_140 : f32 to vector<2x32xf32>
    %471 = arith.addf %470, %469 : vector<2x32xf32>
    %cst_141 = arith.constant 1.000000e+00 : f32
    %472 = vector.broadcast %cst_141 : f32 to vector<2x32xf32>
    %473 = arith.divf %472, %471 : vector<2x32xf32>
    %474 = vector.extract_strided_slice %450 {offsets = [0, 64], sizes = [2, 32], strides = [1, 1]} : vector<2x96xf32> to vector<2x32xf32>
    %475 = vector.extract_strided_slice %453 {offsets = [0, 64], sizes = [2, 32], strides = [1, 1]} : vector<2x96xf32> to vector<2x32xf32>
    %476 = arith.mulf %463, %475 : vector<2x32xf32>
    %477 = arith.addf %474, %476 : vector<2x32xf32>
    %478 = math.tanh %477 : vector<2x32xf32>
    %cst_142 = arith.constant 1.000000e+00 : f32
    %479 = vector.broadcast %cst_142 : f32 to vector<2x32xf32>
    %480 = arith.subf %479, %473 : vector<2x32xf32>
    %481 = arith.mulf %480, %478 : vector<2x32xf32>
    %482 = arith.mulf %473, %449 : vector<2x32xf32>
    %483 = arith.addf %481, %482 : vector<2x32xf32>
    %484 = vector.extract_strided_slice %312 {offsets = [10, 0], sizes = [2, 96], strides = [1, 1]} : vector<16x96xf32> to vector<2x96xf32>
    %cst_143 = arith.constant dense<0.000000e+00> : vector<2x96xf32>
    %485 = tpu.matmul %483, %306, %cst_143 {dimension_numbers = #tpu.dot_dimension_numbers<[1], [0], [0], [1], [0, 0, 1, 1], [], []>} : vector<2x32xf32>, vector<32x96xf32>, vector<2x96xf32> -> vector<2x96xf32>
    %486 = vector.broadcast %308 : vector<1x96xf32> to vector<2x96xf32>
    %487 = arith.addf %485, %486 : vector<2x96xf32>
    %488 = vector.extract_strided_slice %484 {offsets = [0, 0], sizes = [2, 32], strides = [1, 1]} : vector<2x96xf32> to vector<2x32xf32>
    %489 = vector.extract_strided_slice %487 {offsets = [0, 0], sizes = [2, 32], strides = [1, 1]} : vector<2x96xf32> to vector<2x32xf32>
    %490 = arith.addf %488, %489 : vector<2x32xf32>
    %cst_144 = arith.constant 0.000000e+00 : f32
    %491 = vector.broadcast %cst_144 : f32 to vector<2x32xf32>
    %492 = arith.subf %491, %490 : vector<2x32xf32>
    %493 = math.exp %492 : vector<2x32xf32>
    %cst_145 = arith.constant 1.000000e+00 : f32
    %494 = vector.broadcast %cst_145 : f32 to vector<2x32xf32>
    %495 = arith.addf %494, %493 : vector<2x32xf32>
    %cst_146 = arith.constant 1.000000e+00 : f32
    %496 = vector.broadcast %cst_146 : f32 to vector<2x32xf32>
    %497 = arith.divf %496, %495 : vector<2x32xf32>
    %498 = vector.extract_strided_slice %484 {offsets = [0, 32], sizes = [2, 32], strides = [1, 1]} : vector<2x96xf32> to vector<2x32xf32>
    %499 = vector.extract_strided_slice %487 {offsets = [0, 32], sizes = [2, 32], strides = [1, 1]} : vector<2x96xf32> to vector<2x32xf32>
    %500 = arith.addf %498, %499 : vector<2x32xf32>
    %cst_147 = arith.constant 0.000000e+00 : f32
    %501 = vector.broadcast %cst_147 : f32 to vector<2x32xf32>
    %502 = arith.subf %501, %500 : vector<2x32xf32>
    %503 = math.exp %502 : vector<2x32xf32>
    %cst_148 = arith.constant 1.000000e+00 : f32
    %504 = vector.broadcast %cst_148 : f32 to vector<2x32xf32>
    %505 = arith.addf %504, %503 : vector<2x32xf32>
    %cst_149 = arith.constant 1.000000e+00 : f32
    %506 = vector.broadcast %cst_149 : f32 to vector<2x32xf32>
    %507 = arith.divf %506, %505 : vector<2x32xf32>
    %508 = vector.extract_strided_slice %484 {offsets = [0, 64], sizes = [2, 32], strides = [1, 1]} : vector<2x96xf32> to vector<2x32xf32>
    %509 = vector.extract_strided_slice %487 {offsets = [0, 64], sizes = [2, 32], strides = [1, 1]} : vector<2x96xf32> to vector<2x32xf32>
    %510 = arith.mulf %497, %509 : vector<2x32xf32>
    %511 = arith.addf %508, %510 : vector<2x32xf32>
    %512 = math.tanh %511 : vector<2x32xf32>
    %cst_150 = arith.constant 1.000000e+00 : f32
    %513 = vector.broadcast %cst_150 : f32 to vector<2x32xf32>
    %514 = arith.subf %513, %507 : vector<2x32xf32>
    %515 = arith.mulf %514, %512 : vector<2x32xf32>
    %516 = arith.mulf %507, %483 : vector<2x32xf32>
    %517 = arith.addf %515, %516 : vector<2x32xf32>
    %518 = vector.extract_strided_slice %312 {offsets = [12, 0], sizes = [2, 96], strides = [1, 1]} : vector<16x96xf32> to vector<2x96xf32>
    %cst_151 = arith.constant dense<0.000000e+00> : vector<2x96xf32>
    %519 = tpu.matmul %517, %306, %cst_151 {dimension_numbers = #tpu.dot_dimension_numbers<[1], [0], [0], [1], [0, 0, 1, 1], [], []>} : vector<2x32xf32>, vector<32x96xf32>, vector<2x96xf32> -> vector<2x96xf32>
    %520 = vector.broadcast %308 : vector<1x96xf32> to vector<2x96xf32>
    %521 = arith.addf %519, %520 : vector<2x96xf32>
    %522 = vector.extract_strided_slice %518 {offsets = [0, 0], sizes = [2, 32], strides = [1, 1]} : vector<2x96xf32> to vector<2x32xf32>
    %523 = vector.extract_strided_slice %521 {offsets = [0, 0], sizes = [2, 32], strides = [1, 1]} : vector<2x96xf32> to vector<2x32xf32>
    %524 = arith.addf %522, %523 : vector<2x32xf32>
    %cst_152 = arith.constant 0.000000e+00 : f32
    %525 = vector.broadcast %cst_152 : f32 to vector<2x32xf32>
    %526 = arith.subf %525, %524 : vector<2x32xf32>
    %527 = math.exp %526 : vector<2x32xf32>
    %cst_153 = arith.constant 1.000000e+00 : f32
    %528 = vector.broadcast %cst_153 : f32 to vector<2x32xf32>
    %529 = arith.addf %528, %527 : vector<2x32xf32>
    %cst_154 = arith.constant 1.000000e+00 : f32
    %530 = vector.broadcast %cst_154 : f32 to vector<2x32xf32>
    %531 = arith.divf %530, %529 : vector<2x32xf32>
    %532 = vector.extract_strided_slice %518 {offsets = [0, 32], sizes = [2, 32], strides = [1, 1]} : vector<2x96xf32> to vector<2x32xf32>
    %533 = vector.extract_strided_slice %521 {offsets = [0, 32], sizes = [2, 32], strides = [1, 1]} : vector<2x96xf32> to vector<2x32xf32>
    %534 = arith.addf %532, %533 : vector<2x32xf32>
    %cst_155 = arith.constant 0.000000e+00 : f32
    %535 = vector.broadcast %cst_155 : f32 to vector<2x32xf32>
    %536 = arith.subf %535, %534 : vector<2x32xf32>
    %537 = math.exp %536 : vector<2x32xf32>
    %cst_156 = arith.constant 1.000000e+00 : f32
    %538 = vector.broadcast %cst_156 : f32 to vector<2x32xf32>
    %539 = arith.addf %538, %537 : vector<2x32xf32>
    %cst_157 = arith.constant 1.000000e+00 : f32
    %540 = vector.broadcast %cst_157 : f32 to vector<2x32xf32>
    %541 = arith.divf %540, %539 : vector<2x32xf32>
    %542 = vector.extract_strided_slice %518 {offsets = [0, 64], sizes = [2, 32], strides = [1, 1]} : vector<2x96xf32> to vector<2x32xf32>
    %543 = vector.extract_strided_slice %521 {offsets = [0, 64], sizes = [2, 32], strides = [1, 1]} : vector<2x96xf32> to vector<2x32xf32>
    %544 = arith.mulf %531, %543 : vector<2x32xf32>
    %545 = arith.addf %542, %544 : vector<2x32xf32>
    %546 = math.tanh %545 : vector<2x32xf32>
    %cst_158 = arith.constant 1.000000e+00 : f32
    %547 = vector.broadcast %cst_158 : f32 to vector<2x32xf32>
    %548 = arith.subf %547, %541 : vector<2x32xf32>
    %549 = arith.mulf %548, %546 : vector<2x32xf32>
    %550 = arith.mulf %541, %517 : vector<2x32xf32>
    %551 = arith.addf %549, %550 : vector<2x32xf32>
    %552 = vector.extract_strided_slice %312 {offsets = [14, 0], sizes = [2, 96], strides = [1, 1]} : vector<16x96xf32> to vector<2x96xf32>
    %cst_159 = arith.constant dense<0.000000e+00> : vector<2x96xf32>
    %553 = tpu.matmul %551, %306, %cst_159 {dimension_numbers = #tpu.dot_dimension_numbers<[1], [0], [0], [1], [0, 0, 1, 1], [], []>} : vector<2x32xf32>, vector<32x96xf32>, vector<2x96xf32> -> vector<2x96xf32>
    %554 = vector.broadcast %308 : vector<1x96xf32> to vector<2x96xf32>
    %555 = arith.addf %553, %554 : vector<2x96xf32>
    %556 = vector.extract_strided_slice %552 {offsets = [0, 0], sizes = [2, 32], strides = [1, 1]} : vector<2x96xf32> to vector<2x32xf32>
    %557 = vector.extract_strided_slice %555 {offsets = [0, 0], sizes = [2, 32], strides = [1, 1]} : vector<2x96xf32> to vector<2x32xf32>
    %558 = arith.addf %556, %557 : vector<2x32xf32>
    %cst_160 = arith.constant 0.000000e+00 : f32
    %559 = vector.broadcast %cst_160 : f32 to vector<2x32xf32>
    %560 = arith.subf %559, %558 : vector<2x32xf32>
    %561 = math.exp %560 : vector<2x32xf32>
    %cst_161 = arith.constant 1.000000e+00 : f32
    %562 = vector.broadcast %cst_161 : f32 to vector<2x32xf32>
    %563 = arith.addf %562, %561 : vector<2x32xf32>
    %cst_162 = arith.constant 1.000000e+00 : f32
    %564 = vector.broadcast %cst_162 : f32 to vector<2x32xf32>
    %565 = arith.divf %564, %563 : vector<2x32xf32>
    %566 = vector.extract_strided_slice %552 {offsets = [0, 32], sizes = [2, 32], strides = [1, 1]} : vector<2x96xf32> to vector<2x32xf32>
    %567 = vector.extract_strided_slice %555 {offsets = [0, 32], sizes = [2, 32], strides = [1, 1]} : vector<2x96xf32> to vector<2x32xf32>
    %568 = arith.addf %566, %567 : vector<2x32xf32>
    %cst_163 = arith.constant 0.000000e+00 : f32
    %569 = vector.broadcast %cst_163 : f32 to vector<2x32xf32>
    %570 = arith.subf %569, %568 : vector<2x32xf32>
    %571 = math.exp %570 : vector<2x32xf32>
    %cst_164 = arith.constant 1.000000e+00 : f32
    %572 = vector.broadcast %cst_164 : f32 to vector<2x32xf32>
    %573 = arith.addf %572, %571 : vector<2x32xf32>
    %cst_165 = arith.constant 1.000000e+00 : f32
    %574 = vector.broadcast %cst_165 : f32 to vector<2x32xf32>
    %575 = arith.divf %574, %573 : vector<2x32xf32>
    %576 = vector.extract_strided_slice %552 {offsets = [0, 64], sizes = [2, 32], strides = [1, 1]} : vector<2x96xf32> to vector<2x32xf32>
    %577 = vector.extract_strided_slice %555 {offsets = [0, 64], sizes = [2, 32], strides = [1, 1]} : vector<2x96xf32> to vector<2x32xf32>
    %578 = arith.mulf %565, %577 : vector<2x32xf32>
    %579 = arith.addf %576, %578 : vector<2x32xf32>
    %580 = math.tanh %579 : vector<2x32xf32>
    %cst_166 = arith.constant 1.000000e+00 : f32
    %581 = vector.broadcast %cst_166 : f32 to vector<2x32xf32>
    %582 = arith.subf %581, %575 : vector<2x32xf32>
    %583 = arith.mulf %582, %580 : vector<2x32xf32>
    %584 = arith.mulf %575, %551 : vector<2x32xf32>
    %585 = arith.addf %583, %584 : vector<2x32xf32>
    %cst_167 = arith.constant 0.000000e+00 : f32
    %586 = vector.broadcast %cst_167 : f32 to vector<2x32xf32>
    %587 = arith.maximumf %585, %586 : vector<2x32xf32>
    %c0_168 = arith.constant 0 : index
    %c0_169 = arith.constant 0 : index
    %588 = vector.load %arg10[%c0_168, %c0_169] : memref<32x32xf32, #tpu.memory_space<vmem>>, vector<32x32xf32>
    %c0_170 = arith.constant 0 : index
    %c0_171 = arith.constant 0 : index
    %589 = vector.load %arg11[%c0_170, %c0_171] : memref<1x32xf32, #tpu.memory_space<vmem>>, vector<1x32xf32>
    %cst_172 = arith.constant dense<0.000000e+00> : vector<2x32xf32>
    %590 = tpu.matmul %587, %588, %cst_172 {dimension_numbers = #tpu.dot_dimension_numbers<[1], [0], [0], [1], [0, 0, 1, 1], [], []>} : vector<2x32xf32>, vector<32x32xf32>, vector<2x32xf32> -> vector<2x32xf32>
    %591 = vector.broadcast %589 : vector<1x32xf32> to vector<2x32xf32>
    %592 = arith.addf %590, %591 : vector<2x32xf32>
    %cst_173 = arith.constant 0.000000e+00 : f32
    %593 = vector.broadcast %cst_173 : f32 to vector<2x32xf32>
    %594 = arith.maximumf %592, %593 : vector<2x32xf32>
    %c0_174 = arith.constant 0 : index
    %c0_175 = arith.constant 0 : index
    %595 = vector.load %arg12[%c0_174, %c0_175] : memref<32x8xf32, #tpu.memory_space<vmem>>, vector<32x8xf32>
    %c0_176 = arith.constant 0 : index
    %c0_177 = arith.constant 0 : index
    %596 = vector.load %arg13[%c0_176, %c0_177] : memref<1x8xf32, #tpu.memory_space<vmem>>, vector<1x8xf32>
    %cst_178 = arith.constant dense<0.000000e+00> : vector<2x8xf32>
    %597 = tpu.matmul %594, %595, %cst_178 {dimension_numbers = #tpu.dot_dimension_numbers<[1], [0], [0], [1], [0, 0, 1, 1], [], []>} : vector<2x32xf32>, vector<32x8xf32>, vector<2x8xf32> -> vector<2x8xf32>
    %598 = vector.broadcast %596 : vector<1x8xf32> to vector<2x8xf32>
    %599 = arith.addf %597, %598 : vector<2x8xf32>
    %cst_179 = arith.constant 0.000000e+00 : f32
    %600 = vector.broadcast %cst_179 : f32 to vector<2x8xf32>
    %601 = arith.maximumf %599, %600 : vector<2x8xf32>
    %c0_180 = arith.constant 0 : index
    %c0_181 = arith.constant 0 : index
    %602 = vector.load %arg14[%c0_180, %c0_181] : memref<2x8xf32, #tpu.memory_space<vmem>>, vector<2x8xf32>
    tpu.vector_store %arg14[%c0_180, %c0_181], %601 {strides = array<i32>} : memref<2x8xf32, #tpu.memory_space<vmem>>, vector<2x8xf32>,
    return
  }
  func.func @transform_0(%arg0: i32) -> (i32, i32) {
    %c0_i32 = arith.constant 0 : i32
    %c0_i32_0 = arith.constant 0 : i32
    %c0_i32_1 = arith.constant 0 : i32
    return %c0_i32, %c0_i32_0 : i32, i32
  }
  func.func @transform_1(%arg0: i32) -> (i32, i32) {
    %c0_i32 = arith.constant 0 : i32
    %c0_i32_0 = arith.constant 0 : i32
    %c0_i32_1 = arith.constant 0 : i32
    return %c0_i32, %c0_i32_0 : i32, i32
  }
  func.func @transform_2(%arg0: i32) -> (i32, i32) {
    %c0_i32 = arith.constant 0 : i32
    %c0_i32_0 = arith.constant 0 : i32
    %c0_i32_1 = arith.constant 0 : i32
    return %c0_i32, %c0_i32_0 : i32, i32
  }
  func.func @transform_3(%arg0: i32) -> (i32, i32) {
    %c0_i32 = arith.constant 0 : i32
    %c0_i32_0 = arith.constant 0 : i32
    %c0_i32_1 = arith.constant 0 : i32
    return %c0_i32, %c0_i32_0 : i32, i32
  }
  func.func @transform_4(%arg0: i32) -> (i32, i32) {
    %c0_i32 = arith.constant 0 : i32
    %c0_i32_0 = arith.constant 0 : i32
    %c0_i32_1 = arith.constant 0 : i32
    return %c0_i32, %c0_i32_0 : i32, i32
  }
  func.func @transform_5(%arg0: i32) -> (i32, i32) {
    %c0_i32 = arith.constant 0 : i32
    %c0_i32_0 = arith.constant 0 : i32
    %c0_i32_1 = arith.constant 0 : i32
    return %c0_i32, %c0_i32_0 : i32, i32
  }
  func.func @transform_6(%arg0: i32) -> (i32, i32) {
    %c0_i32 = arith.constant 0 : i32
    %c0_i32_0 = arith.constant 0 : i32
    %c0_i32_1 = arith.constant 0 : i32
    return %c0_i32, %c0_i32_0 : i32, i32
  }
  func.func @transform_7(%arg0: i32) -> (i32, i32) {
    %c0_i32 = arith.constant 0 : i32
    %c0_i32_0 = arith.constant 0 : i32
    %c0_i32_1 = arith.constant 0 : i32
    return %c0_i32, %c0_i32_0 : i32, i32
  }
  func.func @transform_8(%arg0: i32) -> (i32, i32) {
    %c0_i32 = arith.constant 0 : i32
    %c0_i32_0 = arith.constant 0 : i32
    %c0_i32_1 = arith.constant 0 : i32
    return %c0_i32, %c0_i32_0 : i32, i32
  }
  func.func @transform_9(%arg0: i32) -> (i32, i32) {
    %c0_i32 = arith.constant 0 : i32
    %c0_i32_0 = arith.constant 0 : i32
    %c0_i32_1 = arith.constant 0 : i32
    return %c0_i32, %c0_i32_0 : i32, i32
  }
  func.func @transform_10(%arg0: i32) -> (i32, i32) {
    %c0_i32 = arith.constant 0 : i32
    %c0_i32_0 = arith.constant 0 : i32
    %c0_i32_1 = arith.constant 0 : i32
    return %c0_i32, %c0_i32_0 : i32, i32
  }
  func.func @transform_11(%arg0: i32) -> (i32, i32) {
    %c0_i32 = arith.constant 0 : i32
    %c0_i32_0 = arith.constant 0 : i32
    %c0_i32_1 = arith.constant 0 : i32
    return %c0_i32, %c0_i32_0 : i32, i32
  }
  func.func @transform_12(%arg0: i32) -> (i32, i32) {
    %c0_i32 = arith.constant 0 : i32
    %c0_i32_0 = arith.constant 0 : i32
    %c0_i32_1 = arith.constant 0 : i32
    return %c0_i32, %c0_i32_0 : i32, i32
  }
  func.func @transform_13(%arg0: i32) -> (i32, i32) {
    %c0_i32 = arith.constant 0 : i32
    %c0_i32_0 = arith.constant 0 : i32
    %c0_i32_1 = arith.constant 0 : i32
    return %c0_i32, %c0_i32_0 : i32, i32
  }
}

</mosaic_0001>

<llo_original>
// kernel: tpu_custom_call.1
$region0: #{tpu_custom_call.1}
  #allocation0 [shape = 'u32[]', space=smem, size = 0x4, offset = 0x4, fixed_abs, tag = 'smem constant byte address 0x4 - core index']
  #allocation1 [shape = 'u32[144,128]{1,0:T(1,128)}', space=vmem, size = 0x12000, scoped, tag = 'internal scratch']
  #allocation2 [shape = 'f32[16,32]{1,0:T(8,128)}', space=vmem, size = 0x2000, scoped, tag = 'scratch operand']
  %s0 = inlined_call_operand.hbm [shape: f32[16,32], index: 0, kind: input, shape index: {}]
  %s1 = inlined_call_operand.vmem [shape: f32[32,96], index: 1, kind: input, shape index: {}]
  %s2 = inlined_call_operand.hbm [shape: f32[32,96], index: 2, kind: input, shape index: {}]
  %s3 = inlined_call_operand.vmem [shape: f32[1,96], index: 3, kind: input, shape index: {}]
  %s4 = inlined_call_operand.vmem [shape: f32[1,96], index: 4, kind: input, shape index: {}]
  %s5 = inlined_call_operand.hbm [shape: f32[32,96], index: 5, kind: input, shape index: {}]
  %s6 = inlined_call_operand.hbm [shape: f32[32,96], index: 6, kind: input, shape index: {}]
  %s7 = inlined_call_operand.hbm [shape: f32[1,96], index: 7, kind: input, shape index: {}]
  %s8 = inlined_call_operand.hbm [shape: f32[1,96], index: 8, kind: input, shape index: {}]
  %s9 = inlined_call_operand.vmem [shape: f32[32,32], index: 9, kind: input, shape index: {}]
  %s10 = inlined_call_operand.vmem [shape: f32[1,32], index: 10, kind: input, shape index: {}]
  %s11 = inlined_call_operand.vmem [shape: f32[32,8], index: 11, kind: input, shape index: {}]
  %s12 = inlined_call_operand.vmem [shape: f32[1,8], index: 12, kind: input, shape index: {}]
  %s13 = inlined_call_operand.hbm [shape: f32[2,8], index: 13, kind: output, shape index: {}]
  %s14 = sld [smem:[#allocation0]]
  $region86: #{tpu_custom_call.1} parent=0
    _
  %s16 = ssub.s32 1, %s14
  %s17 = scalar_select 0, %s16, %s14
  $region1: #{tpu_custom_call.1} parent=0
    #allocation3 [shape = 'u8[8192]{0}', space=vmem, size = 0x2000, scoped, tag = 'input window, operand 0, single buffered']
    #allocation4 [shape = 's32[1]{0}', space=sflag, size = 0x4, scoped, tag = 'scoped memory for tpu_custom_call.1']
    #allocation5 [shape = 's32[1]{0}', space=sflag, size = 0x4, scoped, tag = 'scoped memory for tpu_custom_call.1']
    #allocation6 [shape = 'u8[16384]{0}', space=vmem, size = 0x4000, scoped, tag = 'input window, operand 2, single buffered']
    #allocation7 [shape = 's32[1]{0}', space=sflag, size = 0x4, scoped, tag = 'scoped memory for tpu_custom_call.1']
    #allocation8 [shape = 'u8[16384]{0}', space=vmem, size = 0x4000, scoped, tag = 'input window, operand 5, single buffered']
    #allocation9 [shape = 'u8[16384]{0}', space=vmem, size = 0x4000, scoped, tag = 'input window, operand 6, single buffered']
    #allocation10 [shape = 's32[1]{0}', space=sflag, size = 0x4, scoped, tag = 'scoped memory for tpu_custom_call.1']
    #allocation11 [shape = 'u8[512]{0}', space=vmem, size = 0x400, scoped, tag = 'input window, operand 7, single buffered']
    #allocation12 [shape = 'u8[512]{0}', space=vmem, size = 0x400, scoped, tag = 'input window, operand 8, single buffered']
    #allocation13 [shape = 's32[1]{0}', space=sflag, size = 0x4, scoped, tag = 'scoped memory for tpu_custom_call.1']
    #allocation14 [shape = 'u8[1024]{0}', space=vmem, size = 0x400, scoped, tag = 'output window, operand 0, single buffered']
    %18 = vsyncpa [#allocation4], 0
    %19 = vsyncpa [#allocation7], 0
    %20 = vsyncpa [#allocation10], 0
    %21 = vsyncpa [#allocation13], 0
    %22 = vsyncpa [#allocation5], 0
    // Predicated region
    $region2: #{tpu_custom_call.1} parent=1 // pred_check
      _
    $region3: #{tpu_custom_call.1} parent=1 // pred_check_branch
      %24 = sbr.rel (0) target = $region5
    $region4: #{tpu_custom_call.1} parent=1 // pred_region
      %s26 = ssub.s32 256, 256
      %27 = vsyncadd [#allocation4], %s26
      %s28 = sshll.u32 [#allocation3], 4
      %s29 = int_to_ptr.vmem [resolvable:$true] %s28
      %34 = dma.hbm_to_vmem [thread:$0]  %s0, 256, %s29, [#allocation4], 128, 128, 8
    $region5: #{tpu_custom_call.1} parent=1 // pred_fallthru
      _
    // Predicated region
    $region6: #{tpu_custom_call.1} parent=1 // pred_check
      _
    $region7: #{tpu_custom_call.1} parent=1 // pred_check_branch
      %36 = sbr.rel (0) target = $region9
    $region8: #{tpu_custom_call.1} parent=1 // pred_region
      _
    $region9: #{tpu_custom_call.1} parent=1 // pred_fallthru
      _
    // Predicated region
    $region10: #{tpu_custom_call.1} parent=1 // pred_check
      _
    $region11: #{tpu_custom_call.1} parent=1 // pred_check_branch
      %38 = sbr.rel (0) target = $region13
    $region12: #{tpu_custom_call.1} parent=1 // pred_region
      %s40 = ssub.s32 512, 512
      %41 = vsyncadd [#allocation7], %s40
      %s42 = sshll.u32 [#allocation6], 4
      %s43 = int_to_ptr.vmem [resolvable:$true] %s42
      %48 = dma.hbm_to_vmem [thread:$0]  %s2, 512, %s43, [#allocation7], 128, 128, 8
    $region13: #{tpu_custom_call.1} parent=1 // pred_fallthru
      _
    // Predicated region
    $region14: #{tpu_custom_call.1} parent=1 // pred_check
      _
    $region15: #{tpu_custom_call.1} parent=1 // pred_check_branch
      %50 = sbr.rel (0) target = $region17
    $region16: #{tpu_custom_call.1} parent=1 // pred_region
      _
    $region17: #{tpu_custom_call.1} parent=1 // pred_fallthru
      _
    // Predicated region
    $region18: #{tpu_custom_call.1} parent=1 // pred_check
      _
    $region19: #{tpu_custom_call.1} parent=1 // pred_check_branch
      %52 = sbr.rel (0) target = $region21
    $region20: #{tpu_custom_call.1} parent=1 // pred_region
      _
    $region21: #{tpu_custom_call.1} parent=1 // pred_fallthru
      _
    // Predicated region
    $region22: #{tpu_custom_call.1} parent=1 // pred_check
      _
    $region23: #{tpu_custom_call.1} parent=1 // pred_check_branch
      %54 = sbr.rel (0) target = $region25
    $region24: #{tpu_custom_call.1} parent=1 // pred_region
      %s56 = ssub.s32 512, 512
      %57 = vsyncadd [#allocation7], %s56
      %s58 = sshll.u32 [#allocation8], 4
      %s59 = int_to_ptr.vmem [resolvable:$true] %s58
      %64 = dma.hbm_to_vmem [thread:$0]  %s5, 512, %s59, [#allocation7], 128, 128, 8
    $region25: #{tpu_custom_call.1} parent=1 // pred_fallthru
      _
    // Predicated region
    $region26: #{tpu_custom_call.1} parent=1 // pred_check
      _
    $region27: #{tpu_custom_call.1} parent=1 // pred_check_branch
      %66 = sbr.rel (0) target = $region29
    $region28: #{tpu_custom_call.1} parent=1 // pred_region
      %s68 = ssub.s32 512, 512
      %69 = vsyncadd [#allocation10], %s68
      %s70 = sshll.u32 [#allocation9], 4
      %s71 = int_to_ptr.vmem [resolvable:$true] %s70
      %76 = dma.hbm_to_vmem [thread:$0]  %s6, 512, %s71, [#allocation10], 128, 128, 8
    $region29: #{tpu_custom_call.1} parent=1 // pred_fallthru
      _
    // Predicated region
    $region30: #{tpu_custom_call.1} parent=1 // pred_check
      _
    $region31: #{tpu_custom_call.1} parent=1 // pred_check_branch
      %78 = sbr.rel (0) target = $region33
    $region32: #{tpu_custom_call.1} parent=1 // pred_region
      %s80 = ssub.s32 16, 16
      %81 = vsyncadd [#allocation10], %s80
      %s83 = sshll.u32 [#allocation11], 4
      %s84 = int_to_ptr.vmem [resolvable:$true] %s83
      %86 = dma.hbm_to_vmem [thread:$0]  %s7, 16, %s84, [#allocation10]
    $region33: #{tpu_custom_call.1} parent=1 // pred_fallthru
      _
    // Predicated region
    $region34: #{tpu_custom_call.1} parent=1 // pred_check
      _
    $region35: #{tpu_custom_call.1} parent=1 // pred_check_branch
      %88 = sbr.rel (0) target = $region37
    $region36: #{tpu_custom_call.1} parent=1 // pred_region
      %s90 = ssub.s32 16, 16
      %91 = vsyncadd [#allocation13], %s90
      %s93 = sshll.u32 [#allocation12], 4
      %s94 = int_to_ptr.vmem [resolvable:$true] %s93
      %96 = dma.hbm_to_vmem [thread:$0]  %s8, 16, %s94, [#allocation13]
    $region37: #{tpu_custom_call.1} parent=1 // pred_fallthru
      _
    // Predicated region
    $region38: #{tpu_custom_call.1} parent=1 // pred_check
      _
    $region39: #{tpu_custom_call.1} parent=1 // pred_check_branch
      %98 = sbr.rel (0) target = $region41
    $region40: #{tpu_custom_call.1} parent=1 // pred_region
      _
    $region41: #{tpu_custom_call.1} parent=1 // pred_fallthru
      _
    // Predicated region
    $region42: #{tpu_custom_call.1} parent=1 // pred_check
      _
    $region43: #{tpu_custom_call.1} parent=1 // pred_check_branch
      %100 = sbr.rel (0) target = $region45
    $region44: #{tpu_custom_call.1} parent=1 // pred_region
      _
    $region45: #{tpu_custom_call.1} parent=1 // pred_fallthru
      _
    // Predicated region
    $region46: #{tpu_custom_call.1} parent=1 // pred_check
      _
    $region47: #{tpu_custom_call.1} parent=1 // pred_check_branch
      %102 = sbr.rel (0) target = $region49
    $region48: #{tpu_custom_call.1} parent=1 // pred_region
      _
    $region49: #{tpu_custom_call.1} parent=1 // pred_fallthru
      _
    // Predicated region
    $region50: #{tpu_custom_call.1} parent=1 // pred_check
      _
    $region51: #{tpu_custom_call.1} parent=1 // pred_check_branch
      %104 = sbr.rel (0) target = $region53
    $region52: #{tpu_custom_call.1} parent=1 // pred_region
      _
    $region53: #{tpu_custom_call.1} parent=1 // pred_fallthru
      _
    // Predicated region
    $region54: #{tpu_custom_call.1} parent=1 // pred_check
      _
    $region55: #{tpu_custom_call.1} parent=1 // pred_check_branch
      %106 = sbr.rel (0) target = $region57
    $region56: #{tpu_custom_call.1} parent=1 // pred_region
      %107 = dma.done [#allocation4], 256
    $region57: #{tpu_custom_call.1} parent=1 // pred_fallthru
      _
    // Predicated region
    $region58: #{tpu_custom_call.1} parent=1 // pred_check
      _
    $region59: #{tpu_custom_call.1} parent=1 // pred_check_branch
      %109 = sbr.rel (0) target = $region61
    $region60: #{tpu_custom_call.1} parent=1 // pred_region
      %110 = dma.done [#allocation7], 512
    $region61: #{tpu_custom_call.1} parent=1 // pred_fallthru
      _
    // Predicated region
    $region62: #{tpu_custom_call.1} parent=1 // pred_check
      _
    $region63: #{tpu_custom_call.1} parent=1 // pred_check_branch
      %112 = sbr.rel (0) target = $region65
    $region64: #{tpu_custom_call.1} parent=1 // pred_region
      %113 = dma.done [#allocation7], 512
    $region65: #{tpu_custom_call.1} parent=1 // pred_fallthru
      _
    // Predicated region
    $region66: #{tpu_custom_call.1} parent=1 // pred_check
      _
    $region67: #{tpu_custom_call.1} parent=1 // pred_check_branch
      %115 = sbr.rel (0) target = $region69
    $region68: #{tpu_custom_call.1} parent=1 // pred_region
      %116 = dma.done [#allocation10], 512
    $region69: #{tpu_custom_call.1} parent=1 // pred_fallthru
      _
    // Predicated region
    $region70: #{tpu_custom_call.1} parent=1 // pred_check
      _
    $region71: #{tpu_custom_call.1} parent=1 // pred_check_branch
      %118 = sbr.rel (0) target = $region73
    $region72: #{tpu_custom_call.1} parent=1 // pred_region
      %119 = dma.done [#allocation10], 16
    $region73: #{tpu_custom_call.1} parent=1 // pred_fallthru
      _
    // Predicated region
    $region74: #{tpu_custom_call.1} parent=1 // pred_check
      _
    $region75: #{tpu_custom_call.1} parent=1 // pred_check_branch
      %121 = sbr.rel (0) target = $region77
    $region76: #{tpu_custom_call.1} parent=1 // pred_region
      %122 = dma.done [#allocation13], 16
    $region77: #{tpu_custom_call.1} parent=1 // pred_fallthru
      _
    %v123 = vld [vmem:[%s1] sm:$0xff]
    %v124 = vld [vmem:[%s1 + $0x8] sm:$0xff]
    %v125 = vld [vmem:[%s1 + $0x10] sm:$0xff]
    %v126 = vld [vmem:[%s1 + $0x18] sm:$0xff]
    %v127 = vld [vmem:[#allocation6] sm:$0xff]
    %v128 = vld [vmem:[#allocation6 + $0x8] sm:$0xff]
    %v129 = vld [vmem:[#allocation6 + $0x10] sm:$0xff]
    %v130 = vld [vmem:[#allocation6 + $0x18] sm:$0xff]
    %v131 = vld [vmem:[%s3] sm:$0x1]
    %v132 = vld [vmem:[%s4] sm:$0x1]
    %v133 = vld [vmem:[#allocation3] sm:$0xff]
    %v134 = vld [vmem:[#allocation3 + $0x8] sm:$0xff]
    %v136 = vlaneseq
    %v137 = vshrl.u32 %v136, 7
    %v138 = vsub.s32 0, %v137
    %v139 = vrot.slane %v131, %v138
    %vm141 = vcmask 261120
    %v143 = vsel %vm141, %v133, 0
    %v146 = vsel %vm141, %v134, 0
    %148 = vmatprep.subr.mxu0 0.0
    %149 = vmatpush1.msra.mxu0 %v123
    %150 = vmatprep.subr.mxu0 0.0
    %151 = vmatpush1.msra.mxu0 %v124
    %152 = vmatprep.subr.mxu0 0.0
    %153 = vmatpush1.msra.mxu0 %v125
    %154 = vmatprep.subr.mxu0 0.0
    %155 = vmatpush1.msra.mxu0 %v126
    %156 = vmatprep.subr.mxu0 0.0
    %157 = vmatpush1.msra.mxu0 0.0
    %158 = vmatprep.subr.mxu0 0.0
    %159 = vmatpush1.msra.mxu0 0.0
    %160 = vmatprep.subr.mxu0 0.0
    %161 = vmatpush1.msra.mxu0 0.0
    %162 = vmatprep.subr.mxu0 0.0
    %163 = vmatpush1.msra.mxu0 0.0
    %164 = vmatprep.subr.mxu0 0.0
    %165 = vmatpush1.msra.mxu0 0.0
    %166 = vmatprep.subr.mxu0 0.0
    %167 = vmatpush1.msra.mxu0 0.0
    %168 = vmatprep.subr.mxu0 0.0
    %169 = vmatpush1.msra.mxu0 0.0
    %170 = vmatprep.subr.mxu0 0.0
    %171 = vmatpush1.msra.mxu0 0.0
    %172 = vmatprep.subr.mxu0 0.0
    %173 = vmatpush1.msra.mxu0 0.0
    %174 = vmatprep.subr.mxu0 0.0
    %175 = vmatpush1.msra.mxu0 0.0
    %176 = vmatprep.subr.mxu0 0.0
    %177 = vmatpush1.msra.mxu0 0.0
    %178 = vmatprep.subr.mxu0 0.0
    %179 = vmatpush1.msra.mxu0 0.0
    %180 = vmatprep.subr.mxu0 0.0
    %181 = vmatpush1.msra.mxu0 0.0
    %182 = vmatprep.subr.mxu0 0.0
    %183 = vmatpush1.msra.mxu0 0.0
    %184 = vmatprep.subr.mxu0 0.0
    %185 = vmatpush1.msra.mxu0 0.0
    %186 = vmatprep.subr.mxu0 0.0
    %187 = vmatpush1.msra.mxu0 0.0
    %188 = vmatprep.subr.mxu0 0.0
    %189 = vmatpush1.msra.mxu0 0.0
    %190 = vmatprep.subr.mxu0 0.0
    %191 = vmatpush1.msra.mxu0 0.0
    %192 = vmatprep.subr.mxu0 0.0
    %193 = vmatpush1.msra.mxu0 0.0
    %194 = vmatprep.subr.mxu0 0.0
    %195 = vmatpush1.msra.mxu0 0.0
    %196 = vmatprep.subr.mxu0 0.0
    %197 = vmatpush1.msra.mxu0 0.0
    %198 = vmatprep.subr.mxu0 0.0
    %199 = vmatpush1.msra.mxu0 0.0
    %200 = vmatprep.subr.mxu0 0.0
    %201 = vmatpush1.msra.mxu0 0.0
    %202 = vmatprep.subr.mxu0 0.0
    %203 = vmatpush1.msra.mxu0 0.0
    %204 = vmatprep.subr.mxu0 0.0
    %205 = vmatpush1.msra.mxu0 0.0
    %206 = vmatprep.subr.mxu0 0.0
    %207 = vmatpush1.msra.mxu0 0.0
    %208 = vmatprep.subr.mxu0 0.0
    %209 = vmatpush1.msra.mxu0 0.0
    %210 = vmatprep.subr.mxu0 0.0
    %211 = vmatpush1.msra.mxu0 0.0
    %212 = vmatprep.mubr.f32.mxu0 0.0
    %213 = vmatmul.mubr.f32.gmra.mrb[0].mxu0 %v143
    %v214 = vpop.f32.mrb[0].mxu0
    %v215 = vadd.f32 %v139, %v214
    %v216 = vpop.f32.mrb[0].mxu0
    %217 = vmatprep.mubr.f32.mxu0 0.0
    %218 = vmatmul.mubr.f32.gmra.mrb[0].mxu0 %v146
    %v219 = vpop.f32.mrb[0].mxu0
    %v220 = vadd.f32 %v139, %v219
    %v221 = vpop.f32.mrb[0].mxu0
    %222 = vdwg.mxu0
    %v224 = vlaneseq
    %v225 = vshrl.u32 %v224, 7
    %v226 = vsub.s32 0, %v225
    %v227 = vrot.slane %v132, %v226
    %v230 = vsel %vm141, 0.0, 0
    %232 = vmatprep.subr.mxu0 0.0
    %233 = vmatpush1.msra.mxu0 %v127
    %234 = vmatprep.subr.mxu0 0.0
    %235 = vmatpush1.msra.mxu0 %v128
    %236 = vmatprep.subr.mxu0 0.0
    %237 = vmatpush1.msra.mxu0 %v129
    %238 = vmatprep.subr.mxu0 0.0
    %239 = vmatpush1.msra.mxu0 %v130
    %240 = vmatprep.subr.mxu0 0.0
    %241 = vmatpush1.msra.mxu0 0.0
    %242 = vmatprep.subr.mxu0 0.0
    %243 = vmatpush1.msra.mxu0 0.0
    %244 = vmatprep.subr.mxu0 0.0
    %245 = vmatpush1.msra.mxu0 0.0
    %246 = vmatprep.subr.mxu0 0.0
    %247 = vmatpush1.msra.mxu0 0.0
    %248 = vmatprep.subr.mxu0 0.0
    %249 = vmatpush1.msra.mxu0 0.0
    %250 = vmatprep.subr.mxu0 0.0
    %251 = vmatpush1.msra.mxu0 0.0
    %252 = vmatprep.subr.mxu0 0.0
    %253 = vmatpush1.msra.mxu0 0.0
    %254 = vmatprep.subr.mxu0 0.0
    %255 = vmatpush1.msra.mxu0 0.0
    %256 = vmatprep.subr.mxu0 0.0
    %257 = vmatpush1.msra.mxu0 0.0
    %258 = vmatprep.subr.mxu0 0.0
    %259 = vmatpush1.msra.mxu0 0.0
    %260 = vmatprep.subr.mxu0 0.0
    %261 = vmatpush1.msra.mxu0 0.0
    %262 = vmatprep.subr.mxu0 0.0
    %263 = vmatpush1.msra.mxu0 0.0
    %264 = vmatprep.subr.mxu0 0.0
    %265 = vmatpush1.msra.mxu0 0.0
    %266 = vmatprep.subr.mxu0 0.0
    %267 = vmatpush1.msra.mxu0 0.0
    %268 = vmatprep.subr.mxu0 0.0
    %269 = vmatpush1.msra.mxu0 0.0
    %270 = vmatprep.subr.mxu0 0.0
    %271 = vmatpush1.msra.mxu0 0.0
    %272 = vmatprep.subr.mxu0 0.0
    %273 = vmatpush1.msra.mxu0 0.0
    %274 = vmatprep.subr.mxu0 0.0
    %275 = vmatpush1.msra.mxu0 0.0
    %276 = vmatprep.subr.mxu0 0.0
    %277 = vmatpush1.msra.mxu0 0.0
    %278 = vmatprep.subr.mxu0 0.0
    %279 = vmatpush1.msra.mxu0 0.0
    %280 = vmatprep.subr.mxu0 0.0
    %281 = vmatpush1.msra.mxu0 0.0
    %282 = vmatprep.subr.mxu0 0.0
    %283 = vmatpush1.msra.mxu0 0.0
    %284 = vmatprep.subr.mxu0 0.0
    %285 = vmatpush1.msra.mxu0 0.0
    %286 = vmatprep.subr.mxu0 0.0
    %287 = vmatpush1.msra.mxu0 0.0
    %288 = vmatprep.subr.mxu0 0.0
    %289 = vmatpush1.msra.mxu0 0.0
    %290 = vmatprep.subr.mxu0 0.0
    %291 = vmatpush1.msra.mxu0 0.0
    %292 = vmatprep.subr.mxu0 0.0
    %293 = vmatpush1.msra.mxu0 0.0
    %294 = vmatprep.subr.mxu0 0.0
    %295 = vmatpush1.msra.mxu0 0.0
    %296 = vmatprep.mubr.f32.mxu0 0.0
    %297 = vmatmul.mubr.f32.gmra.mrb[0].mxu0 %v230
    %v298 = vpop.f32.mrb[0].mxu0
    %v299 = vadd.f32 %v227, %v298
    %v300 = vpop.f32.mrb[0].mxu0
    %301 = vdwg.mxu0
    %v302 = vadd.f32 %v215, %v299
    %v303 = vsub.f32 0.0, %v302
    %v304 = vmul.f32 %v303, 1.442695
    %v305 = vpow.pop %v304
    %v306 = vadd.f32 %v305, 1.0
    %v307 = vrcp.pop %v306
    %v308 = vmul.f32 1.0, %v307
    %310 = vrot.lane.b32.xlu0 %v299, 64
    %v311 = vpop.permute.xlu0 %310
    %v313 = vmul.f32 %v308, %v311
    %315 = vrot.lane.b32.xlu0 %v313, 64
    %v316 = vpop.permute.xlu0 %315
    %v318 = vadd.f32 %v215, %v316
    %v319 = vtanh.pop %v318
    %v320 = vsub.f32 1.0, %v308
    %322 = vrot.lane.b32.xlu0 %v319, 96
    %v323 = vpop.permute.xlu0 %322
    %v325 = vmul.f32 %v320, %v323
    %v326 = vmul.f32 %v308, 0.0
    %v327 = vadd.f32 %v325, %v326
    %v328 = vmax.f32 %v327, 0.0
    %330 = vrot.lane.b32.xlu0 %v328, 96
    %v331 = vpop.permute.xlu0 %330
    %vm333 = vcmask 254976
    %334 = vst.msk [vmem:[#allocation2] sm:$0x3] %vm333, %v331
    %336 = vrot.lane.b32.xlu0 %v327, 96
    %v337 = vpop.permute.xlu0 %336
    %v338 = vsel %vm141, %v337, 0
    %340 = vmatprep.subr.mxu0 0.0
    %341 = vmatpush1.msra.mxu0 %v127
    %342 = vmatprep.subr.mxu0 0.0
    %343 = vmatpush1.msra.mxu0 %v128
    %344 = vmatprep.subr.mxu0 0.0
    %345 = vmatpush1.msra.mxu0 %v129
    %346 = vmatprep.subr.mxu0 0.0
    %347 = vmatpush1.msra.mxu0 %v130
    %348 = vmatprep.subr.mxu0 0.0
    %349 = vmatpush1.msra.mxu0 0.0
    %350 = vmatprep.subr.mxu0 0.0
    %351 = vmatpush1.msra.mxu0 0.0
    %352 = vmatprep.subr.mxu0 0.0
    %353 = vmatpush1.msra.mxu0 0.0
    %354 = vmatprep.subr.mxu0 0.0
    %355 = vmatpush1.msra.mxu0 0.0
    %356 = vmatprep.subr.mxu0 0.0
    %357 = vmatpush1.msra.mxu0 0.0
    %358 = vmatprep.subr.mxu0 0.0
    %359 = vmatpush1.msra.mxu0 0.0
    %360 = vmatprep.subr.mxu0 0.0
    %361 = vmatpush1.msra.mxu0 0.0
    %362 = vmatprep.subr.mxu0 0.0
    %363 = vmatpush1.msra.mxu0 0.0
    %364 = vmatprep.subr.mxu0 0.0
    %365 = vmatpush1.msra.mxu0 0.0
    %366 = vmatprep.subr.mxu0 0.0
    %367 = vmatpush1.msra.mxu0 0.0
    %368 = vmatprep.subr.mxu0 0.0
    %369 = vmatpush1.msra.mxu0 0.0
    %370 = vmatprep.subr.mxu0 0.0
    %371 = vmatpush1.msra.mxu0 0.0
    %372 = vmatprep.subr.mxu0 0.0
    %373 = vmatpush1.msra.mxu0 0.0
    %374 = vmatprep.subr.mxu0 0.0
    %375 = vmatpush1.msra.mxu0 0.0
    %376 = vmatprep.subr.mxu0 0.0
    %377 = vmatpush1.msra.mxu0 0.0
    %378 = vmatprep.subr.mxu0 0.0
    %379 = vmatpush1.msra.mxu0 0.0
    %380 = vmatprep.subr.mxu0 0.0
    %381 = vmatpush1.msra.mxu0 0.0
    %382 = vmatprep.subr.mxu0 0.0
    %383 = vmatpush1.msra.mxu0 0.0
    %384 = vmatprep.subr.mxu0 0.0
    %385 = vmatpush1.msra.mxu0 0.0
    %386 = vmatprep.subr.mxu0 0.0
    %387 = vmatpush1.msra.mxu0 0.0
    %388 = vmatprep.subr.mxu0 0.0
    %389 = vmatpush1.msra.mxu0 0.0
    %390 = vmatprep.subr.mxu0 0.0
    %391 = vmatpush1.msra.mxu0 0.0
    %392 = vmatprep.subr.mxu0 0.0
    %393 = vmatpush1.msra.mxu0 0.0
    %394 = vmatprep.subr.mxu0 0.0
    %395 = vmatpush1.msra.mxu0 0.0
    %396 = vmatprep.subr.mxu0 0.0
    %397 = vmatpush1.msra.mxu0 0.0
    %398 = vmatprep.subr.mxu0 0.0
    %399 = vmatpush1.msra.mxu0 0.0
    %400 = vmatprep.subr.mxu0 0.0
    %401 = vmatpush1.msra.mxu0 0.0
    %402 = vmatprep.subr.mxu0 0.0
    %403 = vmatpush1.msra.mxu0 0.0
    %404 = vmatprep.mubr.f32.mxu0 0.0
    %405 = vmatmul.mubr.f32.gmra.mrb[0].mxu0 %v338
    %v406 = vpop.f32.mrb[0].mxu0
    %v407 = vadd.f32 %v227, %v406
    %v408 = vpop.f32.mrb[0].mxu0
    %409 = vdwg.mxu0
    %v411 = vrot.slane %v407, 6
    %v413 = vadd.f32 %v215, %v411
    %v414 = vsub.f32 0.0, %v413
    %v415 = vmul.f32 %v414, 1.442695
    %v416 = vpow.pop %v415
    %v417 = vadd.f32 %v416, 1.0
    %v418 = vrcp.pop %v417
    %v419 = vmul.f32 1.0, %v418
    %420 = vrot.lane.b32.xlu0 %v411, 64
    %v421 = vpop.permute.xlu0 %420
    %v423 = vmul.f32 %v419, %v421
    %425 = vrot.lane.b32.xlu0 %v423, 64
    %v426 = vpop.permute.xlu0 %425
    %v428 = vadd.f32 %v215, %v426
    %v429 = vtanh.pop %v428
    %v430 = vsub.f32 1.0, %v419
    %432 = vrot.lane.b32.xlu0 %v429, 96
    %v433 = vpop.permute.xlu0 %432
    %v435 = vmul.f32 %v430, %v433
    %v436 = vrot.slane %v327, 6
    %v438 = vmul.f32 %v419, %v436
    %v439 = vadd.f32 %v435, %v438
    %v440 = vmax.f32 %v439, 0.0
    %442 = vrot.lane.b32.xlu0 %v440, 96
    %v443 = vpop.permute.xlu0 %442
    %vm445 = vcmask 257026
    %446 = vst.msk [vmem:[#allocation2] sm:$0xc] %vm445, %v443
    %v448 = vrot.slane %v439, 2
    %449 = vrot.lane.b32.xlu0 %v448, 96
    %v450 = vpop.permute.xlu0 %449
    %v451 = vsel %vm141, %v450, 0
    %453 = vmatprep.subr.mxu0 0.0
    %454 = vmatpush1.msra.mxu0 %v127
    %455 = vmatprep.subr.mxu0 0.0
    %456 = vmatpush1.msra.mxu0 %v128
    %457 = vmatprep.subr.mxu0 0.0
    %458 = vmatpush1.msra.mxu0 %v129
    %459 = vmatprep.subr.mxu0 0.0
    %460 = vmatpush1.msra.mxu0 %v130
    %461 = vmatprep.subr.mxu0 0.0
    %462 = vmatpush1.msra.mxu0 0.0
    %463 = vmatprep.subr.mxu0 0.0
    %464 = vmatpush1.msra.mxu0 0.0
    %465 = vmatprep.subr.mxu0 0.0
    %466 = vmatpush1.msra.mxu0 0.0
    %467 = vmatprep.subr.mxu0 0.0
    %468 = vmatpush1.msra.mxu0 0.0
    %469 = vmatprep.subr.mxu0 0.0
    %470 = vmatpush1.msra.mxu0 0.0
    %471 = vmatprep.subr.mxu0 0.0
    %472 = vmatpush1.msra.mxu0 0.0
    %473 = vmatprep.subr.mxu0 0.0
    %474 = vmatpush1.msra.mxu0 0.0
    %475 = vmatprep.subr.mxu0 0.0
    %476 = vmatpush1.msra.mxu0 0.0
    %477 = vmatprep.subr.mxu0 0.0
    %478 = vmatpush1.msra.mxu0 0.0
    %479 = vmatprep.subr.mxu0 0.0
    %480 = vmatpush1.msra.mxu0 0.0
    %481 = vmatprep.subr.mxu0 0.0
    %482 = vmatpush1.msra.mxu0 0.0
    %483 = vmatprep.subr.mxu0 0.0
    %484 = vmatpush1.msra.mxu0 0.0
    %485 = vmatprep.subr.mxu0 0.0
    %486 = vmatpush1.msra.mxu0 0.0
    %487 = vmatprep.subr.mxu0 0.0
    %488 = vmatpush1.msra.mxu0 0.0
    %489 = vmatprep.subr.mxu0 0.0
    %490 = vmatpush1.msra.mxu0 0.0
    %491 = vmatprep.subr.mxu0 0.0
    %492 = vmatpush1.msra.mxu0 0.0
    %493 = vmatprep.subr.mxu0 0.0
    %494 = vmatpush1.msra.mxu0 0.0
    %495 = vmatprep.subr.mxu0 0.0
    %496 = vmatpush1.msra.mxu0 0.0
    %497 = vmatprep.subr.mxu0 0.0
    %498 = vmatpush1.msra.mxu0 0.0
    %499 = vmatprep.subr.mxu0 0.0
    %500 = vmatpush1.msra.mxu0 0.0
    %501 = vmatprep.subr.mxu0 0.0
    %502 = vmatpush1.msra.mxu0 0.0
    %503 = vmatprep.subr.mxu0 0.0
    %504 = vmatpush1.msra.mxu0 0.0
    %505 = vmatprep.subr.mxu0 0.0
    %506 = vmatpush1.msra.mxu0 0.0
    %507 = vmatprep.subr.mxu0 0.0
    %508 = vmatpush1.msra.mxu0 0.0
    %509 = vmatprep.subr.mxu0 0.0
    %510 = vmatpush1.msra.mxu0 0.0
    %511 = vmatprep.subr.mxu0 0.0
    %512 = vmatpush1.msra.mxu0 0.0
    %513 = vmatprep.subr.mxu0 0.0
    %514 = vmatpush1.msra.mxu0 0.0
    %515 = vmatprep.subr.mxu0 0.0
    %516 = vmatpush1.msra.mxu0 0.0
    %517 = vmatprep.mubr.f32.mxu0 0.0
    %518 = vmatmul.mubr.f32.gmra.mrb[0].mxu0 %v451
    %v519 = vpop.f32.mrb[0].mxu0
    %v520 = vadd.f32 %v227, %v519
    %v521 = vpop.f32.mrb[0].mxu0
    %522 = vdwg.mxu0
    %v524 = vrot.slane %v520, 4
    %v526 = vadd.f32 %v215, %v524
    %v527 = vsub.f32 0.0, %v526
    %v528 = vmul.f32 %v527, 1.442695
    %v529 = vpow.pop %v528
    %v530 = vadd.f32 %v529, 1.0
    %v531 = vrcp.pop %v530
    %v532 = vmul.f32 1.0, %v531
    %533 = vrot.lane.b32.xlu0 %v524, 64
    %v534 = vpop.permute.xlu0 %533
    %v536 = vmul.f32 %v532, %v534
    %538 = vrot.lane.b32.xlu0 %v536, 64
    %v539 = vpop.permute.xlu0 %538
    %v541 = vadd.f32 %v215, %v539
    %v542 = vtanh.pop %v541
    %v543 = vsub.f32 1.0, %v532
    %545 = vrot.lane.b32.xlu0 %v542, 96
    %v546 = vpop.permute.xlu0 %545
    %v548 = vmul.f32 %v543, %v546
    %v549 = vrot.slane %v439, 6
    %v551 = vmul.f32 %v532, %v549
    %v552 = vadd.f32 %v548, %v551
    %v553 = vmax.f32 %v552, 0.0
    %555 = vrot.lane.b32.xlu0 %v553, 96
    %v556 = vpop.permute.xlu0 %555
    %vm558 = vcmask 259076
    %559 = vst.msk [vmem:[#allocation2] sm:$0x30] %vm558, %v556
    %v561 = vrot.slane %v552, 4
    %562 = vrot.lane.b32.xlu0 %v561, 96
    %v563 = vpop.permute.xlu0 %562
    %v564 = vsel %vm141, %v563, 0
    %566 = vmatprep.subr.mxu0 0.0
    %567 = vmatpush1.msra.mxu0 %v127
    %568 = vmatprep.subr.mxu0 0.0
    %569 = vmatpush1.msra.mxu0 %v128
    %570 = vmatprep.subr.mxu0 0.0
    %571 = vmatpush1.msra.mxu0 %v129
    %572 = vmatprep.subr.mxu0 0.0
    %573 = vmatpush1.msra.mxu0 %v130
    %574 = vmatprep.subr.mxu0 0.0
    %575 = vmatpush1.msra.mxu0 0.0
    %576 = vmatprep.subr.mxu0 0.0
    %577 = vmatpush1.msra.mxu0 0.0
    %578 = vmatprep.subr.mxu0 0.0
    %579 = vmatpush1.msra.mxu0 0.0
    %580 = vmatprep.subr.mxu0 0.0
    %581 = vmatpush1.msra.mxu0 0.0
    %582 = vmatprep.subr.mxu0 0.0
    %583 = vmatpush1.msra.mxu0 0.0
    %584 = vmatprep.subr.mxu0 0.0
    %585 = vmatpush1.msra.mxu0 0.0
    %586 = vmatprep.subr.mxu0 0.0
    %587 = vmatpush1.msra.mxu0 0.0
    %588 = vmatprep.subr.mxu0 0.0
    %589 = vmatpush1.msra.mxu0 0.0
    %590 = vmatprep.subr.mxu0 0.0
    %591 = vmatpush1.msra.mxu0 0.0
    %592 = vmatprep.subr.mxu0 0.0
    %593 = vmatpush1.msra.mxu0 0.0
    %594 = vmatprep.subr.mxu0 0.0
    %595 = vmatpush1.msra.mxu0 0.0
    %596 = vmatprep.subr.mxu0 0.0
    %597 = vmatpush1.msra.mxu0 0.0
    %598 = vmatprep.subr.mxu0 0.0
    %599 = vmatpush1.msra.mxu0 0.0
    %600 = vmatprep.subr.mxu0 0.0
    %601 = vmatpush1.msra.mxu0 0.0
    %602 = vmatprep.subr.mxu0 0.0
    %603 = vmatpush1.msra.mxu0 0.0
    %604 = vmatprep.subr.mxu0 0.0
    %605 = vmatpush1.msra.mxu0 0.0
    %606 = vmatprep.subr.mxu0 0.0
    %607 = vmatpush1.msra.mxu0 0.0
    %608 = vmatprep.subr.mxu0 0.0
    %609 = vmatpush1.msra.mxu0 0.0
    %610 = vmatprep.subr.mxu0 0.0
    %611 = vmatpush1.msra.mxu0 0.0
    %612 = vmatprep.subr.mxu0 0.0
    %613 = vmatpush1.msra.mxu0 0.0
    %614 = vmatprep.subr.mxu0 0.0
    %615 = vmatpush1.msra.mxu0 0.0
    %616 = vmatprep.subr.mxu0 0.0
    %617 = vmatpush1.msra.mxu0 0.0
    %618 = vmatprep.subr.mxu0 0.0
    %619 = vmatpush1.msra.mxu0 0.0
    %620 = vmatprep.subr.mxu0 0.0
    %621 = vmatpush1.msra.mxu0 0.0
    %622 = vmatprep.subr.mxu0 0.0
    %623 = vmatpush1.msra.mxu0 0.0
    %624 = vmatprep.subr.mxu0 0.0
    %625 = vmatpush1.msra.mxu0 0.0
    %626 = vmatprep.subr.mxu0 0.0
    %627 = vmatpush1.msra.mxu0 0.0
    %628 = vmatprep.subr.mxu0 0.0
    %629 = vmatpush1.msra.mxu0 0.0
    %630 = vmatprep.mubr.f32.mxu0 0.0
    %631 = vmatmul.mubr.f32.gmra.mrb[0].mxu0 %v564
    %v632 = vpop.f32.mrb[0].mxu0
    %v633 = vadd.f32 %v227, %v632
    %v634 = vpop.f32.mrb[0].mxu0
    %635 = vdwg.mxu0
    %v637 = vrot.slane %v633, 2
    %v639 = vadd.f32 %v215, %v637
    %v640 = vsub.f32 0.0, %v639
    %v641 = vmul.f32 %v640, 1.442695
    %v642 = vpow.pop %v641
    %v643 = vadd.f32 %v642, 1.0
    %v644 = vrcp.pop %v643
    %v645 = vmul.f32 1.0, %v644
    %646 = vrot.lane.b32.xlu0 %v637, 64
    %v647 = vpop.permute.xlu0 %646
    %v649 = vmul.f32 %v645, %v647
    %651 = vrot.lane.b32.xlu0 %v649, 64
    %v652 = vpop.permute.xlu0 %651
    %v654 = vadd.f32 %v215, %v652
    %v655 = vtanh.pop %v654
    %v656 = vsub.f32 1.0, %v645
    %658 = vrot.lane.b32.xlu0 %v655, 96
    %v659 = vpop.permute.xlu0 %658
    %v661 = vmul.f32 %v656, %v659
    %v662 = vrot.slane %v552, 6
    %v664 = vmul.f32 %v645, %v662
    %v665 = vadd.f32 %v661, %v664
    %v666 = vmax.f32 %v665, 0.0
    %668 = vrot.lane.b32.xlu0 %v666, 96
    %v669 = vpop.permute.xlu0 %668
    %vm671 = vcmask 261126
    %672 = vst.msk [vmem:[#allocation2] sm:$0xc0] %vm671, %v669
    %v674 = vrot.slane %v665, 6
    %675 = vrot.lane.b32.xlu0 %v674, 96
    %v676 = vpop.permute.xlu0 %675
    %v677 = vsel %vm141, %v676, 0
    %679 = vmatprep.subr.mxu0 0.0
    %680 = vmatpush1.msra.mxu0 %v127
    %681 = vmatprep.subr.mxu0 0.0
    %682 = vmatpush1.msra.mxu0 %v128
    %683 = vmatprep.subr.mxu0 0.0
    %684 = vmatpush1.msra.mxu0 %v129
    %685 = vmatprep.subr.mxu0 0.0
    %686 = vmatpush1.msra.mxu0 %v130
    %687 = vmatprep.subr.mxu0 0.0
    %688 = vmatpush1.msra.mxu0 0.0
    %689 = vmatprep.subr.mxu0 0.0
    %690 = vmatpush1.msra.mxu0 0.0
    %691 = vmatprep.subr.mxu0 0.0
    %692 = vmatpush1.msra.mxu0 0.0
    %693 = vmatprep.subr.mxu0 0.0
    %694 = vmatpush1.msra.mxu0 0.0
    %695 = vmatprep.subr.mxu0 0.0
    %696 = vmatpush1.msra.mxu0 0.0
    %697 = vmatprep.subr.mxu0 0.0
    %698 = vmatpush1.msra.mxu0 0.0
    %699 = vmatprep.subr.mxu0 0.0
    %700 = vmatpush1.msra.mxu0 0.0
    %701 = vmatprep.subr.mxu0 0.0
    %702 = vmatpush1.msra.mxu0 0.0
    %703 = vmatprep.subr.mxu0 0.0
    %704 = vmatpush1.msra.mxu0 0.0
    %705 = vmatprep.subr.mxu0 0.0
    %706 = vmatpush1.msra.mxu0 0.0
    %707 = vmatprep.subr.mxu0 0.0
    %708 = vmatpush1.msra.mxu0 0.0
    %709 = vmatprep.subr.mxu0 0.0
    %710 = vmatpush1.msra.mxu0 0.0
    %711 = vmatprep.subr.mxu0 0.0
    %712 = vmatpush1.msra.mxu0 0.0
    %713 = vmatprep.subr.mxu0 0.0
    %714 = vmatpush1.msra.mxu0 0.0
    %715 = vmatprep.subr.mxu0 0.0
    %716 = vmatpush1.msra.mxu0 0.0
    %717 = vmatprep.subr.mxu0 0.0
    %718 = vmatpush1.msra.mxu0 0.0
    %719 = vmatprep.subr.mxu0 0.0
    %720 = vmatpush1.msra.mxu0 0.0
    %721 = vmatprep.subr.mxu0 0.0
    %722 = vmatpush1.msra.mxu0 0.0
    %723 = vmatprep.subr.mxu0 0.0
    %724 = vmatpush1.msra.mxu0 0.0
    %725 = vmatprep.subr.mxu0 0.0
    %726 = vmatpush1.msra.mxu0 0.0
    %727 = vmatprep.subr.mxu0 0.0
    %728 = vmatpush1.msra.mxu0 0.0
    %729 = vmatprep.subr.mxu0 0.0
    %730 = vmatpush1.msra.mxu0 0.0
    %731 = vmatprep.subr.mxu0 0.0
    %732 = vmatpush1.msra.mxu0 0.0
    %733 = vmatprep.subr.mxu0 0.0
    %734 = vmatpush1.msra.mxu0 0.0
    %735 = vmatprep.subr.mxu0 0.0
    %736 = vmatpush1.msra.mxu0 0.0
    %737 = vmatprep.subr.mxu0 0.0
    %738 = vmatpush1.msra.mxu0 0.0
    %739 = vmatprep.subr.mxu0 0.0
    %740 = vmatpush1.msra.mxu0 0.0
    %741 = vmatprep.subr.mxu0 0.0
    %742 = vmatpush1.msra.mxu0 0.0
    %743 = vmatprep.mubr.f32.mxu0 0.0
    %744 = vmatmul.mubr.f32.gmra.mrb[0].mxu0 %v677
    %v745 = vpop.f32.mrb[0].mxu0
    %v746 = vadd.f32 %v227, %v745
    %v747 = vpop.f32.mrb[0].mxu0
    %748 = vdwg.mxu0
    %v749 = vadd.f32 %v220, %v746
    %v750 = vsub.f32 0.0, %v749
    %v751 = vmul.f32 %v750, 1.442695
    %v752 = vpow.pop %v751
    %v753 = vadd.f32 %v752, 1.0
    %v754 = vrcp.pop %v753
    %v755 = vmul.f32 1.0, %v754
    %757 = vrot.lane.b32.xlu0 %v746, 64
    %v758 = vpop.permute.xlu0 %757
    %v760 = vmul.f32 %v755, %v758
    %762 = vrot.lane.b32.xlu0 %v760, 64
    %v763 = vpop.permute.xlu0 %762
    %v765 = vadd.f32 %v220, %v763
    %v766 = vtanh.pop %v765
    %v767 = vsub.f32 1.0, %v755
    %769 = vrot.lane.b32.xlu0 %v766, 96
    %v770 = vpop.permute.xlu0 %769
    %v772 = vmul.f32 %v767, %v770
    %v774 = vmul.f32 %v755, %v674
    %v775 = vadd.f32 %v772, %v774
    %v776 = vmax.f32 %v775, 0.0
    %778 = vrot.lane.b32.xlu0 %v776, 96
    %v779 = vpop.permute.xlu0 %778
    %781 = vst.msk [vmem:[#allocation2 + $0x8] sm:$0x3] %vm333, %v779
    %783 = vrot.lane.b32.xlu0 %v775, 96
    %v784 = vpop.permute.xlu0 %783
    %v785 = vsel %vm141, %v784, 0
    %787 = vmatprep.subr.mxu0 0.0
    %788 = vmatpush1.msra.mxu0 %v127
    %789 = vmatprep.subr.mxu0 0.0
    %790 = vmatpush1.msra.mxu0 %v128
    %791 = vmatprep.subr.mxu0 0.0
    %792 = vmatpush1.msra.mxu0 %v129
    %793 = vmatprep.subr.mxu0 0.0
    %794 = vmatpush1.msra.mxu0 %v130
    %795 = vmatprep.subr.mxu0 0.0
    %796 = vmatpush1.msra.mxu0 0.0
    %797 = vmatprep.subr.mxu0 0.0
    %798 = vmatpush1.msra.mxu0 0.0
    %799 = vmatprep.subr.mxu0 0.0
    %800 = vmatpush1.msra.mxu0 0.0
    %801 = vmatprep.subr.mxu0 0.0
    %802 = vmatpush1.msra.mxu0 0.0
    %803 = vmatprep.subr.mxu0 0.0
    %804 = vmatpush1.msra.mxu0 0.0
    %805 = vmatprep.subr.mxu0 0.0
    %806 = vmatpush1.msra.mxu0 0.0
    %807 = vmatprep.subr.mxu0 0.0
    %808 = vmatpush1.msra.mxu0 0.0
    %809 = vmatprep.subr.mxu0 0.0
    %810 = vmatpush1.msra.mxu0 0.0
    %811 = vmatprep.subr.mxu0 0.0
    %812 = vmatpush1.msra.mxu0 0.0
    %813 = vmatprep.subr.mxu0 0.0
    %814 = vmatpush1.msra.mxu0 0.0
    %815 = vmatprep.subr.mxu0 0.0
    %816 = vmatpush1.msra.mxu0 0.0
    %817 = vmatprep.subr.mxu0 0.0
    %818 = vmatpush1.msra.mxu0 0.0
    %819 = vmatprep.subr.mxu0 0.0
    %820 = vmatpush1.msra.mxu0 0.0
    %821 = vmatprep.subr.mxu0 0.0
    %822 = vmatpush1.msra.mxu0 0.0
    %823 = vmatprep.subr.mxu0 0.0
    %824 = vmatpush1.msra.mxu0 0.0
    %825 = vmatprep.subr.mxu0 0.0
    %826 = vmatpush1.msra.mxu0 0.0
    %827 = vmatprep.subr.mxu0 0.0
    %828 = vmatpush1.msra.mxu0 0.0
    %829 = vmatprep.subr.mxu0 0.0
    %830 = vmatpush1.msra.mxu0 0.0
    %831 = vmatprep.subr.mxu0 0.0
    %832 = vmatpush1.msra.mxu0 0.0
    %833 = vmatprep.subr.mxu0 0.0
    %834 = vmatpush1.msra.mxu0 0.0
    %835 = vmatprep.subr.mxu0 0.0
    %836 = vmatpush1.msra.mxu0 0.0
    %837 = vmatprep.subr.mxu0 0.0
    %838 = vmatpush1.msra.mxu0 0.0
    %839 = vmatprep.subr.mxu0 0.0
    %840 = vmatpush1.msra.mxu0 0.0
    %841 = vmatprep.subr.mxu0 0.0
    %842 = vmatpush1.msra.mxu0 0.0
    %843 = vmatprep.subr.mxu0 0.0
    %844 = vmatpush1.msra.mxu0 0.0
    %845 = vmatprep.subr.mxu0 0.0
    %846 = vmatpush1.msra.mxu0 0.0
    %847 = vmatprep.subr.mxu0 0.0
    %848 = vmatpush1.msra.mxu0 0.0
    %849 = vmatprep.subr.mxu0 0.0
    %850 = vmatpush1.msra.mxu0 0.0
    %851 = vmatprep.mubr.f32.mxu0 0.0
    %852 = vmatmul.mubr.f32.gmra.mrb[0].mxu0 %v785
    %v853 = vpop.f32.mrb[0].mxu0
    %v854 = vadd.f32 %v227, %v853
    %v855 = vpop.f32.mrb[0].mxu0
    %856 = vdwg.mxu0
    %v858 = vrot.slane %v854, 6
    %v860 = vadd.f32 %v220, %v858
    %v861 = vsub.f32 0.0, %v860
    %v862 = vmul.f32 %v861, 1.442695
    %v863 = vpow.pop %v862
    %v864 = vadd.f32 %v863, 1.0
    %v865 = vrcp.pop %v864
    %v866 = vmul.f32 1.0, %v865
    %867 = vrot.lane.b32.xlu0 %v858, 64
    %v868 = vpop.permute.xlu0 %867
    %v870 = vmul.f32 %v866, %v868
    %872 = vrot.lane.b32.xlu0 %v870, 64
    %v873 = vpop.permute.xlu0 %872
    %v875 = vadd.f32 %v220, %v873
    %v876 = vtanh.pop %v875
    %v877 = vsub.f32 1.0, %v866
    %879 = vrot.lane.b32.xlu0 %v876, 96
    %v880 = vpop.permute.xlu0 %879
    %v882 = vmul.f32 %v877, %v880
    %v883 = vrot.slane %v775, 6
    %v885 = vmul.f32 %v866, %v883
    %v886 = vadd.f32 %v882, %v885
    %v887 = vmax.f32 %v886, 0.0
    %889 = vrot.lane.b32.xlu0 %v887, 96
    %v890 = vpop.permute.xlu0 %889
    %892 = vst.msk [vmem:[#allocation2 + $0x8] sm:$0xc] %vm445, %v890
    %v894 = vrot.slane %v886, 2
    %895 = vrot.lane.b32.xlu0 %v894, 96
    %v896 = vpop.permute.xlu0 %895
    %v897 = vsel %vm141, %v896, 0
    %899 = vmatprep.subr.mxu0 0.0
    %900 = vmatpush1.msra.mxu0 %v127
    %901 = vmatprep.subr.mxu0 0.0
    %902 = vmatpush1.msra.mxu0 %v128
    %903 = vmatprep.subr.mxu0 0.0
    %904 = vmatpush1.msra.mxu0 %v129
    %905 = vmatprep.subr.mxu0 0.0
    %906 = vmatpush1.msra.mxu0 %v130
    %907 = vmatprep.subr.mxu0 0.0
    %908 = vmatpush1.msra.mxu0 0.0
    %909 = vmatprep.subr.mxu0 0.0
    %910 = vmatpush1.msra.mxu0 0.0
    %911 = vmatprep.subr.mxu0 0.0
    %912 = vmatpush1.msra.mxu0 0.0
    %913 = vmatprep.subr.mxu0 0.0
    %914 = vmatpush1.msra.mxu0 0.0
    %915 = vmatprep.subr.mxu0 0.0
    %916 = vmatpush1.msra.mxu0 0.0
    %917 = vmatprep.subr.mxu0 0.0
    %918 = vmatpush1.msra.mxu0 0.0
    %919 = vmatprep.subr.mxu0 0.0
    %920 = vmatpush1.msra.mxu0 0.0
    %921 = vmatprep.subr.mxu0 0.0
    %922 = vmatpush1.msra.mxu0 0.0
    %923 = vmatprep.subr.mxu0 0.0
    %924 = vmatpush1.msra.mxu0 0.0
    %925 = vmatprep.subr.mxu0 0.0
    %926 = vmatpush1.msra.mxu0 0.0
    %927 = vmatprep.subr.mxu0 0.0
    %928 = vmatpush1.msra.mxu0 0.0
    %929 = vmatprep.subr.mxu0 0.0
    %930 = vmatpush1.msra.mxu0 0.0
    %931 = vmatprep.subr.mxu0 0.0
    %932 = vmatpush1.msra.mxu0 0.0
    %933 = vmatprep.subr.mxu0 0.0
    %934 = vmatpush1.msra.mxu0 0.0
    %935 = vmatprep.subr.mxu0 0.0
    %936 = vmatpush1.msra.mxu0 0.0
    %937 = vmatprep.subr.mxu0 0.0
    %938 = vmatpush1.msra.mxu0 0.0
    %939 = vmatprep.subr.mxu0 0.0
    %940 = vmatpush1.msra.mxu0 0.0
    %941 = vmatprep.subr.mxu0 0.0
    %942 = vmatpush1.msra.mxu0 0.0
    %943 = vmatprep.subr.mxu0 0.0
    %944 = vmatpush1.msra.mxu0 0.0
    %945 = vmatprep.subr.mxu0 0.0
    %946 = vmatpush1.msra.mxu0 0.0
    %947 = vmatprep.subr.mxu0 0.0
    %948 = vmatpush1.msra.mxu0 0.0
    %949 = vmatprep.subr.mxu0 0.0
    %950 = vmatpush1.msra.mxu0 0.0
    %951 = vmatprep.subr.mxu0 0.0
    %952 = vmatpush1.msra.mxu0 0.0
    %953 = vmatprep.subr.mxu0 0.0
    %954 = vmatpush1.msra.mxu0 0.0
    %955 = vmatprep.subr.mxu0 0.0
    %956 = vmatpush1.msra.mxu0 0.0
    %957 = vmatprep.subr.mxu0 0.0
    %958 = vmatpush1.msra.mxu0 0.0
    %959 = vmatprep.subr.mxu0 0.0
    %960 = vmatpush1.msra.mxu0 0.0
    %961 = vmatprep.subr.mxu0 0.0
    %962 = vmatpush1.msra.mxu0 0.0
    %963 = vmatprep.mubr.f32.mxu0 0.0
    %964 = vmatmul.mubr.f32.gmra.mrb[0].mxu0 %v897
    %v965 = vpop.f32.mrb[0].mxu0
    %v966 = vadd.f32 %v227, %v965
    %v967 = vpop.f32.mrb[0].mxu0
    %968 = vdwg.mxu0
    %v970 = vrot.slane %v966, 4
    %v972 = vadd.f32 %v220, %v970
    %v973 = vsub.f32 0.0, %v972
    %v974 = vmul.f32 %v973, 1.442695
    %v975 = vpow.pop %v974
    %v976 = vadd.f32 %v975, 1.0
    %v977 = vrcp.pop %v976
    %v978 = vmul.f32 1.0, %v977
    %979 = vrot.lane.b32.xlu0 %v970, 64
    %v980 = vpop.permute.xlu0 %979
    %v982 = vmul.f32 %v978, %v980
    %984 = vrot.lane.b32.xlu0 %v982, 64
    %v985 = vpop.permute.xlu0 %984
    %v987 = vadd.f32 %v220, %v985
    %v988 = vtanh.pop %v987
    %v989 = vsub.f32 1.0, %v978
    %991 = vrot.lane.b32.xlu0 %v988, 96
    %v992 = vpop.permute.xlu0 %991
    %v994 = vmul.f32 %v989, %v992
    %v995 = vrot.slane %v886, 6
    %v997 = vmul.f32 %v978, %v995
    %v998 = vadd.f32 %v994, %v997
    %v999 = vmax.f32 %v998, 0.0
    %1001 = vrot.lane.b32.xlu0 %v999, 96
    %v1002 = vpop.permute.xlu0 %1001
    %1004 = vst.msk [vmem:[#allocation2 + $0x8] sm:$0x30] %vm558, %v1002
    %v1006 = vrot.slane %v998, 4
    %1007 = vrot.lane.b32.xlu0 %v1006, 96
    %v1008 = vpop.permute.xlu0 %1007
    %v1009 = vsel %vm141, %v1008, 0
    %1011 = vmatprep.subr.mxu0 0.0
    %1012 = vmatpush1.msra.mxu0 %v127
    %1013 = vmatprep.subr.mxu0 0.0
    %1014 = vmatpush1.msra.mxu0 %v128
    %1015 = vmatprep.subr.mxu0 0.0
    %1016 = vmatpush1.msra.mxu0 %v129
    %1017 = vmatprep.subr.mxu0 0.0
    %1018 = vmatpush1.msra.mxu0 %v130
    %1019 = vmatprep.subr.mxu0 0.0
    %1020 = vmatpush1.msra.mxu0 0.0
    %1021 = vmatprep.subr.mxu0 0.0
    %1022 = vmatpush1.msra.mxu0 0.0
    %1023 = vmatprep.subr.mxu0 0.0
    %1024 = vmatpush1.msra.mxu0 0.0
    %1025 = vmatprep.subr.mxu0 0.0
    %1026 = vmatpush1.msra.mxu0 0.0
    %1027 = vmatprep.subr.mxu0 0.0
    %1028 = vmatpush1.msra.mxu0 0.0
    %1029 = vmatprep.subr.mxu0 0.0
    %1030 = vmatpush1.msra.mxu0 0.0
    %1031 = vmatprep.subr.mxu0 0.0
    %1032 = vmatpush1.msra.mxu0 0.0
    %1033 = vmatprep.subr.mxu0 0.0
    %1034 = vmatpush1.msra.mxu0 0.0
    %1035 = vmatprep.subr.mxu0 0.0
    %1036 = vmatpush1.msra.mxu0 0.0
    %1037 = vmatprep.subr.mxu0 0.0
    %1038 = vmatpush1.msra.mxu0 0.0
    %1039 = vmatprep.subr.mxu0 0.0
    %1040 = vmatpush1.msra.mxu0 0.0
    %1041 = vmatprep.subr.mxu0 0.0
    %1042 = vmatpush1.msra.mxu0 0.0
    %1043 = vmatprep.subr.mxu0 0.0
    %1044 = vmatpush1.msra.mxu0 0.0
    %1045 = vmatprep.subr.mxu0 0.0
    %1046 = vmatpush1.msra.mxu0 0.0
    %1047 = vmatprep.subr.mxu0 0.0
    %1048 = vmatpush1.msra.mxu0 0.0
    %1049 = vmatprep.subr.mxu0 0.0
    %1050 = vmatpush1.msra.mxu0 0.0
    %1051 = vmatprep.subr.mxu0 0.0
    %1052 = vmatpush1.msra.mxu0 0.0
    %1053 = vmatprep.subr.mxu0 0.0
    %1054 = vmatpush1.msra.mxu0 0.0
    %1055 = vmatprep.subr.mxu0 0.0
    %1056 = vmatpush1.msra.mxu0 0.0
    %1057 = vmatprep.subr.mxu0 0.0
    %1058 = vmatpush1.msra.mxu0 0.0
    %1059 = vmatprep.subr.mxu0 0.0
    %1060 = vmatpush1.msra.mxu0 0.0
    %1061 = vmatprep.subr.mxu0 0.0
    %1062 = vmatpush1.msra.mxu0 0.0
    %1063 = vmatprep.subr.mxu0 0.0
    %1064 = vmatpush1.msra.mxu0 0.0
    %1065 = vmatprep.subr.mxu0 0.0
    %1066 = vmatpush1.msra.mxu0 0.0
    %1067 = vmatprep.subr.mxu0 0.0
    %1068 = vmatpush1.msra.mxu0 0.0
    %1069 = vmatprep.subr.mxu0 0.0
    %1070 = vmatpush1.msra.mxu0 0.0
    %1071 = vmatprep.subr.mxu0 0.0
    %1072 = vmatpush1.msra.mxu0 0.0
    %1073 = vmatprep.subr.mxu0 0.0
    %1074 = vmatpush1.msra.mxu0 0.0
    %1075 = vmatprep.mubr.f32.mxu0 0.0
    %1076 = vmatmul.mubr.f32.gmra.mrb[0].mxu0 %v1009
    %v1077 = vpop.f32.mrb[0].mxu0
    %v1078 = vadd.f32 %v227, %v1077
    %v1079 = vpop.f32.mrb[0].mxu0
    %1080 = vdwg.mxu0
    %v1082 = vrot.slane %v1078, 2
    %v1084 = vadd.f32 %v220, %v1082
    %v1085 = vsub.f32 0.0, %v1084
    %v1086 = vmul.f32 %v1085, 1.442695
    %v1087 = vpow.pop %v1086
    %v1088 = vadd.f32 %v1087, 1.0
    %v1089 = vrcp.pop %v1088
    %v1090 = vmul.f32 1.0, %v1089
    %1091 = vrot.lane.b32.xlu0 %v1082, 64
    %v1092 = vpop.permute.xlu0 %1091
    %v1094 = vmul.f32 %v1090, %v1092
    %1096 = vrot.lane.b32.xlu0 %v1094, 64
    %v1097 = vpop.permute.xlu0 %1096
    %v1099 = vadd.f32 %v220, %v1097
    %v1100 = vtanh.pop %v1099
    %v1101 = vsub.f32 1.0, %v1090
    %1103 = vrot.lane.b32.xlu0 %v1100, 96
    %v1104 = vpop.permute.xlu0 %1103
    %v1106 = vmul.f32 %v1101, %v1104
    %v1107 = vrot.slane %v998, 6
    %v1109 = vmul.f32 %v1090, %v1107
    %v1110 = vadd.f32 %v1106, %v1109
    %v1111 = vmax.f32 %v1110, 0.0
    %1113 = vrot.lane.b32.xlu0 %v1111, 96
    %v1114 = vpop.permute.xlu0 %1113
    %1116 = vst.msk [vmem:[#allocation2 + $0x8] sm:$0xc0] %vm671, %v1114
    %v1117 = vld [vmem:[#allocation8] sm:$0xff]
    %v1118 = vld [vmem:[#allocation8 + $0x8] sm:$0xff]
    %v1119 = vld [vmem:[#allocation8 + $0x10] sm:$0xff]
    %v1120 = vld [vmem:[#allocation8 + $0x18] sm:$0xff]
    %v1121 = vld [vmem:[#allocation9] sm:$0xff]
    %v1122 = vld [vmem:[#allocation9 + $0x8] sm:$0xff]
    %v1123 = vld [vmem:[#allocation9 + $0x10] sm:$0xff]
    %v1124 = vld [vmem:[#allocation9 + $0x18] sm:$0xff]
    %v1125 = vld [vmem:[#allocation11] sm:$0x1]
    %v1126 = vld [vmem:[#allocation12] sm:$0x1]
    %v1127 = vld [vmem:[#allocation2] sm:$0xff]
    %v1128 = vld [vmem:[#allocation2 + $0x8] sm:$0xff]
    %v1130 = vlaneseq
    %v1131 = vshrl.u32 %v1130, 7
    %v1132 = vsub.s32 0, %v1131
    %v1133 = vrot.slane %v1125, %v1132
    %v1136 = vsel %vm141, %v1127, 0
    %v1139 = vsel %vm141, %v1128, 0
    %1141 = vmatprep.subr.mxu0 0.0
    %1142 = vmatpush1.msra.mxu0 %v1117
    %1143 = vmatprep.subr.mxu0 0.0
    %1144 = vmatpush1.msra.mxu0 %v1118
    %1145 = vmatprep.subr.mxu0 0.0
    %1146 = vmatpush1.msra.mxu0 %v1119
    %1147 = vmatprep.subr.mxu0 0.0
    %1148 = vmatpush1.msra.mxu0 %v1120
    %1149 = vmatprep.subr.mxu0 0.0
    %1150 = vmatpush1.msra.mxu0 0.0
    %1151 = vmatprep.subr.mxu0 0.0
    %1152 = vmatpush1.msra.mxu0 0.0
    %1153 = vmatprep.subr.mxu0 0.0
    %1154 = vmatpush1.msra.mxu0 0.0
    %1155 = vmatprep.subr.mxu0 0.0
    %1156 = vmatpush1.msra.mxu0 0.0
    %1157 = vmatprep.subr.mxu0 0.0
    %1158 = vmatpush1.msra.mxu0 0.0
    %1159 = vmatprep.subr.mxu0 0.0
    %1160 = vmatpush1.msra.mxu0 0.0
    %1161 = vmatprep.subr.mxu0 0.0
    %1162 = vmatpush1.msra.mxu0 0.0
    %1163 = vmatprep.subr.mxu0 0.0
    %1164 = vmatpush1.msra.mxu0 0.0
    %1165 = vmatprep.subr.mxu0 0.0
    %1166 = vmatpush1.msra.mxu0 0.0
    %1167 = vmatprep.subr.mxu0 0.0
    %1168 = vmatpush1.msra.mxu0 0.0
    %1169 = vmatprep.subr.mxu0 0.0
    %1170 = vmatpush1.msra.mxu0 0.0
    %1171 = vmatprep.subr.mxu0 0.0
    %1172 = vmatpush1.msra.mxu0 0.0
    %1173 = vmatprep.subr.mxu0 0.0
    %1174 = vmatpush1.msra.mxu0 0.0
    %1175 = vmatprep.subr.mxu0 0.0
    %1176 = vmatpush1.msra.mxu0 0.0
    %1177 = vmatprep.subr.mxu0 0.0
    %1178 = vmatpush1.msra.mxu0 0.0
    %1179 = vmatprep.subr.mxu0 0.0
    %1180 = vmatpush1.msra.mxu0 0.0
    %1181 = vmatprep.subr.mxu0 0.0
    %1182 = vmatpush1.msra.mxu0 0.0
    %1183 = vmatprep.subr.mxu0 0.0
    %1184 = vmatpush1.msra.mxu0 0.0
    %1185 = vmatprep.subr.mxu0 0.0
    %1186 = vmatpush1.msra.mxu0 0.0
    %1187 = vmatprep.subr.mxu0 0.0
    %1188 = vmatpush1.msra.mxu0 0.0
    %1189 = vmatprep.subr.mxu0 0.0
    %1190 = vmatpush1.msra.mxu0 0.0
    %1191 = vmatprep.subr.mxu0 0.0
    %1192 = vmatpush1.msra.mxu0 0.0
    %1193 = vmatprep.subr.mxu0 0.0
    %1194 = vmatpush1.msra.mxu0 0.0
    %1195 = vmatprep.subr.mxu0 0.0
    %1196 = vmatpush1.msra.mxu0 0.0
    %1197 = vmatprep.subr.mxu0 0.0
    %1198 = vmatpush1.msra.mxu0 0.0
    %1199 = vmatprep.subr.mxu0 0.0
    %1200 = vmatpush1.msra.mxu0 0.0
    %1201 = vmatprep.subr.mxu0 0.0
    %1202 = vmatpush1.msra.mxu0 0.0
    %1203 = vmatprep.subr.mxu0 0.0
    %1204 = vmatpush1.msra.mxu0 0.0
    %1205 = vmatprep.mubr.f32.mxu0 0.0
    %1206 = vmatmul.mubr.f32.gmra.mrb[0].mxu0 %v1136
    %v1207 = vpop.f32.mrb[0].mxu0
    %v1208 = vadd.f32 %v1133, %v1207
    %v1209 = vpop.f32.mrb[0].mxu0
    %1210 = vmatprep.mubr.f32.mxu0 0.0
    %1211 = vmatmul.mubr.f32.gmra.mrb[0].mxu0 %v1139
    %v1212 = vpop.f32.mrb[0].mxu0
    %v1213 = vadd.f32 %v1133, %v1212
    %v1214 = vpop.f32.mrb[0].mxu0
    %1215 = vdwg.mxu0
    %v1217 = vlaneseq
    %v1218 = vshrl.u32 %v1217, 7
    %v1219 = vsub.s32 0, %v1218
    %v1220 = vrot.slane %v1126, %v1219
    %1222 = vmatprep.subr.mxu0 0.0
    %1223 = vmatpush1.msra.mxu0 %v1121
    %1224 = vmatprep.subr.mxu0 0.0
    %1225 = vmatpush1.msra.mxu0 %v1122
    %1226 = vmatprep.subr.mxu0 0.0
    %1227 = vmatpush1.msra.mxu0 %v1123
    %1228 = vmatprep.subr.mxu0 0.0
    %1229 = vmatpush1.msra.mxu0 %v1124
    %1230 = vmatprep.subr.mxu0 0.0
    %1231 = vmatpush1.msra.mxu0 0.0
    %1232 = vmatprep.subr.mxu0 0.0
    %1233 = vmatpush1.msra.mxu0 0.0
    %1234 = vmatprep.subr.mxu0 0.0
    %1235 = vmatpush1.msra.mxu0 0.0
    %1236 = vmatprep.subr.mxu0 0.0
    %1237 = vmatpush1.msra.mxu0 0.0
    %1238 = vmatprep.subr.mxu0 0.0
    %1239 = vmatpush1.msra.mxu0 0.0
    %1240 = vmatprep.subr.mxu0 0.0
    %1241 = vmatpush1.msra.mxu0 0.0
    %1242 = vmatprep.subr.mxu0 0.0
    %1243 = vmatpush1.msra.mxu0 0.0
    %1244 = vmatprep.subr.mxu0 0.0
    %1245 = vmatpush1.msra.mxu0 0.0
    %1246 = vmatprep.subr.mxu0 0.0
    %1247 = vmatpush1.msra.mxu0 0.0
    %1248 = vmatprep.subr.mxu0 0.0
    %1249 = vmatpush1.msra.mxu0 0.0
    %1250 = vmatprep.subr.mxu0 0.0
    %1251 = vmatpush1.msra.mxu0 0.0
    %1252 = vmatprep.subr.mxu0 0.0
    %1253 = vmatpush1.msra.mxu0 0.0
    %1254 = vmatprep.subr.mxu0 0.0
    %1255 = vmatpush1.msra.mxu0 0.0
    %1256 = vmatprep.subr.mxu0 0.0
    %1257 = vmatpush1.msra.mxu0 0.0
    %1258 = vmatprep.subr.mxu0 0.0
    %1259 = vmatpush1.msra.mxu0 0.0
    %1260 = vmatprep.subr.mxu0 0.0
    %1261 = vmatpush1.msra.mxu0 0.0
    %1262 = vmatprep.subr.mxu0 0.0
    %1263 = vmatpush1.msra.mxu0 0.0
    %1264 = vmatprep.subr.mxu0 0.0
    %1265 = vmatpush1.msra.mxu0 0.0
    %1266 = vmatprep.subr.mxu0 0.0
    %1267 = vmatpush1.msra.mxu0 0.0
    %1268 = vmatprep.subr.mxu0 0.0
    %1269 = vmatpush1.msra.mxu0 0.0
    %1270 = vmatprep.subr.mxu0 0.0
    %1271 = vmatpush1.msra.mxu0 0.0
    %1272 = vmatprep.subr.mxu0 0.0
    %1273 = vmatpush1.msra.mxu0 0.0
    %1274 = vmatprep.subr.mxu0 0.0
    %1275 = vmatpush1.msra.mxu0 0.0
    %1276 = vmatprep.subr.mxu0 0.0
    %1277 = vmatpush1.msra.mxu0 0.0
    %1278 = vmatprep.subr.mxu0 0.0
    %1279 = vmatpush1.msra.mxu0 0.0
    %1280 = vmatprep.subr.mxu0 0.0
    %1281 = vmatpush1.msra.mxu0 0.0
    %1282 = vmatprep.subr.mxu0 0.0
    %1283 = vmatpush1.msra.mxu0 0.0
    %1284 = vmatprep.subr.mxu0 0.0
    %1285 = vmatpush1.msra.mxu0 0.0
    %1286 = vmatprep.mubr.f32.mxu0 0.0
    %1287 = vmatmul.mubr.f32.gmra.mrb[0].mxu0 %v230
    %v1288 = vpop.f32.mrb[0].mxu0
    %v1289 = vadd.f32 %v1220, %v1288
    %v1290 = vpop.f32.mrb[0].mxu0
    %1291 = vdwg.mxu0
    %v1292 = vadd.f32 %v1208, %v1289
    %v1293 = vsub.f32 0.0, %v1292
    %v1294 = vmul.f32 %v1293, 1.442695
    %v1295 = vpow.pop %v1294
    %v1296 = vadd.f32 %v1295, 1.0
    %v1297 = vrcp.pop %v1296
    %v1298 = vmul.f32 1.0, %v1297
    %1300 = vrot.lane.b32.xlu0 %v1289, 64
    %v1301 = vpop.permute.xlu0 %1300
    %v1303 = vmul.f32 %v1298, %v1301
    %1305 = vrot.lane.b32.xlu0 %v1303, 64
    %v1306 = vpop.permute.xlu0 %1305
    %v1308 = vadd.f32 %v1208, %v1306
    %v1309 = vtanh.pop %v1308
    %v1310 = vsub.f32 1.0, %v1298
    %1312 = vrot.lane.b32.xlu0 %v1309, 96
    %v1313 = vpop.permute.xlu0 %1312
    %v1315 = vmul.f32 %v1310, %v1313
    %v1316 = vmul.f32 %v1298, 0.0
    %v1317 = vadd.f32 %v1315, %v1316
    %1319 = vrot.lane.b32.xlu0 %v1317, 96
    %v1320 = vpop.permute.xlu0 %1319
    %v1321 = vsel %vm141, %v1320, 0
    %1323 = vmatprep.subr.mxu0 0.0
    %1324 = vmatpush1.msra.mxu0 %v1121
    %1325 = vmatprep.subr.mxu0 0.0
    %1326 = vmatpush1.msra.mxu0 %v1122
    %1327 = vmatprep.subr.mxu0 0.0
    %1328 = vmatpush1.msra.mxu0 %v1123
    %1329 = vmatprep.subr.mxu0 0.0
    %1330 = vmatpush1.msra.mxu0 %v1124
    %1331 = vmatprep.subr.mxu0 0.0
    %1332 = vmatpush1.msra.mxu0 0.0
    %1333 = vmatprep.subr.mxu0 0.0
    %1334 = vmatpush1.msra.mxu0 0.0
    %1335 = vmatprep.subr.mxu0 0.0
    %1336 = vmatpush1.msra.mxu0 0.0
    %1337 = vmatprep.subr.mxu0 0.0
    %1338 = vmatpush1.msra.mxu0 0.0
    %1339 = vmatprep.subr.mxu0 0.0
    %1340 = vmatpush1.msra.mxu0 0.0
    %1341 = vmatprep.subr.mxu0 0.0
    %1342 = vmatpush1.msra.mxu0 0.0
    %1343 = vmatprep.subr.mxu0 0.0
    %1344 = vmatpush1.msra.mxu0 0.0
    %1345 = vmatprep.subr.mxu0 0.0
    %1346 = vmatpush1.msra.mxu0 0.0
    %1347 = vmatprep.subr.mxu0 0.0
    %1348 = vmatpush1.msra.mxu0 0.0
    %1349 = vmatprep.subr.mxu0 0.0
    %1350 = vmatpush1.msra.mxu0 0.0
    %1351 = vmatprep.subr.mxu0 0.0
    %1352 = vmatpush1.msra.mxu0 0.0
    %1353 = vmatprep.subr.mxu0 0.0
    %1354 = vmatpush1.msra.mxu0 0.0
    %1355 = vmatprep.subr.mxu0 0.0
    %1356 = vmatpush1.msra.mxu0 0.0
    %1357 = vmatprep.subr.mxu0 0.0
    %1358 = vmatpush1.msra.mxu0 0.0
    %1359 = vmatprep.subr.mxu0 0.0
    %1360 = vmatpush1.msra.mxu0 0.0
    %1361 = vmatprep.subr.mxu0 0.0
    %1362 = vmatpush1.msra.mxu0 0.0
    %1363 = vmatprep.subr.mxu0 0.0
    %1364 = vmatpush1.msra.mxu0 0.0
    %1365 = vmatprep.subr.mxu0 0.0
    %1366 = vmatpush1.msra.mxu0 0.0
    %1367 = vmatprep.subr.mxu0 0.0
    %1368 = vmatpush1.msra.mxu0 0.0
    %1369 = vmatprep.subr.mxu0 0.0
    %1370 = vmatpush1.msra.mxu0 0.0
    %1371 = vmatprep.subr.mxu0 0.0
    %1372 = vmatpush1.msra.mxu0 0.0
    %1373 = vmatprep.subr.mxu0 0.0
    %1374 = vmatpush1.msra.mxu0 0.0
    %1375 = vmatprep.subr.mxu0 0.0
    %1376 = vmatpush1.msra.mxu0 0.0
    %1377 = vmatprep.subr.mxu0 0.0
    %1378 = vmatpush1.msra.mxu0 0.0
    %1379 = vmatprep.subr.mxu0 0.0
    %1380 = vmatpush1.msra.mxu0 0.0
    %1381 = vmatprep.subr.mxu0 0.0
    %1382 = vmatpush1.msra.mxu0 0.0
    %1383 = vmatprep.subr.mxu0 0.0
    %1384 = vmatpush1.msra.mxu0 0.0
    %1385 = vmatprep.subr.mxu0 0.0
    %1386 = vmatpush1.msra.mxu0 0.0
    %1387 = vmatprep.mubr.f32.mxu0 0.0
    %1388 = vmatmul.mubr.f32.gmra.mrb[0].mxu0 %v1321
    %v1389 = vpop.f32.mrb[0].mxu0
    %v1390 = vadd.f32 %v1220, %v1389
    %v1391 = vpop.f32.mrb[0].mxu0
    %1392 = vdwg.mxu0
    %v1394 = vrot.slane %v1390, 6
    %v1396 = vadd.f32 %v1208, %v1394
    %v1397 = vsub.f32 0.0, %v1396
    %v1398 = vmul.f32 %v1397, 1.442695
    %v1399 = vpow.pop %v1398
    %v1400 = vadd.f32 %v1399, 1.0
    %v1401 = vrcp.pop %v1400
    %v1402 = vmul.f32 1.0, %v1401
    %1403 = vrot.lane.b32.xlu0 %v1394, 64
    %v1404 = vpop.permute.xlu0 %1403
    %v1406 = vmul.f32 %v1402, %v1404
    %1408 = vrot.lane.b32.xlu0 %v1406, 64
    %v1409 = vpop.permute.xlu0 %1408
    %v1411 = vadd.f32 %v1208, %v1409
    %v1412 = vtanh.pop %v1411
    %v1413 = vsub.f32 1.0, %v1402
    %1415 = vrot.lane.b32.xlu0 %v1412, 96
    %v1416 = vpop.permute.xlu0 %1415
    %v1418 = vmul.f32 %v1413, %v1416
    %v1419 = vrot.slane %v1317, 6
    %v1421 = vmul.f32 %v1402, %v1419
    %v1422 = vadd.f32 %v1418, %v1421
    %v1424 = vrot.slane %v1422, 2
    %1425 = vrot.lane.b32.xlu0 %v1424, 96
    %v1426 = vpop.permute.xlu0 %1425
    %v1427 = vsel %vm141, %v1426, 0
    %1429 = vmatprep.subr.mxu0 0.0
    %1430 = vmatpush1.msra.mxu0 %v1121
    %1431 = vmatprep.subr.mxu0 0.0
    %1432 = vmatpush1.msra.mxu0 %v1122
    %1433 = vmatprep.subr.mxu0 0.0
    %1434 = vmatpush1.msra.mxu0 %v1123
    %1435 = vmatprep.subr.mxu0 0.0
    %1436 = vmatpush1.msra.mxu0 %v1124
    %1437 = vmatprep.subr.mxu0 0.0
    %1438 = vmatpush1.msra.mxu0 0.0
    %1439 = vmatprep.subr.mxu0 0.0
    %1440 = vmatpush1.msra.mxu0 0.0
    %1441 = vmatprep.subr.mxu0 0.0
    %1442 = vmatpush1.msra.mxu0 0.0
    %1443 = vmatprep.subr.mxu0 0.0
    %1444 = vmatpush1.msra.mxu0 0.0
    %1445 = vmatprep.subr.mxu0 0.0
    %1446 = vmatpush1.msra.mxu0 0.0
    %1447 = vmatprep.subr.mxu0 0.0
    %1448 = vmatpush1.msra.mxu0 0.0
    %1449 = vmatprep.subr.mxu0 0.0
    %1450 = vmatpush1.msra.mxu0 0.0
    %1451 = vmatprep.subr.mxu0 0.0
    %1452 = vmatpush1.msra.mxu0 0.0
    %1453 = vmatprep.subr.mxu0 0.0
    %1454 = vmatpush1.msra.mxu0 0.0
    %1455 = vmatprep.subr.mxu0 0.0
    %1456 = vmatpush1.msra.mxu0 0.0
    %1457 = vmatprep.subr.mxu0 0.0
    %1458 = vmatpush1.msra.mxu0 0.0
    %1459 = vmatprep.subr.mxu0 0.0
    %1460 = vmatpush1.msra.mxu0 0.0
    %1461 = vmatprep.subr.mxu0 0.0
    %1462 = vmatpush1.msra.mxu0 0.0
    %1463 = vmatprep.subr.mxu0 0.0
    %1464 = vmatpush1.msra.mxu0 0.0
    %1465 = vmatprep.subr.mxu0 0.0
    %1466 = vmatpush1.msra.mxu0 0.0
    %1467 = vmatprep.subr.mxu0 0.0
    %1468 = vmatpush1.msra.mxu0 0.0
    %1469 = vmatprep.subr.mxu0 0.0
    %1470 = vmatpush1.msra.mxu0 0.0
    %1471 = vmatprep.subr.mxu0 0.0
    %1472 = vmatpush1.msra.mxu0 0.0
    %1473 = vmatprep.subr.mxu0 0.0
    %1474 = vmatpush1.msra.mxu0 0.0
    %1475 = vmatprep.subr.mxu0 0.0
    %1476 = vmatpush1.msra.mxu0 0.0
    %1477 = vmatprep.subr.mxu0 0.0
    %1478 = vmatpush1.msra.mxu0 0.0
    %1479 = vmatprep.subr.mxu0 0.0
    %1480 = vmatpush1.msra.mxu0 0.0
    %1481 = vmatprep.subr.mxu0 0.0
    %1482 = vmatpush1.msra.mxu0 0.0
    %1483 = vmatprep.subr.mxu0 0.0
    %1484 = vmatpush1.msra.mxu0 0.0
    %1485 = vmatprep.subr.mxu0 0.0
    %1486 = vmatpush1.msra.mxu0 0.0
    %1487 = vmatprep.subr.mxu0 0.0
    %1488 = vmatpush1.msra.mxu0 0.0
    %1489 = vmatprep.subr.mxu0 0.0
    %1490 = vmatpush1.msra.mxu0 0.0
    %1491 = vmatprep.subr.mxu0 0.0
    %1492 = vmatpush1.msra.mxu0 0.0
    %1493 = vmatprep.mubr.f32.mxu0 0.0
    %1494 = vmatmul.mubr.f32.gmra.mrb[0].mxu0 %v1427
    %v1495 = vpop.f32.mrb[0].mxu0
    %v1496 = vadd.f32 %v1220, %v1495
    %v1497 = vpop.f32.mrb[0].mxu0
    %1498 = vdwg.mxu0
    %v1500 = vrot.slane %v1496, 4
    %v1502 = vadd.f32 %v1208, %v1500
    %v1503 = vsub.f32 0.0, %v1502
    %v1504 = vmul.f32 %v1503, 1.442695
    %v1505 = vpow.pop %v1504
    %v1506 = vadd.f32 %v1505, 1.0
    %v1507 = vrcp.pop %v1506
    %v1508 = vmul.f32 1.0, %v1507
    %1509 = vrot.lane.b32.xlu0 %v1500, 64
    %v1510 = vpop.permute.xlu0 %1509
    %v1512 = vmul.f32 %v1508, %v1510
    %1514 = vrot.lane.b32.xlu0 %v1512, 64
    %v1515 = vpop.permute.xlu0 %1514
    %v1517 = vadd.f32 %v1208, %v1515
    %v1518 = vtanh.pop %v1517
    %v1519 = vsub.f32 1.0, %v1508
    %1521 = vrot.lane.b32.xlu0 %v1518, 96
    %v1522 = vpop.permute.xlu0 %1521
    %v1524 = vmul.f32 %v1519, %v1522
    %v1525 = vrot.slane %v1422, 6
    %v1527 = vmul.f32 %v1508, %v1525
    %v1528 = vadd.f32 %v1524, %v1527
    %v1530 = vrot.slane %v1528, 4
    %1531 = vrot.lane.b32.xlu0 %v1530, 96
    %v1532 = vpop.permute.xlu0 %1531
    %v1533 = vsel %vm141, %v1532, 0
    %1535 = vmatprep.subr.mxu0 0.0
    %1536 = vmatpush1.msra.mxu0 %v1121
    %1537 = vmatprep.subr.mxu0 0.0
    %1538 = vmatpush1.msra.mxu0 %v1122
    %1539 = vmatprep.subr.mxu0 0.0
    %1540 = vmatpush1.msra.mxu0 %v1123
    %1541 = vmatprep.subr.mxu0 0.0
    %1542 = vmatpush1.msra.mxu0 %v1124
    %1543 = vmatprep.subr.mxu0 0.0
    %1544 = vmatpush1.msra.mxu0 0.0
    %1545 = vmatprep.subr.mxu0 0.0
    %1546 = vmatpush1.msra.mxu0 0.0
    %1547 = vmatprep.subr.mxu0 0.0
    %1548 = vmatpush1.msra.mxu0 0.0
    %1549 = vmatprep.subr.mxu0 0.0
    %1550 = vmatpush1.msra.mxu0 0.0
    %1551 = vmatprep.subr.mxu0 0.0
    %1552 = vmatpush1.msra.mxu0 0.0
    %1553 = vmatprep.subr.mxu0 0.0
    %1554 = vmatpush1.msra.mxu0 0.0
    %1555 = vmatprep.subr.mxu0 0.0
    %1556 = vmatpush1.msra.mxu0 0.0
    %1557 = vmatprep.subr.mxu0 0.0
    %1558 = vmatpush1.msra.mxu0 0.0
    %1559 = vmatprep.subr.mxu0 0.0
    %1560 = vmatpush1.msra.mxu0 0.0
    %1561 = vmatprep.subr.mxu0 0.0
    %1562 = vmatpush1.msra.mxu0 0.0
    %1563 = vmatprep.subr.mxu0 0.0
    %1564 = vmatpush1.msra.mxu0 0.0
    %1565 = vmatprep.subr.mxu0 0.0
    %1566 = vmatpush1.msra.mxu0 0.0
    %1567 = vmatprep.subr.mxu0 0.0
    %1568 = vmatpush1.msra.mxu0 0.0
    %1569 = vmatprep.subr.mxu0 0.0
    %1570 = vmatpush1.msra.mxu0 0.0
    %1571 = vmatprep.subr.mxu0 0.0
    %1572 = vmatpush1.msra.mxu0 0.0
    %1573 = vmatprep.subr.mxu0 0.0
    %1574 = vmatpush1.msra.mxu0 0.0
    %1575 = vmatprep.subr.mxu0 0.0
    %1576 = vmatpush1.msra.mxu0 0.0
    %1577 = vmatprep.subr.mxu0 0.0
    %1578 = vmatpush1.msra.mxu0 0.0
    %1579 = vmatprep.subr.mxu0 0.0
    %1580 = vmatpush1.msra.mxu0 0.0
    %1581 = vmatprep.subr.mxu0 0.0
    %1582 = vmatpush1.msra.mxu0 0.0
    %1583 = vmatprep.subr.mxu0 0.0
    %1584 = vmatpush1.msra.mxu0 0.0
    %1585 = vmatprep.subr.mxu0 0.0
    %1586 = vmatpush1.msra.mxu0 0.0
    %1587 = vmatprep.subr.mxu0 0.0
    %1588 = vmatpush1.msra.mxu0 0.0
    %1589 = vmatprep.subr.mxu0 0.0
    %1590 = vmatpush1.msra.mxu0 0.0
    %1591 = vmatprep.subr.mxu0 0.0
    %1592 = vmatpush1.msra.mxu0 0.0
    %1593 = vmatprep.subr.mxu0 0.0
    %1594 = vmatpush1.msra.mxu0 0.0
    %1595 = vmatprep.subr.mxu0 0.0
    %1596 = vmatpush1.msra.mxu0 0.0
    %1597 = vmatprep.subr.mxu0 0.0
    %1598 = vmatpush1.msra.mxu0 0.0
    %1599 = vmatprep.mubr.f32.mxu0 0.0
    %1600 = vmatmul.mubr.f32.gmra.mrb[0].mxu0 %v1533
    %v1601 = vpop.f32.mrb[0].mxu0
    %v1602 = vadd.f32 %v1220, %v1601
    %v1603 = vpop.f32.mrb[0].mxu0
    %1604 = vdwg.mxu0
    %v1606 = vrot.slane %v1602, 2
    %v1608 = vadd.f32 %v1208, %v1606
    %v1609 = vsub.f32 0.0, %v1608
    %v1610 = vmul.f32 %v1609, 1.442695
    %v1611 = vpow.pop %v1610
    %v1612 = vadd.f32 %v1611, 1.0
    %v1613 = vrcp.pop %v1612
    %v1614 = vmul.f32 1.0, %v1613
    %1615 = vrot.lane.b32.xlu0 %v1606, 64
    %v1616 = vpop.permute.xlu0 %1615
    %v1618 = vmul.f32 %v1614, %v1616
    %1620 = vrot.lane.b32.xlu0 %v1618, 64
    %v1621 = vpop.permute.xlu0 %1620
    %v1623 = vadd.f32 %v1208, %v1621
    %v1624 = vtanh.pop %v1623
    %v1625 = vsub.f32 1.0, %v1614
    %1627 = vrot.lane.b32.xlu0 %v1624, 96
    %v1628 = vpop.permute.xlu0 %1627
    %v1630 = vmul.f32 %v1625, %v1628
    %v1631 = vrot.slane %v1528, 6
    %v1633 = vmul.f32 %v1614, %v1631
    %v1634 = vadd.f32 %v1630, %v1633
    %v1636 = vrot.slane %v1634, 6
    %1637 = vrot.lane.b32.xlu0 %v1636, 96
    %v1638 = vpop.permute.xlu0 %1637
    %v1639 = vsel %vm141, %v1638, 0
    %1641 = vmatprep.subr.mxu0 0.0
    %1642 = vmatpush1.msra.mxu0 %v1121
    %1643 = vmatprep.subr.mxu0 0.0
    %1644 = vmatpush1.msra.mxu0 %v1122
    %1645 = vmatprep.subr.mxu0 0.0
    %1646 = vmatpush1.msra.mxu0 %v1123
    %1647 = vmatprep.subr.mxu0 0.0
    %1648 = vmatpush1.msra.mxu0 %v1124
    %1649 = vmatprep.subr.mxu0 0.0
    %1650 = vmatpush1.msra.mxu0 0.0
    %1651 = vmatprep.subr.mxu0 0.0
    %1652 = vmatpush1.msra.mxu0 0.0
    %1653 = vmatprep.subr.mxu0 0.0
    %1654 = vmatpush1.msra.mxu0 0.0
    %1655 = vmatprep.subr.mxu0 0.0
    %1656 = vmatpush1.msra.mxu0 0.0
    %1657 = vmatprep.subr.mxu0 0.0
    %1658 = vmatpush1.msra.mxu0 0.0
    %1659 = vmatprep.subr.mxu0 0.0
    %1660 = vmatpush1.msra.mxu0 0.0
    %1661 = vmatprep.subr.mxu0 0.0
    %1662 = vmatpush1.msra.mxu0 0.0
    %1663 = vmatprep.subr.mxu0 0.0
    %1664 = vmatpush1.msra.mxu0 0.0
    %1665 = vmatprep.subr.mxu0 0.0
    %1666 = vmatpush1.msra.mxu0 0.0
    %1667 = vmatprep.subr.mxu0 0.0
    %1668 = vmatpush1.msra.mxu0 0.0
    %1669 = vmatprep.subr.mxu0 0.0
    %1670 = vmatpush1.msra.mxu0 0.0
    %1671 = vmatprep.subr.mxu0 0.0
    %1672 = vmatpush1.msra.mxu0 0.0
    %1673 = vmatprep.subr.mxu0 0.0
    %1674 = vmatpush1.msra.mxu0 0.0
    %1675 = vmatprep.subr.mxu0 0.0
    %1676 = vmatpush1.msra.mxu0 0.0
    %1677 = vmatprep.subr.mxu0 0.0
    %1678 = vmatpush1.msra.mxu0 0.0
    %1679 = vmatprep.subr.mxu0 0.0
    %1680 = vmatpush1.msra.mxu0 0.0
    %1681 = vmatprep.subr.mxu0 0.0
    %1682 = vmatpush1.msra.mxu0 0.0
    %1683 = vmatprep.subr.mxu0 0.0
    %1684 = vmatpush1.msra.mxu0 0.0
    %1685 = vmatprep.subr.mxu0 0.0
    %1686 = vmatpush1.msra.mxu0 0.0
    %1687 = vmatprep.subr.mxu0 0.0
    %1688 = vmatpush1.msra.mxu0 0.0
    %1689 = vmatprep.subr.mxu0 0.0
    %1690 = vmatpush1.msra.mxu0 0.0
    %1691 = vmatprep.subr.mxu0 0.0
    %1692 = vmatpush1.msra.mxu0 0.0
    %1693 = vmatprep.subr.mxu0 0.0
    %1694 = vmatpush1.msra.mxu0 0.0
    %1695 = vmatprep.subr.mxu0 0.0
    %1696 = vmatpush1.msra.mxu0 0.0
    %1697 = vmatprep.subr.mxu0 0.0
    %1698 = vmatpush1.msra.mxu0 0.0
    %1699 = vmatprep.subr.mxu0 0.0
    %1700 = vmatpush1.msra.mxu0 0.0
    %1701 = vmatprep.subr.mxu0 0.0
    %1702 = vmatpush1.msra.mxu0 0.0
    %1703 = vmatprep.subr.mxu0 0.0
    %1704 = vmatpush1.msra.mxu0 0.0
    %1705 = vmatprep.mubr.f32.mxu0 0.0
    %1706 = vmatmul.mubr.f32.gmra.mrb[0].mxu0 %v1639
    %v1707 = vpop.f32.mrb[0].mxu0
    %v1708 = vadd.f32 %v1220, %v1707
    %v1709 = vpop.f32.mrb[0].mxu0
    %1710 = vdwg.mxu0
    %v1711 = vadd.f32 %v1213, %v1708
    %v1712 = vsub.f32 0.0, %v1711
    %v1713 = vmul.f32 %v1712, 1.442695
    %v1714 = vpow.pop %v1713
    %v1715 = vadd.f32 %v1714, 1.0
    %v1716 = vrcp.pop %v1715
    %v1717 = vmul.f32 1.0, %v1716
    %1719 = vrot.lane.b32.xlu0 %v1708, 64
    %v1720 = vpop.permute.xlu0 %1719
    %v1722 = vmul.f32 %v1717, %v1720
    %1724 = vrot.lane.b32.xlu0 %v1722, 64
    %v1725 = vpop.permute.xlu0 %1724
    %v1727 = vadd.f32 %v1213, %v1725
    %v1728 = vtanh.pop %v1727
    %v1729 = vsub.f32 1.0, %v1717
    %1731 = vrot.lane.b32.xlu0 %v1728, 96
    %v1732 = vpop.permute.xlu0 %1731
    %v1734 = vmul.f32 %v1729, %v1732
    %v1736 = vmul.f32 %v1717, %v1636
    %v1737 = vadd.f32 %v1734, %v1736
    %1739 = vrot.lane.b32.xlu0 %v1737, 96
    %v1740 = vpop.permute.xlu0 %1739
    %v1741 = vsel %vm141, %v1740, 0
    %1743 = vmatprep.subr.mxu0 0.0
    %1744 = vmatpush1.msra.mxu0 %v1121
    %1745 = vmatprep.subr.mxu0 0.0
    %1746 = vmatpush1.msra.mxu0 %v1122
    %1747 = vmatprep.subr.mxu0 0.0
    %1748 = vmatpush1.msra.mxu0 %v1123
    %1749 = vmatprep.subr.mxu0 0.0
    %1750 = vmatpush1.msra.mxu0 %v1124
    %1751 = vmatprep.subr.mxu0 0.0
    %1752 = vmatpush1.msra.mxu0 0.0
    %1753 = vmatprep.subr.mxu0 0.0
    %1754 = vmatpush1.msra.mxu0 0.0
    %1755 = vmatprep.subr.mxu0 0.0
    %1756 = vmatpush1.msra.mxu0 0.0
    %1757 = vmatprep.subr.mxu0 0.0
    %1758 = vmatpush1.msra.mxu0 0.0
    %1759 = vmatprep.subr.mxu0 0.0
    %1760 = vmatpush1.msra.mxu0 0.0
    %1761 = vmatprep.subr.mxu0 0.0
    %1762 = vmatpush1.msra.mxu0 0.0
    %1763 = vmatprep.subr.mxu0 0.0
    %1764 = vmatpush1.msra.mxu0 0.0
    %1765 = vmatprep.subr.mxu0 0.0
    %1766 = vmatpush1.msra.mxu0 0.0
    %1767 = vmatprep.subr.mxu0 0.0
    %1768 = vmatpush1.msra.mxu0 0.0
    %1769 = vmatprep.subr.mxu0 0.0
    %1770 = vmatpush1.msra.mxu0 0.0
    %1771 = vmatprep.subr.mxu0 0.0
    %1772 = vmatpush1.msra.mxu0 0.0
    %1773 = vmatprep.subr.mxu0 0.0
    %1774 = vmatpush1.msra.mxu0 0.0
    %1775 = vmatprep.subr.mxu0 0.0
    %1776 = vmatpush1.msra.mxu0 0.0
    %1777 = vmatprep.subr.mxu0 0.0
    %1778 = vmatpush1.msra.mxu0 0.0
    %1779 = vmatprep.subr.mxu0 0.0
    %1780 = vmatpush1.msra.mxu0 0.0
    %1781 = vmatprep.subr.mxu0 0.0
    %1782 = vmatpush1.msra.mxu0 0.0
    %1783 = vmatprep.subr.mxu0 0.0
    %1784 = vmatpush1.msra.mxu0 0.0
    %1785 = vmatprep.subr.mxu0 0.0
    %1786 = vmatpush1.msra.mxu0 0.0
    %1787 = vmatprep.subr.mxu0 0.0
    %1788 = vmatpush1.msra.mxu0 0.0
    %1789 = vmatprep.subr.mxu0 0.0
    %1790 = vmatpush1.msra.mxu0 0.0
    %1791 = vmatprep.subr.mxu0 0.0
    %1792 = vmatpush1.msra.mxu0 0.0
    %1793 = vmatprep.subr.mxu0 0.0
    %1794 = vmatpush1.msra.mxu0 0.0
    %1795 = vmatprep.subr.mxu0 0.0
    %1796 = vmatpush1.msra.mxu0 0.0
    %1797 = vmatprep.subr.mxu0 0.0
    %1798 = vmatpush1.msra.mxu0 0.0
    %1799 = vmatprep.subr.mxu0 0.0
    %1800 = vmatpush1.msra.mxu0 0.0
    %1801 = vmatprep.subr.mxu0 0.0
    %1802 = vmatpush1.msra.mxu0 0.0
    %1803 = vmatprep.subr.mxu0 0.0
    %1804 = vmatpush1.msra.mxu0 0.0
    %1805 = vmatprep.subr.mxu0 0.0
    %1806 = vmatpush1.msra.mxu0 0.0
    %1807 = vmatprep.mubr.f32.mxu0 0.0
    %1808 = vmatmul.mubr.f32.gmra.mrb[0].mxu0 %v1741
    %v1809 = vpop.f32.mrb[0].mxu0
    %v1810 = vadd.f32 %v1220, %v1809
    %v1811 = vpop.f32.mrb[0].mxu0
    %1812 = vdwg.mxu0
    %v1814 = vrot.slane %v1810, 6
    %v1816 = vadd.f32 %v1213, %v1814
    %v1817 = vsub.f32 0.0, %v1816
    %v1818 = vmul.f32 %v1817, 1.442695
    %v1819 = vpow.pop %v1818
    %v1820 = vadd.f32 %v1819, 1.0
    %v1821 = vrcp.pop %v1820
    %v1822 = vmul.f32 1.0, %v1821
    %1823 = vrot.lane.b32.xlu0 %v1814, 64
    %v1824 = vpop.permute.xlu0 %1823
    %v1826 = vmul.f32 %v1822, %v1824
    %1828 = vrot.lane.b32.xlu0 %v1826, 64
    %v1829 = vpop.permute.xlu0 %1828
    %v1831 = vadd.f32 %v1213, %v1829
    %v1832 = vtanh.pop %v1831
    %v1833 = vsub.f32 1.0, %v1822
    %1835 = vrot.lane.b32.xlu0 %v1832, 96
    %v1836 = vpop.permute.xlu0 %1835
    %v1838 = vmul.f32 %v1833, %v1836
    %v1839 = vrot.slane %v1737, 6
    %v1841 = vmul.f32 %v1822, %v1839
    %v1842 = vadd.f32 %v1838, %v1841
    %v1844 = vrot.slane %v1842, 2
    %1845 = vrot.lane.b32.xlu0 %v1844, 96
    %v1846 = vpop.permute.xlu0 %1845
    %v1847 = vsel %vm141, %v1846, 0
    %1849 = vmatprep.subr.mxu0 0.0
    %1850 = vmatpush1.msra.mxu0 %v1121
    %1851 = vmatprep.subr.mxu0 0.0
    %1852 = vmatpush1.msra.mxu0 %v1122
    %1853 = vmatprep.subr.mxu0 0.0
    %1854 = vmatpush1.msra.mxu0 %v1123
    %1855 = vmatprep.subr.mxu0 0.0
    %1856 = vmatpush1.msra.mxu0 %v1124
    %1857 = vmatprep.subr.mxu0 0.0
    %1858 = vmatpush1.msra.mxu0 0.0
    %1859 = vmatprep.subr.mxu0 0.0
    %1860 = vmatpush1.msra.mxu0 0.0
    %1861 = vmatprep.subr.mxu0 0.0
    %1862 = vmatpush1.msra.mxu0 0.0
    %1863 = vmatprep.subr.mxu0 0.0
    %1864 = vmatpush1.msra.mxu0 0.0
    %1865 = vmatprep.subr.mxu0 0.0
    %1866 = vmatpush1.msra.mxu0 0.0
    %1867 = vmatprep.subr.mxu0 0.0
    %1868 = vmatpush1.msra.mxu0 0.0
    %1869 = vmatprep.subr.mxu0 0.0
    %1870 = vmatpush1.msra.mxu0 0.0
    %1871 = vmatprep.subr.mxu0 0.0
    %1872 = vmatpush1.msra.mxu0 0.0
    %1873 = vmatprep.subr.mxu0 0.0
    %1874 = vmatpush1.msra.mxu0 0.0
    %1875 = vmatprep.subr.mxu0 0.0
    %1876 = vmatpush1.msra.mxu0 0.0
    %1877 = vmatprep.subr.mxu0 0.0
    %1878 = vmatpush1.msra.mxu0 0.0
    %1879 = vmatprep.subr.mxu0 0.0
    %1880 = vmatpush1.msra.mxu0 0.0
    %1881 = vmatprep.subr.mxu0 0.0
    %1882 = vmatpush1.msra.mxu0 0.0
    %1883 = vmatprep.subr.mxu0 0.0
    %1884 = vmatpush1.msra.mxu0 0.0
    %1885 = vmatprep.subr.mxu0 0.0
    %1886 = vmatpush1.msra.mxu0 0.0
    %1887 = vmatprep.subr.mxu0 0.0
    %1888 = vmatpush1.msra.mxu0 0.0
    %1889 = vmatprep.subr.mxu0 0.0
    %1890 = vmatpush1.msra.mxu0 0.0
    %1891 = vmatprep.subr.mxu0 0.0
    %1892 = vmatpush1.msra.mxu0 0.0
    %1893 = vmatprep.subr.mxu0 0.0
    %1894 = vmatpush1.msra.mxu0 0.0
    %1895 = vmatprep.subr.mxu0 0.0
    %1896 = vmatpush1.msra.mxu0 0.0
    %1897 = vmatprep.subr.mxu0 0.0
    %1898 = vmatpush1.msra.mxu0 0.0
    %1899 = vmatprep.subr.mxu0 0.0
    %1900 = vmatpush1.msra.mxu0 0.0
    %1901 = vmatprep.subr.mxu0 0.0
    %1902 = vmatpush1.msra.mxu0 0.0
    %1903 = vmatprep.subr.mxu0 0.0
    %1904 = vmatpush1.msra.mxu0 0.0
    %1905 = vmatprep.subr.mxu0 0.0
    %1906 = vmatpush1.msra.mxu0 0.0
    %1907 = vmatprep.subr.mxu0 0.0
    %1908 = vmatpush1.msra.mxu0 0.0
    %1909 = vmatprep.subr.mxu0 0.0
    %1910 = vmatpush1.msra.mxu0 0.0
    %1911 = vmatprep.subr.mxu0 0.0
    %1912 = vmatpush1.msra.mxu0 0.0
    %1913 = vmatprep.mubr.f32.mxu0 0.0
    %1914 = vmatmul.mubr.f32.gmra.mrb[0].mxu0 %v1847
    %v1915 = vpop.f32.mrb[0].mxu0
    %v1916 = vadd.f32 %v1220, %v1915
    %v1917 = vpop.f32.mrb[0].mxu0
    %1918 = vdwg.mxu0
    %v1920 = vrot.slane %v1916, 4
    %v1922 = vadd.f32 %v1213, %v1920
    %v1923 = vsub.f32 0.0, %v1922
    %v1924 = vmul.f32 %v1923, 1.442695
    %v1925 = vpow.pop %v1924
    %v1926 = vadd.f32 %v1925, 1.0
    %v1927 = vrcp.pop %v1926
    %v1928 = vmul.f32 1.0, %v1927
    %1929 = vrot.lane.b32.xlu0 %v1920, 64
    %v1930 = vpop.permute.xlu0 %1929
    %v1932 = vmul.f32 %v1928, %v1930
    %1934 = vrot.lane.b32.xlu0 %v1932, 64
    %v1935 = vpop.permute.xlu0 %1934
    %v1937 = vadd.f32 %v1213, %v1935
    %v1938 = vtanh.pop %v1937
    %v1939 = vsub.f32 1.0, %v1928
    %1941 = vrot.lane.b32.xlu0 %v1938, 96
    %v1942 = vpop.permute.xlu0 %1941
    %v1944 = vmul.f32 %v1939, %v1942
    %v1945 = vrot.slane %v1842, 6
    %v1947 = vmul.f32 %v1928, %v1945
    %v1948 = vadd.f32 %v1944, %v1947
    %v1950 = vrot.slane %v1948, 4
    %1951 = vrot.lane.b32.xlu0 %v1950, 96
    %v1952 = vpop.permute.xlu0 %1951
    %v1953 = vsel %vm141, %v1952, 0
    %1955 = vmatprep.subr.mxu0 0.0
    %1956 = vmatpush1.msra.mxu0 %v1121
    %1957 = vmatprep.subr.mxu0 0.0
    %1958 = vmatpush1.msra.mxu0 %v1122
    %1959 = vmatprep.subr.mxu0 0.0
    %1960 = vmatpush1.msra.mxu0 %v1123
    %1961 = vmatprep.subr.mxu0 0.0
    %1962 = vmatpush1.msra.mxu0 %v1124
    %1963 = vmatprep.subr.mxu0 0.0
    %1964 = vmatpush1.msra.mxu0 0.0
    %1965 = vmatprep.subr.mxu0 0.0
    %1966 = vmatpush1.msra.mxu0 0.0
    %1967 = vmatprep.subr.mxu0 0.0
    %1968 = vmatpush1.msra.mxu0 0.0
    %1969 = vmatprep.subr.mxu0 0.0
    %1970 = vmatpush1.msra.mxu0 0.0
    %1971 = vmatprep.subr.mxu0 0.0
    %1972 = vmatpush1.msra.mxu0 0.0
    %1973 = vmatprep.subr.mxu0 0.0
    %1974 = vmatpush1.msra.mxu0 0.0
    %1975 = vmatprep.subr.mxu0 0.0
    %1976 = vmatpush1.msra.mxu0 0.0
    %1977 = vmatprep.subr.mxu0 0.0
    %1978 = vmatpush1.msra.mxu0 0.0
    %1979 = vmatprep.subr.mxu0 0.0
    %1980 = vmatpush1.msra.mxu0 0.0
    %1981 = vmatprep.subr.mxu0 0.0
    %1982 = vmatpush1.msra.mxu0 0.0
    %1983 = vmatprep.subr.mxu0 0.0
    %1984 = vmatpush1.msra.mxu0 0.0
    %1985 = vmatprep.subr.mxu0 0.0
    %1986 = vmatpush1.msra.mxu0 0.0
    %1987 = vmatprep.subr.mxu0 0.0
    %1988 = vmatpush1.msra.mxu0 0.0
    %1989 = vmatprep.subr.mxu0 0.0
    %1990 = vmatpush1.msra.mxu0 0.0
    %1991 = vmatprep.subr.mxu0 0.0
    %1992 = vmatpush1.msra.mxu0 0.0
    %1993 = vmatprep.subr.mxu0 0.0
    %1994 = vmatpush1.msra.mxu0 0.0
    %1995 = vmatprep.subr.mxu0 0.0
    %1996 = vmatpush1.msra.mxu0 0.0
    %1997 = vmatprep.subr.mxu0 0.0
    %1998 = vmatpush1.msra.mxu0 0.0
    %1999 = vmatprep.subr.mxu0 0.0
    %2000 = vmatpush1.msra.mxu0 0.0
    %2001 = vmatprep.subr.mxu0 0.0
    %2002 = vmatpush1.msra.mxu0 0.0
    %2003 = vmatprep.subr.mxu0 0.0
    %2004 = vmatpush1.msra.mxu0 0.0
    %2005 = vmatprep.subr.mxu0 0.0
    %2006 = vmatpush1.msra.mxu0 0.0
    %2007 = vmatprep.subr.mxu0 0.0
    %2008 = vmatpush1.msra.mxu0 0.0
    %2009 = vmatprep.subr.mxu0 0.0
    %2010 = vmatpush1.msra.mxu0 0.0
    %2011 = vmatprep.subr.mxu0 0.0
    %2012 = vmatpush1.msra.mxu0 0.0
    %2013 = vmatprep.subr.mxu0 0.0
    %2014 = vmatpush1.msra.mxu0 0.0
    %2015 = vmatprep.subr.mxu0 0.0
    %2016 = vmatpush1.msra.mxu0 0.0
    %2017 = vmatprep.subr.mxu0 0.0
    %2018 = vmatpush1.msra.mxu0 0.0
    %2019 = vmatprep.mubr.f32.mxu0 0.0
    %2020 = vmatmul.mubr.f32.gmra.mrb[0].mxu0 %v1953
    %v2021 = vpop.f32.mrb[0].mxu0
    %v2022 = vadd.f32 %v1220, %v2021
    %v2023 = vpop.f32.mrb[0].mxu0
    %2024 = vdwg.mxu0
    %v2026 = vrot.slane %v2022, 2
    %v2028 = vadd.f32 %v1213, %v2026
    %v2029 = vsub.f32 0.0, %v2028
    %v2030 = vmul.f32 %v2029, 1.442695
    %v2031 = vpow.pop %v2030
    %v2032 = vadd.f32 %v2031, 1.0
    %v2033 = vrcp.pop %v2032
    %v2034 = vmul.f32 1.0, %v2033
    %2035 = vrot.lane.b32.xlu0 %v2026, 64
    %v2036 = vpop.permute.xlu0 %2035
    %v2038 = vmul.f32 %v2034, %v2036
    %2040 = vrot.lane.b32.xlu0 %v2038, 64
    %v2041 = vpop.permute.xlu0 %2040
    %v2043 = vadd.f32 %v1213, %v2041
    %v2044 = vtanh.pop %v2043
    %v2045 = vsub.f32 1.0, %v2034
    %2047 = vrot.lane.b32.xlu0 %v2044, 96
    %v2048 = vpop.permute.xlu0 %2047
    %v2050 = vmul.f32 %v2045, %v2048
    %v2051 = vrot.slane %v1948, 6
    %v2053 = vmul.f32 %v2034, %v2051
    %v2054 = vadd.f32 %v2050, %v2053
    %v2055 = vmax.f32 %v2054, 0.0
    %v2056 = vld [vmem:[%s9] sm:$0xff]
    %v2057 = vld [vmem:[%s9 + $0x8] sm:$0xff]
    %v2058 = vld [vmem:[%s9 + $0x10] sm:$0xff]
    %v2059 = vld [vmem:[%s9 + $0x18] sm:$0xff]
    %v2060 = vld [vmem:[%s10] sm:$0x1]
    %v2062 = vlaneseq
    %v2063 = vshrl.u32 %v2062, 7
    %v2064 = vsub.s32 0, %v2063
    %v2065 = vrot.slane %v2060, %v2064
    %v2068 = vrot.slane %v2055, 6
    %2069 = vrot.lane.b32.xlu0 %v2068, 96
    %v2070 = vpop.permute.xlu0 %2069
    %v2071 = vsel %vm141, %v2070, 0
    %2073 = vmatprep.subr.mxu0 0.0
    %2074 = vmatpush1.msra.mxu0 %v2056
    %2075 = vmatprep.subr.mxu0 0.0
    %2076 = vmatpush1.msra.mxu0 %v2057
    %2077 = vmatprep.subr.mxu0 0.0
    %2078 = vmatpush1.msra.mxu0 %v2058
    %2079 = vmatprep.subr.mxu0 0.0
    %2080 = vmatpush1.msra.mxu0 %v2059
    %2081 = vmatprep.subr.mxu0 0.0
    %2082 = vmatpush1.msra.mxu0 0.0
    %2083 = vmatprep.subr.mxu0 0.0
    %2084 = vmatpush1.msra.mxu0 0.0
    %2085 = vmatprep.subr.mxu0 0.0
    %2086 = vmatpush1.msra.mxu0 0.0
    %2087 = vmatprep.subr.mxu0 0.0
    %2088 = vmatpush1.msra.mxu0 0.0
    %2089 = vmatprep.subr.mxu0 0.0
    %2090 = vmatpush1.msra.mxu0 0.0
    %2091 = vmatprep.subr.mxu0 0.0
    %2092 = vmatpush1.msra.mxu0 0.0
    %2093 = vmatprep.subr.mxu0 0.0
    %2094 = vmatpush1.msra.mxu0 0.0
    %2095 = vmatprep.subr.mxu0 0.0
    %2096 = vmatpush1.msra.mxu0 0.0
    %2097 = vmatprep.subr.mxu0 0.0
    %2098 = vmatpush1.msra.mxu0 0.0
    %2099 = vmatprep.subr.mxu0 0.0
    %2100 = vmatpush1.msra.mxu0 0.0
    %2101 = vmatprep.subr.mxu0 0.0
    %2102 = vmatpush1.msra.mxu0 0.0
    %2103 = vmatprep.subr.mxu0 0.0
    %2104 = vmatpush1.msra.mxu0 0.0
    %2105 = vmatprep.subr.mxu0 0.0
    %2106 = vmatpush1.msra.mxu0 0.0
    %2107 = vmatprep.subr.mxu0 0.0
    %2108 = vmatpush1.msra.mxu0 0.0
    %2109 = vmatprep.subr.mxu0 0.0
    %2110 = vmatpush1.msra.mxu0 0.0
    %2111 = vmatprep.subr.mxu0 0.0
    %2112 = vmatpush1.msra.mxu0 0.0
    %2113 = vmatprep.subr.mxu0 0.0
    %2114 = vmatpush1.msra.mxu0 0.0
    %2115 = vmatprep.subr.mxu0 0.0
    %2116 = vmatpush1.msra.mxu0 0.0
    %2117 = vmatprep.subr.mxu0 0.0
    %2118 = vmatpush1.msra.mxu0 0.0
    %2119 = vmatprep.subr.mxu0 0.0
    %2120 = vmatpush1.msra.mxu0 0.0
    %2121 = vmatprep.subr.mxu0 0.0
    %2122 = vmatpush1.msra.mxu0 0.0
    %2123 = vmatprep.subr.mxu0 0.0
    %2124 = vmatpush1.msra.mxu0 0.0
    %2125 = vmatprep.subr.mxu0 0.0
    %2126 = vmatpush1.msra.mxu0 0.0
    %2127 = vmatprep.subr.mxu0 0.0
    %2128 = vmatpush1.msra.mxu0 0.0
    %2129 = vmatprep.subr.mxu0 0.0
    %2130 = vmatpush1.msra.mxu0 0.0
    %2131 = vmatprep.subr.mxu0 0.0
    %2132 = vmatpush1.msra.mxu0 0.0
    %2133 = vmatprep.subr.mxu0 0.0
    %2134 = vmatpush1.msra.mxu0 0.0
    %2135 = vmatprep.subr.mxu0 0.0
    %2136 = vmatpush1.msra.mxu0 0.0
    %2137 = vmatprep.mubr.f32.mxu0 0.0
    %2138 = vmatmul.mubr.f32.gmra.mrb[0].mxu0 %v2071
    %v2139 = vpop.f32.mrb[0].mxu0
    %v2140 = vadd.f32 %v2065, %v2139
    %v2141 = vpop.f32.mrb[0].mxu0
    %2142 = vdwg.mxu0
    %v2143 = vmax.f32 %v2140, 0.0
    %v2144 = vld [vmem:[%s11] sm:$0xff]
    %v2145 = vld [vmem:[%s11 + $0x8] sm:$0xff]
    %v2146 = vld [vmem:[%s11 + $0x10] sm:$0xff]
    %v2147 = vld [vmem:[%s11 + $0x18] sm:$0xff]
    %v2148 = vld [vmem:[%s12] sm:$0x1]
    %v2150 = vlaneseq
    %v2151 = vshrl.u32 %v2150, 7
    %v2152 = vsub.s32 0, %v2151
    %v2153 = vrot.slane %v2148, %v2152
    %v2156 = vsel %vm141, %v2143, 0
    %2158 = vmatprep.subr.mxu0 0.0
    %2159 = vmatpush1.msra.mxu0 %v2144
    %2160 = vmatprep.subr.mxu0 0.0
    %2161 = vmatpush1.msra.mxu0 %v2145
    %2162 = vmatprep.subr.mxu0 0.0
    %2163 = vmatpush1.msra.mxu0 %v2146
    %2164 = vmatprep.subr.mxu0 0.0
    %2165 = vmatpush1.msra.mxu0 %v2147
    %2166 = vmatprep.subr.mxu0 0.0
    %2167 = vmatpush1.msra.mxu0 0.0
    %2168 = vmatprep.subr.mxu0 0.0
    %2169 = vmatpush1.msra.mxu0 0.0
    %2170 = vmatprep.subr.mxu0 0.0
    %2171 = vmatpush1.msra.mxu0 0.0
    %2172 = vmatprep.subr.mxu0 0.0
    %2173 = vmatpush1.msra.mxu0 0.0
    %2174 = vmatprep.subr.mxu0 0.0
    %2175 = vmatpush1.msra.mxu0 0.0
    %2176 = vmatprep.subr.mxu0 0.0
    %2177 = vmatpush1.msra.mxu0 0.0
    %2178 = vmatprep.subr.mxu0 0.0
    %2179 = vmatpush1.msra.mxu0 0.0
    %2180 = vmatprep.subr.mxu0 0.0
    %2181 = vmatpush1.msra.mxu0 0.0
    %2182 = vmatprep.subr.mxu0 0.0
    %2183 = vmatpush1.msra.mxu0 0.0
    %2184 = vmatprep.subr.mxu0 0.0
    %2185 = vmatpush1.msra.mxu0 0.0
    %2186 = vmatprep.subr.mxu0 0.0
    %2187 = vmatpush1.msra.mxu0 0.0
    %2188 = vmatprep.subr.mxu0 0.0
    %2189 = vmatpush1.msra.mxu0 0.0
    %2190 = vmatprep.subr.mxu0 0.0
    %2191 = vmatpush1.msra.mxu0 0.0
    %2192 = vmatprep.subr.mxu0 0.0
    %2193 = vmatpush1.msra.mxu0 0.0
    %2194 = vmatprep.subr.mxu0 0.0
    %2195 = vmatpush1.msra.mxu0 0.0
    %2196 = vmatprep.subr.mxu0 0.0
    %2197 = vmatpush1.msra.mxu0 0.0
    %2198 = vmatprep.subr.mxu0 0.0
    %2199 = vmatpush1.msra.mxu0 0.0
    %2200 = vmatprep.subr.mxu0 0.0
    %2201 = vmatpush1.msra.mxu0 0.0
    %2202 = vmatprep.subr.mxu0 0.0
    %2203 = vmatpush1.msra.mxu0 0.0
    %2204 = vmatprep.subr.mxu0 0.0
    %2205 = vmatpush1.msra.mxu0 0.0
    %2206 = vmatprep.subr.mxu0 0.0
    %2207 = vmatpush1.msra.mxu0 0.0
    %2208 = vmatprep.subr.mxu0 0.0
    %2209 = vmatpush1.msra.mxu0 0.0
    %2210 = vmatprep.subr.mxu0 0.0
    %2211 = vmatpush1.msra.mxu0 0.0
    %2212 = vmatprep.subr.mxu0 0.0
    %2213 = vmatpush1.msra.mxu0 0.0
    %2214 = vmatprep.subr.mxu0 0.0
    %2215 = vmatpush1.msra.mxu0 0.0
    %2216 = vmatprep.subr.mxu0 0.0
    %2217 = vmatpush1.msra.mxu0 0.0
    %2218 = vmatprep.subr.mxu0 0.0
    %2219 = vmatpush1.msra.mxu0 0.0
    %2220 = vmatprep.subr.mxu0 0.0
    %2221 = vmatpush1.msra.mxu0 0.0
    %2222 = vmatprep.mubr.f32.mxu0 0.0
    %2223 = vmatmul.mubr.f32.gmra.mrb[0].mxu0 %v2156
    %v2224 = vpop.f32.mrb[0].mxu0
    %v2225 = vadd.f32 %v2153, %v2224
    %v2226 = vpop.f32.mrb[0].mxu0
    %2227 = vdwg.mxu0
    %v2228 = vmax.f32 %v2225, 0.0
    %vm2229 = vcmask 58368
    %2230 = vst.msk [vmem:[#allocation14] sm:$0x3] %vm2229, %v2228
    // Predicated region
    $region78: #{tpu_custom_call.1} parent=1 // pred_check
      _
    $region79: #{tpu_custom_call.1} parent=1 // pred_check_branch
      %2232 = sbr.rel (0) target = $region81
    $region80: #{tpu_custom_call.1} parent=1 // pred_region
      %s2234 = ssub.s32 32, 32
      %2235 = vsyncadd [#allocation5], %s2234
      %s2237 = sshll.u32 [#allocation14], 4
      %s2238 = int_to_ptr.vmem [resolvable:$true] %s2237
      %2240 = dma.vmem_to_hbm [thread:$0]  %s2238, 32, %s13, [#allocation5]
    $region81: #{tpu_custom_call.1} parent=1 // pred_fallthru
      _
    // Predicated region
    $region82: #{tpu_custom_call.1} parent=1 // pred_check
      _
    $region83: #{tpu_custom_call.1} parent=1 // pred_check_branch
      %2242 = sbr.rel (0) target = $region85
    $region84: #{tpu_custom_call.1} parent=1 // pred_region
      %2243 = dma.done [#allocation5], 32
    $region85: #{tpu_custom_call.1} parent=1 // pred_fallthru
      _
    %2244 = vsyncpa [#allocation4], 1
    %2245 = vsyncpa [#allocation7], 1
    %2246 = vsyncpa [#allocation10], 1
    %2247 = vsyncpa [#allocation13], 1
    %2248 = vsyncpa [#allocation5], 1

</llo_original>
